<compile_context>
chip_gen: v5e
topology: v5e:2x2
jax: 0.10.0
libtpu: 0.0.40
codegen_flags: <defaults>
</compile_context>

<pallas_src>
import functools

import numpy as np

import jax
import jax.numpy as jnp
from jax.experimental import pallas as pl
from jax.experimental.pallas import tpu as pltpu


# ----------------------------------------------------------------------------
# Pallas kernels
# ----------------------------------------------------------------------------
def _epilogue(y, p_ref, act):
    """y: (Cout, tile_s) f32; p_ref: (3, Cout, 1) = [bias, bn_scale, bn_shift]."""
    y = y + p_ref[0]
    if act == "leaky":
        y = jnp.where(y >= 0.0, y, 0.02 * y)
    elif act == "relu6":
        y = jnp.clip(y, 0.0, 6.0)
    elif act == "tanh":
        y = jnp.tanh(y)
    # act == "none": passthrough
    return y * p_ref[1] + p_ref[2]


def _conv_cm_kernel(x_ref, w_ref, p_ref, o_ref, *, act):
    """(Cout, K)bf16 @ (K, tile_s)bf16 -> f32 -> bias/act/folded-BN epilogue."""
    y = jnp.dot(w_ref[...], x_ref[...], preferred_element_type=jnp.float32)
    o_ref[...] = _epilogue(y, p_ref, act).astype(o_ref.dtype)


def _conv_cm_prescale_kernel(x_ref, g_ref, w_ref, p_ref, o_ref, *, act):
    """Same as above, but weight columns are scaled per-image by g (1, K).

    Used for self.conv: the attention modulation (1 + sigmoid(gate)) of the
    input channels is folded into the weight columns (conv is linear per
    input channel), avoiding materializing the modulated feature map.
    """
    w = (w_ref[...].astype(jnp.float32) * g_ref[...]).astype(jnp.bfloat16)
    y = jnp.dot(w, x_ref[...], preferred_element_type=jnp.float32)
    o_ref[...] = _epilogue(y, p_ref, act).astype(o_ref.dtype)


def _attn_gate_kernel(x_ref, w_ref, p_ref, o_ref):
    """Conv3x3(s2) -> ReLU6 -> BN -> spatial mean -> 1 + sigmoid, per image."""
    y = jnp.dot(w_ref[...], x_ref[...], preferred_element_type=jnp.float32)
    y = jnp.clip(y + p_ref[0], 0.0, 6.0)
    y = y * p_ref[1] + p_ref[2]
    m = jnp.mean(y, axis=1, keepdims=True)                       # (Cout, 1)
    gate = pl.reciprocal(1.0 + jnp.exp(-m), approx=True)         # sigmoid (EUP)
    o_ref[...] = 1.0 + gate                                      # modulation factor


# ----------------------------------------------------------------------------
# Pallas wrappers
# ----------------------------------------------------------------------------
def conv_cm(patches, w_flat, ep_params, act, prescale=None, max_tile_s=512):
    """Channel-major fused conv matmul.

    patches  : (N, K, S)  bf16, row = tap*Cin + ci, col = flattened spatial
    w_flat   : (Cout, K)  bf16
    ep_params: (3, Cout, 1) f32 = [bias, bn_scale, bn_shift]
    prescale : optional (N, 1, K) f32 per-image weight-column scaling
    returns  : (N, Cout, S) f32
    """
    N, K, S = patches.shape
    Cout = w_flat.shape[0]

    if S <= max_tile_s:
        ts = S
    else:
        ts = S
        for cand in (512, 256, 128):
            if cand <= max_tile_s and S % cand == 0:
                ts = cand
                break
    grid = (N, S // ts)

    x_spec = pl.BlockSpec((None, K, ts), lambda n, s: (n, 0, s))
    w_spec = pl.BlockSpec((Cout, K), lambda n, s: (0, 0))
    p_spec = pl.BlockSpec((3, Cout, 1), lambda n, s: (0, 0, 0))
    o_spec = pl.BlockSpec((None, Cout, ts), lambda n, s: (n, 0, s))

    if prescale is None:
        kernel = functools.partial(_conv_cm_kernel, act=act)
        in_specs = [x_spec, w_spec, p_spec]
        args = (patches, w_flat, ep_params)
    else:
        kernel = functools.partial(_conv_cm_prescale_kernel, act=act)
        g_spec = pl.BlockSpec((None, 1, K), lambda n, s: (n, 0, 0))
        in_specs = [x_spec, g_spec, w_spec, p_spec]
        args = (patches, prescale, w_flat, ep_params)

    return pl.pallas_call(
        kernel,
        out_shape=jax.ShapeDtypeStruct((N, Cout, S), jnp.float32),
        grid=grid,
        in_specs=in_specs,
        out_specs=o_spec,
        compiler_params=pltpu.CompilerParams(
            dimension_semantics=("parallel", "parallel")),
    )(*args)


def attention_gate(patches, w_flat, ep_params):
    """Fused attention branch: returns (N, Cout, 1) modulation = 1 + sigmoid(pool)."""
    N, K, S = patches.shape
    Cout = w_flat.shape[0]
    return pl.pallas_call(
        _attn_gate_kernel,
        out_shape=jax.ShapeDtypeStruct((N, Cout, 1), jnp.float32),
        grid=(N,),
        in_specs=[
            pl.BlockSpec((None, K, S), lambda n: (n, 0, 0)),
            pl.BlockSpec((Cout, K), lambda n: (0, 0)),
            pl.BlockSpec((3, Cout, 1), lambda n: (0, 0, 0)),
        ],
        out_specs=pl.BlockSpec((None, Cout, 1), lambda n: (n, 0, 0)),
        compiler_params=pltpu.CompilerParams(dimension_semantics=("parallel",)),
    )(patches, w_flat, ep_params)


# ----------------------------------------------------------------------------
# Plain-JAX glue: channel-major im2col (bf16), pixel shuffle
# ----------------------------------------------------------------------------
def im2col_cm(x, kh, kw, stride, pad):
    """x: (N, C, H, W) -> patches (N, kh*kw*C, Ho*Wo) bf16; row = tap*C + c."""
    N, C, H, W = x.shape
    xp = jnp.pad(x, ((0, 0), (0, 0), (pad, pad), (pad, pad)))
    Ho = (H + 2 * pad - kh) // stride + 1
    Wo = (W + 2 * pad - kw) // stride + 1
    taps = []
    for dy in range(kh):
        for dx in range(kw):
            taps.append(xp[:, :,
                           dy:dy + (Ho - 1) * stride + 1:stride,
                           dx:dx + (Wo - 1) * stride + 1:stride])
    p = jnp.stack(taps, axis=1)                      # (N, kh*kw, C, Ho, Wo)
    p = p.reshape(N, kh * kw * C, Ho * Wo)
    return p.astype(jnp.bfloat16), (Ho, Wo)


def pixel_shuffle_branches(o, nb, half, ho, wo):
    """(N, nb*4*half, ho*wo) with channel order (b, ry, rx, co) -> (N, nb*half, 2ho, 2wo)."""
    n = o.shape[0]
    t = o.reshape(n, nb, 2, 2, half, ho, wo)
    t = jnp.transpose(t, (0, 1, 4, 5, 2, 6, 3))      # (n, b, co, i, ry, j, rx)
    return t.reshape(n, nb * half, 2 * ho, 2 * wo)


# ----------------------------------------------------------------------------
# Deterministic synthetic parameters + branch fusion (PyTorch shapes/layouts)
# ----------------------------------------------------------------------------
def _flatten_oihw(w):
    """(O, I, kh, kw) -> (O, kh*kw*I); column index = (dy*kw + dx)*I + ci."""
    o, i, kh, kw = w.shape
    return np.transpose(w, (0, 2, 3, 1)).reshape(o, kh * kw * i)


def init_params(key, in_c):
    half = in_c // 2
    nb = 4
    keys = iter(jax.random.split(key, 128))

    def rnd(shape, s=0.25):
        return np.asarray(s * jax.random.normal(next(keys), shape, dtype=jnp.float32))

    def bn(c):
        g = 1.0 + 0.1 * np.asarray(jax.random.normal(next(keys), (c,), dtype=jnp.float32))
        b = 0.1 * np.asarray(jax.random.normal(next(keys), (c,), dtype=jnp.float32))
        m = 0.1 * np.asarray(jax.random.normal(next(keys), (c,), dtype=jnp.float32))
        v = 1.0 + 0.1 * np.abs(np.asarray(jax.random.normal(next(keys), (c,), dtype=jnp.float32)))
        scale = g / np.sqrt(v + 1e-5)
        shift = b - m * scale
        return scale, shift

    br = []
    for _ in range(nb):
        d = dict(wt=rnd((in_c, half, 4, 4)), bt=rnd((half,), 0.1))      # ConvTranspose2d
        d["s1"], d["h1"] = bn(half)
        d.update(w11=rnd((half, half, 1, 1)), b11=rnd((half,), 0.1))    # Conv2d 1x1
        d["s2"], d["h2"] = bn(half)
        d.update(wdo=rnd((1, half, 3, 3)), bdo=rnd((1,), 0.1))          # depth_out 3x3
        d.update(wat=rnd((half, in_c, 3, 3)), bat=rnd((half,), 0.1))    # attention 3x3 s2
        d["sa"], d["ha"] = bn(half)
        br.append(d)
    wc, bc = rnd((half, 2 * in_c, 3, 3)), rnd((half,), 0.1)             # self.conv
    sc, hc = bn(half)
    wd, bd = rnd((1, half, 3, 3)), rnd((1,), 0.1)                       # self.depconv

    # ---- stage 1: 4x ConvTranspose2d(4,2,1) as ONE 3x3 stride-1 sub-pixel conv ----
    # output channel order: (branch, ry, rx, co); parity r maps conv tap dy -> ConvT tap ky
    kmap = {0: {0: 3, 1: 1}, 1: {1: 2, 2: 0}}
    w_up1 = np.zeros((nb, 2, 2, half, in_c, 3, 3), np.float32)
    b_up1 = np.zeros((nb, 2, 2, half), np.float32)
    s_up1 = np.zeros_like(b_up1)
    h_up1 = np.zeros_like(b_up1)
    for b in range(nb):
        wT = br[b]["wt"]                                # (ci, co, ky, kx)
        for ry in (0, 1):
            for rx in (0, 1):
                for dy, ky in kmap[ry].items():
                    for dx, kx in kmap[rx].items():
                        w_up1[b, ry, rx, :, :, dy, dx] = wT[:, :, ky, kx].T
                b_up1[b, ry, rx] = br[b]["bt"]
                s_up1[b, ry, rx] = br[b]["s1"]
                h_up1[b, ry, rx] = br[b]["h1"]
    w_up1 = w_up1.reshape(nb * 4 * half, in_c, 3, 3)

    # ---- stage 2: 4x Conv2d 1x1 -> block-diagonal (nb*half, nb*half) ----
    w_up2 = np.zeros((nb * half, nb * half), np.float32)
    for b in range(nb):
        w_up2[b * half:(b + 1) * half, b * half:(b + 1) * half] = br[b]["w11"][:, :, 0, 0]
    b_up2 = np.concatenate([br[b]["b11"] for b in range(nb)])
    s_up2 = np.concatenate([br[b]["s2"] for b in range(nb)])
    h_up2 = np.concatenate([br[b]["h2"] for b in range(nb)])

    # ---- depth_out: 4x Conv2d(half, 1, 3) -> block-structured (nb, nb*half, 3, 3) ----
    w_do = np.zeros((nb, nb * half, 3, 3), np.float32)
    for b in range(nb):
        w_do[b, b * half:(b + 1) * half] = br[b]["wdo"][0]
    b_do = np.concatenate([br[b]["bdo"] for b in range(nb)])

    # ---- attention: 4x Conv2d(in_c, half, 3, s2) -> concat along Cout ----
    w_at = np.concatenate([br[b]["wat"] for b in range(nb)], axis=0)
    b_at = np.concatenate([br[b]["bat"] for b in range(nb)])
    s_at = np.concatenate([br[b]["sa"] for b in range(nb)])
    h_at = np.concatenate([br[b]["ha"] for b in range(nb)])

    def pack(bias, scale, shift):
        c = bias.shape[0]
        return jnp.asarray(np.stack([bias, scale, shift]).reshape(3, c, 1), jnp.float32)

    ones = lambda c: np.ones((c,), np.float32)
    zeros = lambda c: np.zeros((c,), np.float32)

    return dict(
        w_up1=jnp.asarray(_flatten_oihw(w_up1), jnp.bfloat16),
        p_up1=pack(b_up1.reshape(-1), s_up1.reshape(-1), h_up1.reshape(-1)),
        w_up2=jnp.asarray(w_up2, jnp.bfloat16),
        p_up2=pack(b_up2, s_up2, h_up2),
        w_do=jnp.asarray(_flatten_oihw(w_do), jnp.bfloat16),
        p_do=pack(b_do, ones(nb), zeros(nb)),
        w_at=jnp.asarray(_flatten_oihw(w_at), jnp.bfloat16),
        p_at=pack(b_at, s_at, h_at),
        w_c=jnp.asarray(_flatten_oihw(wc), jnp.bfloat16),
        p_c=pack(bc, sc, hc),
        w_d=jnp.asarray(_flatten_oihw(wd), jnp.bfloat16),
        p_d=pack(bd, ones(1), zeros(1)),
    )


# ----------------------------------------------------------------------------
# Forward pass (matches depth_block.forward; NCHW in / NCHW out)
# ----------------------------------------------------------------------------
def depth_block_forward(x_nchw, params):
    nb = 4
    half = params["w_up2"].shape[0] // nb
    x = x_nchw.astype(jnp.float32)
    n = x.shape[0]

    # upconv stage 1: fused ConvT(4,2,1) for 4 branches -> LeakyReLU(0.02) -> BN
    p1, (h1, w1) = im2col_cm(x, 3, 3, 1, 1)
    o1 = conv_cm(p1, params["w_up1"], params["p_up1"], "leaky")
    u = pixel_shuffle_branches(o1, nb, half, h1, w1)              # (N, nb*half, 2H, 2W)
    hf, wf = 2 * h1, 2 * w1

    # upconv stage 2: fused 1x1 conv (block-diag) -> ReLU6 -> BN
    p2 = u.reshape(n, nb * half, hf * wf).astype(jnp.bfloat16)
    o2 = conv_cm(p2, params["w_up2"], params["p_up2"], "relu6")
    f = o2.reshape(n, nb * half, hf, wf)                          # features (cat of 4)

    # shared 3x3 im2col of f (used by depth_out AND self.conv)
    pf, _ = im2col_cm(f, 3, 3, 1, 1)

    # depth_out: 4x Conv3x3 -> Tanh
    od = conv_cm(pf, params["w_do"], params["p_do"], "tanh")
    dep_o = [od[:, i:i + 1, :].reshape(n, 1, hf, wf) for i in range(nb)]

    # attention: 4x Conv3x3 s2 -> ReLU6 -> BN -> AvgPool -> Sigmoid (one kernel)
    pa, _ = im2col_cm(x, 3, 3, 2, 1)
    mod = attention_gate(pa, params["w_at"], params["p_at"])      # (N, nb*half, 1) = 1 + gate

    # self.conv on cat(out_f): out_f = (1+gate)*f folded into weight columns per image
    g_rows = jnp.tile(mod.reshape(n, 1, nb * half), (1, 1, 9))    # col = tap*(nb*half) + c
    oc = conv_cm(pf, params["w_c"], params["p_c"], "leaky", prescale=g_rows)
    fc = oc.reshape(n, half, hf, wf)

    # depconv: Conv3x3 -> Tanh
    pd, _ = im2col_cm(fc, 3, 3, 1, 1)
    odep = conv_cm(pd, params["w_d"], params["p_d"], "tanh")
    dep_1 = odep.reshape(n, 1, hf, wf)
    return dep_o, dep_1


# ----------------------------------------------------------------------------
if __name__ == "__main__":
    key = jax.random.PRNGKey(0)
    kx, kp = jax.random.split(key)

    in_c = 4
    x = jax.random.normal(kx, (2, in_c, 16, 16), jnp.float32)     # NCHW like PyTorch
    params = init_params(kp, in_c)

    fwd = jax.jit(depth_block_forward)
    dep_o, dep_1 = fwd(x, params)

    jax.block_until_ready(dep_1)
    for d in dep_o:
        jax.block_until_ready(d)

    assert dep_1.shape == (2, 1, 32, 32), dep_1.shape
    assert len(dep_o) == 4 and all(d.shape == (2, 1, 32, 32) for d in dep_o)
    assert bool(jnp.all(jnp.isfinite(dep_1)))
    assert all(bool(jnp.all(jnp.isfinite(d))) for d in dep_o)
    print("KERNEL_OK")
</pallas_src>

<mosaic_0001>
module attributes {stable_mosaic.version = 11 : i64} {
  func.func @_attn_gate_kernel(%arg0: i32, %arg1: memref<1x36x64xbf16, #tpu.memory_space<vmem>>, %arg2: memref<8x36xbf16, #tpu.memory_space<vmem>>, %arg3: memref<3x8x1xf32, #tpu.memory_space<vmem>>, %arg4: memref<1x8x1xf32, #tpu.memory_space<vmem>>) attributes {dimension_semantics = [#tpu.dimension_semantics<parallel>], iteration_bounds = array<i64: 2>, scalar_prefetch = 0 : i64, scratch_operands = 0 : i64, tpu.core_type = #tpu.core_type<tc>, window_params = [{transform_indices = @transform_0, window_bounds = array<i64: 1, 36, 64>}, {pipeline_mode = #tpu.pipeline_mode<synchronous>, transform_indices = @transform_1, window_bounds = array<i64: 8, 36>}, {pipeline_mode = #tpu.pipeline_mode<synchronous>, transform_indices = @transform_2, window_bounds = array<i64: 3, 8, 1>}, {transform_indices = @transform_3, window_bounds = array<i64: 1, 8, 1>}]} {
    %c0 = arith.constant 0 : index
    %c0_0 = arith.constant 0 : index
    %0 = vector.load %arg2[%c0, %c0_0] : memref<8x36xbf16, #tpu.memory_space<vmem>>, vector<8x36xbf16>
    %c0_1 = arith.constant 0 : index
    %c0_2 = arith.constant 0 : index
    %c0_3 = arith.constant 0 : index
    %1 = vector.load %arg1[%c0_1, %c0_2, %c0_3] : memref<1x36x64xbf16, #tpu.memory_space<vmem>>, vector<1x36x64xbf16>
    %2 = vector.shape_cast %1 : vector<1x36x64xbf16> to vector<36x64xbf16>
    %cst = arith.constant dense<0.000000e+00> : vector<8x64xf32>
    %3 = tpu.matmul %0, %2, %cst {dimension_numbers = #tpu.dot_dimension_numbers<[1], [0], [0], [1], [0, 0, 1, 1], [], []>} : vector<8x36xbf16>, vector<36x64xbf16>, vector<8x64xf32> -> vector<8x64xf32>
    %c0_4 = arith.constant 0 : index
    %c0_5 = arith.constant 0 : index
    %c0_6 = arith.constant 0 : index
    %4 = vector.load %arg3[%c0_4, %c0_5, %c0_6] : memref<3x8x1xf32, #tpu.memory_space<vmem>>, vector<1x8x1xf32>
    %5 = vector.shape_cast %4 : vector<1x8x1xf32> to vector<8x1xf32>
    %6 = vector.broadcast %5 : vector<8x1xf32> to vector<8x64xf32>
    %7 = arith.addf %3, %6 : vector<8x64xf32>
    %cst_7 = arith.constant 0.000000e+00 : f32
    %cst_8 = arith.constant 6.000000e+00 : f32
    %8 = vector.broadcast %cst_7 : f32 to vector<8x64xf32>
    %9 = arith.maximumf %8, %7 : vector<8x64xf32>
    %10 = vector.broadcast %cst_8 : f32 to vector<8x64xf32>
    %11 = arith.minimumf %10, %9 : vector<8x64xf32>
    %c1 = arith.constant 1 : index
    %c0_9 = arith.constant 0 : index
    %c0_10 = arith.constant 0 : index
    %12 = vector.load %arg3[%c1, %c0_9, %c0_10] : memref<3x8x1xf32, #tpu.memory_space<vmem>>, vector<1x8x1xf32>
    %13 = vector.shape_cast %12 : vector<1x8x1xf32> to vector<8x1xf32>
    %14 = vector.broadcast %13 : vector<8x1xf32> to vector<8x64xf32>
    %15 = arith.mulf %11, %14 : vector<8x64xf32>
    %c2 = arith.constant 2 : index
    %c0_11 = arith.constant 0 : index
    %c0_12 = arith.constant 0 : index
    %16 = vector.load %arg3[%c2, %c0_11, %c0_12] : memref<3x8x1xf32, #tpu.memory_space<vmem>>, vector<1x8x1xf32>
    %17 = vector.shape_cast %16 : vector<1x8x1xf32> to vector<8x1xf32>
    %18 = vector.broadcast %17 : vector<8x1xf32> to vector<8x64xf32>
    %19 = arith.addf %15, %18 : vector<8x64xf32>
    %cst_13 = arith.constant dense<0.000000e+00> : vector<8xf32>
    %20 = vector.multi_reduction <add>, %19, %cst_13 [1] : vector<8x64xf32> to vector<8xf32>
    %21 = vector.shape_cast %20 : vector<8xf32> to vector<8x1xf32>
    %cst_14 = arith.constant 6.400000e+01 : f32
    %22 = vector.broadcast %cst_14 : f32 to vector<8x1xf32>
    %23 = arith.divf %21, %22 : vector<8x1xf32>
    %cst_15 = arith.constant 0.000000e+00 : f32
    %24 = vector.broadcast %cst_15 : f32 to vector<8x1xf32>
    %25 = arith.subf %24, %23 : vector<8x1xf32>
    %26 = math.exp %25 : vector<8x1xf32>
    %cst_16 = arith.constant 1.000000e+00 : f32
    %27 = vector.broadcast %cst_16 : f32 to vector<8x1xf32>
    %28 = arith.addf %27, %26 : vector<8x1xf32>
    %29 = tpu.reciprocal %28 {approx = true} : vector<8x1xf32> -> vector<8x1xf32>
    %cst_17 = arith.constant 1.000000e+00 : f32
    %30 = vector.broadcast %cst_17 : f32 to vector<8x1xf32>
    %31 = arith.addf %30, %29 : vector<8x1xf32>
    %c0_18 = arith.constant 0 : index
    %c0_19 = arith.constant 0 : index
    %c0_20 = arith.constant 0 : index
    %32 = vector.load %arg4[%c0_18, %c0_19, %c0_20] : memref<1x8x1xf32, #tpu.memory_space<vmem>>, vector<1x8x1xf32>
    %33 = vector.shape_cast %32 : vector<1x8x1xf32> to vector<8x1xf32>
    %34 = vector.shape_cast %31 : vector<8x1xf32> to vector<1x8x1xf32>
    tpu.vector_store %arg4[%c0_18, %c0_19, %c0_20], %34 {strides = array<i32>} : memref<1x8x1xf32, #tpu.memory_space<vmem>>, vector<1x8x1xf32>,
    return
  }
  func.func @transform_0(%arg0: i32) -> (i32, i32, i32) {
    %c0_i32 = arith.constant 0 : i32
    %c0_i32_0 = arith.constant 0 : i32
    %c0_i32_1 = arith.constant 0 : i32
    return %arg0, %c0_i32, %c0_i32_0 : i32, i32, i32
  }
  func.func @transform_1(%arg0: i32) -> (i32, i32) {
    %c0_i32 = arith.constant 0 : i32
    %c0_i32_0 = arith.constant 0 : i32
    %c0_i32_1 = arith.constant 0 : i32
    return %c0_i32, %c0_i32_0 : i32, i32
  }
  func.func @transform_2(%arg0: i32) -> (i32, i32, i32) {
    %c0_i32 = arith.constant 0 : i32
    %c0_i32_0 = arith.constant 0 : i32
    %c0_i32_1 = arith.constant 0 : i32
    %c0_i32_2 = arith.constant 0 : i32
    return %c0_i32, %c0_i32_0, %c0_i32_1 : i32, i32, i32
  }
  func.func @transform_3(%arg0: i32) -> (i32, i32, i32) {
    %c0_i32 = arith.constant 0 : i32
    %c0_i32_0 = arith.constant 0 : i32
    %c0_i32_1 = arith.constant 0 : i32
    return %arg0, %c0_i32, %c0_i32_0 : i32, i32, i32
  }
}

module attributes {stable_mosaic.version = 11 : i64} {
  func.func @_conv_cm_kernel(%arg0: i32, %arg1: i32, %arg2: memref<1x36x256xbf16, #tpu.memory_space<vmem>>, %arg3: memref<32x36xbf16, #tpu.memory_space<vmem>>, %arg4: memref<3x32x1xf32, #tpu.memory_space<vmem>>, %arg5: memref<1x32x256xf32, #tpu.memory_space<vmem>>) attributes {dimension_semantics = [#tpu.dimension_semantics<parallel>, #tpu.dimension_semantics<parallel>], iteration_bounds = array<i64: 2, 1>, scalar_prefetch = 0 : i64, scratch_operands = 0 : i64, tpu.core_type = #tpu.core_type<tc>, window_params = [{transform_indices = @transform_0, window_bounds = array<i64: 1, 36, 256>}, {pipeline_mode = #tpu.pipeline_mode<synchronous>, transform_indices = @transform_1, window_bounds = array<i64: 32, 36>}, {pipeline_mode = #tpu.pipeline_mode<synchronous>, transform_indices = @transform_2, window_bounds = array<i64: 3, 32, 1>}, {transform_indices = @transform_3, window_bounds = array<i64: 1, 32, 256>}]} {
    %c0 = arith.constant 0 : index
    %c0_0 = arith.constant 0 : index
    %0 = vector.load %arg3[%c0, %c0_0] : memref<32x36xbf16, #tpu.memory_space<vmem>>, vector<32x36xbf16>
    %c0_1 = arith.constant 0 : index
    %c0_2 = arith.constant 0 : index
    %c0_3 = arith.constant 0 : index
    %1 = vector.load %arg2[%c0_1, %c0_2, %c0_3] : memref<1x36x256xbf16, #tpu.memory_space<vmem>>, vector<1x36x256xbf16>
    %2 = vector.shape_cast %1 : vector<1x36x256xbf16> to vector<36x256xbf16>
    %cst = arith.constant dense<0.000000e+00> : vector<32x256xf32>
    %3 = tpu.matmul %0, %2, %cst {dimension_numbers = #tpu.dot_dimension_numbers<[1], [0], [0], [1], [0, 0, 1, 1], [], []>} : vector<32x36xbf16>, vector<36x256xbf16>, vector<32x256xf32> -> vector<32x256xf32>
    %c0_4 = arith.constant 0 : index
    %c0_5 = arith.constant 0 : index
    %c0_6 = arith.constant 0 : index
    %4 = vector.load %arg4[%c0_4, %c0_5, %c0_6] : memref<3x32x1xf32, #tpu.memory_space<vmem>>, vector<1x32x1xf32>
    %5 = vector.shape_cast %4 : vector<1x32x1xf32> to vector<32x1xf32>
    %6 = vector.broadcast %5 : vector<32x1xf32> to vector<32x256xf32>
    %7 = arith.addf %3, %6 : vector<32x256xf32>
    %cst_7 = arith.constant 0.000000e+00 : f32
    %8 = vector.broadcast %cst_7 : f32 to vector<32x256xf32>
    %9 = arith.cmpf oge, %7, %8 : vector<32x256xf32>
    %cst_8 = arith.constant 2.000000e-02 : f32
    %10 = vector.broadcast %cst_8 : f32 to vector<32x256xf32>
    %11 = arith.mulf %10, %7 : vector<32x256xf32>
    %12 = arith.select %9, %7, %11 : vector<32x256xi1>, vector<32x256xf32>
    %c1 = arith.constant 1 : index
    %c0_9 = arith.constant 0 : index
    %c0_10 = arith.constant 0 : index
    %13 = vector.load %arg4[%c1, %c0_9, %c0_10] : memref<3x32x1xf32, #tpu.memory_space<vmem>>, vector<1x32x1xf32>
    %14 = vector.shape_cast %13 : vector<1x32x1xf32> to vector<32x1xf32>
    %15 = vector.broadcast %14 : vector<32x1xf32> to vector<32x256xf32>
    %16 = arith.mulf %12, %15 : vector<32x256xf32>
    %c2 = arith.constant 2 : index
    %c0_11 = arith.constant 0 : index
    %c0_12 = arith.constant 0 : index
    %17 = vector.load %arg4[%c2, %c0_11, %c0_12] : memref<3x32x1xf32, #tpu.memory_space<vmem>>, vector<1x32x1xf32>
    %18 = vector.shape_cast %17 : vector<1x32x1xf32> to vector<32x1xf32>
    %19 = vector.broadcast %18 : vector<32x1xf32> to vector<32x256xf32>
    %20 = arith.addf %16, %19 : vector<32x256xf32>
    %c0_13 = arith.constant 0 : index
    %c0_14 = arith.constant 0 : index
    %c0_15 = arith.constant 0 : index
    %21 = vector.load %arg5[%c0_13, %c0_14, %c0_15] : memref<1x32x256xf32, #tpu.memory_space<vmem>>, vector<1x32x256xf32>
    %22 = vector.shape_cast %21 : vector<1x32x256xf32> to vector<32x256xf32>
    %23 = vector.shape_cast %20 : vector<32x256xf32> to vector<1x32x256xf32>
    tpu.vector_store %arg5[%c0_13, %c0_14, %c0_15], %23 {strides = array<i32>} : memref<1x32x256xf32, #tpu.memory_space<vmem>>, vector<1x32x256xf32>,
    return
  }
  func.func @transform_0(%arg0: i32, %arg1: i32) -> (i32, i32, i32) {
    %c0_i32 = arith.constant 0 : i32
    %c0_i32_0 = arith.constant 0 : i32
    return %arg0, %c0_i32, %arg1 : i32, i32, i32
  }
  func.func @transform_1(%arg0: i32, %arg1: i32) -> (i32, i32) {
    %c0_i32 = arith.constant 0 : i32
    %c0_i32_0 = arith.constant 0 : i32
    %c0_i32_1 = arith.constant 0 : i32
    return %c0_i32, %c0_i32_0 : i32, i32
  }
  func.func @transform_2(%arg0: i32, %arg1: i32) -> (i32, i32, i32) {
    %c0_i32 = arith.constant 0 : i32
    %c0_i32_0 = arith.constant 0 : i32
    %c0_i32_1 = arith.constant 0 : i32
    %c0_i32_2 = arith.constant 0 : i32
    return %c0_i32, %c0_i32_0, %c0_i32_1 : i32, i32, i32
  }
  func.func @transform_3(%arg0: i32, %arg1: i32) -> (i32, i32, i32) {
    %c0_i32 = arith.constant 0 : i32
    %c0_i32_0 = arith.constant 0 : i32
    return %arg0, %c0_i32, %arg1 : i32, i32, i32
  }
}

module attributes {stable_mosaic.version = 11 : i64} {
  func.func @_conv_cm_kernel(%arg0: i32, %arg1: i32, %arg2: memref<1x8x512xbf16, #tpu.memory_space<vmem>>, %arg3: memref<8x8xbf16, #tpu.memory_space<vmem>>, %arg4: memref<3x8x1xf32, #tpu.memory_space<vmem>>, %arg5: memref<1x8x512xf32, #tpu.memory_space<vmem>>) attributes {dimension_semantics = [#tpu.dimension_semantics<parallel>, #tpu.dimension_semantics<parallel>], iteration_bounds = array<i64: 2, 2>, scalar_prefetch = 0 : i64, scratch_operands = 0 : i64, tpu.core_type = #tpu.core_type<tc>, window_params = [{transform_indices = @transform_0, window_bounds = array<i64: 1, 8, 512>}, {pipeline_mode = #tpu.pipeline_mode<synchronous>, transform_indices = @transform_1, window_bounds = array<i64: 8, 8>}, {pipeline_mode = #tpu.pipeline_mode<synchronous>, transform_indices = @transform_2, window_bounds = array<i64: 3, 8, 1>}, {transform_indices = @transform_3, window_bounds = array<i64: 1, 8, 512>}]} {
    %c0 = arith.constant 0 : index
    %c0_0 = arith.constant 0 : index
    %0 = vector.load %arg3[%c0, %c0_0] : memref<8x8xbf16, #tpu.memory_space<vmem>>, vector<8x8xbf16>
    %c0_1 = arith.constant 0 : index
    %c0_2 = arith.constant 0 : index
    %c0_3 = arith.constant 0 : index
    %1 = vector.load %arg2[%c0_1, %c0_2, %c0_3] : memref<1x8x512xbf16, #tpu.memory_space<vmem>>, vector<1x8x512xbf16>
    %2 = vector.shape_cast %1 : vector<1x8x512xbf16> to vector<8x512xbf16>
    %cst = arith.constant dense<0.000000e+00> : vector<8x512xf32>
    %3 = tpu.matmul %0, %2, %cst {dimension_numbers = #tpu.dot_dimension_numbers<[1], [0], [0], [1], [0, 0, 1, 1], [], []>} : vector<8x8xbf16>, vector<8x512xbf16>, vector<8x512xf32> -> vector<8x512xf32>
    %c0_4 = arith.constant 0 : index
    %c0_5 = arith.constant 0 : index
    %c0_6 = arith.constant 0 : index
    %4 = vector.load %arg4[%c0_4, %c0_5, %c0_6] : memref<3x8x1xf32, #tpu.memory_space<vmem>>, vector<1x8x1xf32>
    %5 = vector.shape_cast %4 : vector<1x8x1xf32> to vector<8x1xf32>
    %6 = vector.broadcast %5 : vector<8x1xf32> to vector<8x512xf32>
    %7 = arith.addf %3, %6 : vector<8x512xf32>
    %cst_7 = arith.constant 0.000000e+00 : f32
    %cst_8 = arith.constant 6.000000e+00 : f32
    %8 = vector.broadcast %cst_7 : f32 to vector<8x512xf32>
    %9 = arith.maximumf %8, %7 : vector<8x512xf32>
    %10 = vector.broadcast %cst_8 : f32 to vector<8x512xf32>
    %11 = arith.minimumf %10, %9 : vector<8x512xf32>
    %c1 = arith.constant 1 : index
    %c0_9 = arith.constant 0 : index
    %c0_10 = arith.constant 0 : index
    %12 = vector.load %arg4[%c1, %c0_9, %c0_10] : memref<3x8x1xf32, #tpu.memory_space<vmem>>, vector<1x8x1xf32>
    %13 = vector.shape_cast %12 : vector<1x8x1xf32> to vector<8x1xf32>
    %14 = vector.broadcast %13 : vector<8x1xf32> to vector<8x512xf32>
    %15 = arith.mulf %11, %14 : vector<8x512xf32>
    %c2 = arith.constant 2 : index
    %c0_11 = arith.constant 0 : index
    %c0_12 = arith.constant 0 : index
    %16 = vector.load %arg4[%c2, %c0_11, %c0_12] : memref<3x8x1xf32, #tpu.memory_space<vmem>>, vector<1x8x1xf32>
    %17 = vector.shape_cast %16 : vector<1x8x1xf32> to vector<8x1xf32>
    %18 = vector.broadcast %17 : vector<8x1xf32> to vector<8x512xf32>
    %19 = arith.addf %15, %18 : vector<8x512xf32>
    %c0_13 = arith.constant 0 : index
    %c0_14 = arith.constant 0 : index
    %c0_15 = arith.constant 0 : index
    %20 = vector.load %arg5[%c0_13, %c0_14, %c0_15] : memref<1x8x512xf32, #tpu.memory_space<vmem>>, vector<1x8x512xf32>
    %21 = vector.shape_cast %20 : vector<1x8x512xf32> to vector<8x512xf32>
    %22 = vector.shape_cast %19 : vector<8x512xf32> to vector<1x8x512xf32>
    tpu.vector_store %arg5[%c0_13, %c0_14, %c0_15], %22 {strides = array<i32>} : memref<1x8x512xf32, #tpu.memory_space<vmem>>, vector<1x8x512xf32>,
    return
  }
  func.func @transform_0(%arg0: i32, %arg1: i32) -> (i32, i32, i32) {
    %c0_i32 = arith.constant 0 : i32
    %c0_i32_0 = arith.constant 0 : i32
    return %arg0, %c0_i32, %arg1 : i32, i32, i32
  }
  func.func @transform_1(%arg0: i32, %arg1: i32) -> (i32, i32) {
    %c0_i32 = arith.constant 0 : i32
    %c0_i32_0 = arith.constant 0 : i32
    %c0_i32_1 = arith.constant 0 : i32
    return %c0_i32, %c0_i32_0 : i32, i32
  }
  func.func @transform_2(%arg0: i32, %arg1: i32) -> (i32, i32, i32) {
    %c0_i32 = arith.constant 0 : i32
    %c0_i32_0 = arith.constant 0 : i32
    %c0_i32_1 = arith.constant 0 : i32
    %c0_i32_2 = arith.constant 0 : i32
    return %c0_i32, %c0_i32_0, %c0_i32_1 : i32, i32, i32
  }
  func.func @transform_3(%arg0: i32, %arg1: i32) -> (i32, i32, i32) {
    %c0_i32 = arith.constant 0 : i32
    %c0_i32_0 = arith.constant 0 : i32
    return %arg0, %c0_i32, %arg1 : i32, i32, i32
  }
}

module attributes {stable_mosaic.version = 11 : i64} {
  func.func @_conv_cm_prescale_kernel(%arg0: i32, %arg1: i32, %arg2: memref<1x72x512xbf16, #tpu.memory_space<vmem>>, %arg3: memref<1x1x72xf32, #tpu.memory_space<vmem>>, %arg4: memref<2x72xbf16, #tpu.memory_space<vmem>>, %arg5: memref<3x2x1xf32, #tpu.memory_space<vmem>>, %arg6: memref<1x2x512xf32, #tpu.memory_space<vmem>>) attributes {dimension_semantics = [#tpu.dimension_semantics<parallel>, #tpu.dimension_semantics<parallel>], iteration_bounds = array<i64: 2, 2>, scalar_prefetch = 0 : i64, scratch_operands = 0 : i64, tpu.core_type = #tpu.core_type<tc>, window_params = [{transform_indices = @transform_0, window_bounds = array<i64: 1, 72, 512>}, {transform_indices = @transform_1, window_bounds = array<i64: 1, 1, 72>}, {pipeline_mode = #tpu.pipeline_mode<synchronous>, transform_indices = @transform_2, window_bounds = array<i64: 2, 72>}, {pipeline_mode = #tpu.pipeline_mode<synchronous>, transform_indices = @transform_3, window_bounds = array<i64: 3, 2, 1>}, {transform_indices = @transform_4, window_bounds = array<i64: 1, 2, 512>}]} {
    %c0 = arith.constant 0 : index
    %c0_0 = arith.constant 0 : index
    %0 = vector.load %arg4[%c0, %c0_0] : memref<2x72xbf16, #tpu.memory_space<vmem>>, vector<2x72xbf16>
    %1 = arith.extf %0 : vector<2x72xbf16> to vector<2x72xf32>
    %c0_1 = arith.constant 0 : index
    %c0_2 = arith.constant 0 : index
    %c0_3 = arith.constant 0 : index
    %2 = vector.load %arg3[%c0_1, %c0_2, %c0_3] : memref<1x1x72xf32, #tpu.memory_space<vmem>>, vector<1x1x72xf32>
    %3 = vector.shape_cast %2 : vector<1x1x72xf32> to vector<1x72xf32>
    %4 = vector.broadcast %3 : vector<1x72xf32> to vector<2x72xf32>
    %5 = arith.mulf %1, %4 : vector<2x72xf32>
    %6 = arith.truncf %5 : vector<2x72xf32> to vector<2x72xbf16>
    %c0_4 = arith.constant 0 : index
    %c0_5 = arith.constant 0 : index
    %c0_6 = arith.constant 0 : index
    %7 = vector.load %arg2[%c0_4, %c0_5, %c0_6] : memref<1x72x512xbf16, #tpu.memory_space<vmem>>, vector<1x72x512xbf16>
    %8 = vector.shape_cast %7 : vector<1x72x512xbf16> to vector<72x512xbf16>
    %cst = arith.constant dense<0.000000e+00> : vector<2x512xf32>
    %9 = tpu.matmul %6, %8, %cst {dimension_numbers = #tpu.dot_dimension_numbers<[1], [0], [0], [1], [0, 0, 1, 1], [], []>} : vector<2x72xbf16>, vector<72x512xbf16>, vector<2x512xf32> -> vector<2x512xf32>
    %c0_7 = arith.constant 0 : index
    %c0_8 = arith.constant 0 : index
    %c0_9 = arith.constant 0 : index
    %10 = vector.load %arg5[%c0_7, %c0_8, %c0_9] : memref<3x2x1xf32, #tpu.memory_space<vmem>>, vector<1x2x1xf32>
    %11 = vector.shape_cast %10 : vector<1x2x1xf32> to vector<2x1xf32>
    %12 = vector.broadcast %11 : vector<2x1xf32> to vector<2x512xf32>
    %13 = arith.addf %9, %12 : vector<2x512xf32>
    %cst_10 = arith.constant 0.000000e+00 : f32
    %14 = vector.broadcast %cst_10 : f32 to vector<2x512xf32>
    %15 = arith.cmpf oge, %13, %14 : vector<2x512xf32>
    %cst_11 = arith.constant 2.000000e-02 : f32
    %16 = vector.broadcast %cst_11 : f32 to vector<2x512xf32>
    %17 = arith.mulf %16, %13 : vector<2x512xf32>
    %18 = arith.select %15, %13, %17 : vector<2x512xi1>, vector<2x512xf32>
    %c1 = arith.constant 1 : index
    %c0_12 = arith.constant 0 : index
    %c0_13 = arith.constant 0 : index
    %19 = vector.load %arg5[%c1, %c0_12, %c0_13] : memref<3x2x1xf32, #tpu.memory_space<vmem>>, vector<1x2x1xf32>
    %20 = vector.shape_cast %19 : vector<1x2x1xf32> to vector<2x1xf32>
    %21 = vector.broadcast %20 : vector<2x1xf32> to vector<2x512xf32>
    %22 = arith.mulf %18, %21 : vector<2x512xf32>
    %c2 = arith.constant 2 : index
    %c0_14 = arith.constant 0 : index
    %c0_15 = arith.constant 0 : index
    %23 = vector.load %arg5[%c2, %c0_14, %c0_15] : memref<3x2x1xf32, #tpu.memory_space<vmem>>, vector<1x2x1xf32>
    %24 = vector.shape_cast %23 : vector<1x2x1xf32> to vector<2x1xf32>
    %25 = vector.broadcast %24 : vector<2x1xf32> to vector<2x512xf32>
    %26 = arith.addf %22, %25 : vector<2x512xf32>
    %c0_16 = arith.constant 0 : index
    %c0_17 = arith.constant 0 : index
    %c0_18 = arith.constant 0 : index
    %27 = vector.load %arg6[%c0_16, %c0_17, %c0_18] : memref<1x2x512xf32, #tpu.memory_space<vmem>>, vector<1x2x512xf32>
    %28 = vector.shape_cast %27 : vector<1x2x512xf32> to vector<2x512xf32>
    %29 = vector.shape_cast %26 : vector<2x512xf32> to vector<1x2x512xf32>
    tpu.vector_store %arg6[%c0_16, %c0_17, %c0_18], %29 {strides = array<i32>} : memref<1x2x512xf32, #tpu.memory_space<vmem>>, vector<1x2x512xf32>,
    return
  }
  func.func @transform_0(%arg0: i32, %arg1: i32) -> (i32, i32, i32) {
    %c0_i32 = arith.constant 0 : i32
    %c0_i32_0 = arith.constant 0 : i32
    return %arg0, %c0_i32, %arg1 : i32, i32, i32
  }
  func.func @transform_1(%arg0: i32, %arg1: i32) -> (i32, i32, i32) {
    %c0_i32 = arith.constant 0 : i32
    %c0_i32_0 = arith.constant 0 : i32
    %c0_i32_1 = arith.constant 0 : i32
    return %arg0, %c0_i32, %c0_i32_0 : i32, i32, i32
  }
  func.func @transform_2(%arg0: i32, %arg1: i32) -> (i32, i32) {
    %c0_i32 = arith.constant 0 : i32
    %c0_i32_0 = arith.constant 0 : i32
    %c0_i32_1 = arith.constant 0 : i32
    return %c0_i32, %c0_i32_0 : i32, i32
  }
  func.func @transform_3(%arg0: i32, %arg1: i32) -> (i32, i32, i32) {
    %c0_i32 = arith.constant 0 : i32
    %c0_i32_0 = arith.constant 0 : i32
    %c0_i32_1 = arith.constant 0 : i32
    %c0_i32_2 = arith.constant 0 : i32
    return %c0_i32, %c0_i32_0, %c0_i32_1 : i32, i32, i32
  }
  func.func @transform_4(%arg0: i32, %arg1: i32) -> (i32, i32, i32) {
    %c0_i32 = arith.constant 0 : i32
    %c0_i32_0 = arith.constant 0 : i32
    return %arg0, %c0_i32, %arg1 : i32, i32, i32
  }
}

module attributes {stable_mosaic.version = 11 : i64} {
  func.func @_conv_cm_kernel(%arg0: i32, %arg1: i32, %arg2: memref<1x72x512xbf16, #tpu.memory_space<vmem>>, %arg3: memref<4x72xbf16, #tpu.memory_space<vmem>>, %arg4: memref<3x4x1xf32, #tpu.memory_space<vmem>>, %arg5: memref<1x4x512xf32, #tpu.memory_space<vmem>>) attributes {dimension_semantics = [#tpu.dimension_semantics<parallel>, #tpu.dimension_semantics<parallel>], iteration_bounds = array<i64: 2, 2>, scalar_prefetch = 0 : i64, scratch_operands = 0 : i64, tpu.core_type = #tpu.core_type<tc>, window_params = [{transform_indices = @transform_0, window_bounds = array<i64: 1, 72, 512>}, {pipeline_mode = #tpu.pipeline_mode<synchronous>, transform_indices = @transform_1, window_bounds = array<i64: 4, 72>}, {pipeline_mode = #tpu.pipeline_mode<synchronous>, transform_indices = @transform_2, window_bounds = array<i64: 3, 4, 1>}, {transform_indices = @transform_3, window_bounds = array<i64: 1, 4, 512>}]} {
    %c0 = arith.constant 0 : index
    %c0_0 = arith.constant 0 : index
    %0 = vector.load %arg3[%c0, %c0_0] : memref<4x72xbf16, #tpu.memory_space<vmem>>, vector<4x72xbf16>
    %c0_1 = arith.constant 0 : index
    %c0_2 = arith.constant 0 : index
    %c0_3 = arith.constant 0 : index
    %1 = vector.load %arg2[%c0_1, %c0_2, %c0_3] : memref<1x72x512xbf16, #tpu.memory_space<vmem>>, vector<1x72x512xbf16>
    %2 = vector.shape_cast %1 : vector<1x72x512xbf16> to vector<72x512xbf16>
    %cst = arith.constant dense<0.000000e+00> : vector<4x512xf32>
    %3 = tpu.matmul %0, %2, %cst {dimension_numbers = #tpu.dot_dimension_numbers<[1], [0], [0], [1], [0, 0, 1, 1], [], []>} : vector<4x72xbf16>, vector<72x512xbf16>, vector<4x512xf32> -> vector<4x512xf32>
    %c0_4 = arith.constant 0 : index
    %c0_5 = arith.constant 0 : index
    %c0_6 = arith.constant 0 : index
    %4 = vector.load %arg4[%c0_4, %c0_5, %c0_6] : memref<3x4x1xf32, #tpu.memory_space<vmem>>, vector<1x4x1xf32>
    %5 = vector.shape_cast %4 : vector<1x4x1xf32> to vector<4x1xf32>
    %6 = vector.broadcast %5 : vector<4x1xf32> to vector<4x512xf32>
    %7 = arith.addf %3, %6 : vector<4x512xf32>
    %8 = math.tanh %7 : vector<4x512xf32>
    %c1 = arith.constant 1 : index
    %c0_7 = arith.constant 0 : index
    %c0_8 = arith.constant 0 : index
    %9 = vector.load %arg4[%c1, %c0_7, %c0_8] : memref<3x4x1xf32, #tpu.memory_space<vmem>>, vector<1x4x1xf32>
    %10 = vector.shape_cast %9 : vector<1x4x1xf32> to vector<4x1xf32>
    %11 = vector.broadcast %10 : vector<4x1xf32> to vector<4x512xf32>
    %12 = arith.mulf %8, %11 : vector<4x512xf32>
    %c2 = arith.constant 2 : index
    %c0_9 = arith.constant 0 : index
    %c0_10 = arith.constant 0 : index
    %13 = vector.load %arg4[%c2, %c0_9, %c0_10] : memref<3x4x1xf32, #tpu.memory_space<vmem>>, vector<1x4x1xf32>
    %14 = vector.shape_cast %13 : vector<1x4x1xf32> to vector<4x1xf32>
    %15 = vector.broadcast %14 : vector<4x1xf32> to vector<4x512xf32>
    %16 = arith.addf %12, %15 : vector<4x512xf32>
    %c0_11 = arith.constant 0 : index
    %c0_12 = arith.constant 0 : index
    %c0_13 = arith.constant 0 : index
    %17 = vector.load %arg5[%c0_11, %c0_12, %c0_13] : memref<1x4x512xf32, #tpu.memory_space<vmem>>, vector<1x4x512xf32>
    %18 = vector.shape_cast %17 : vector<1x4x512xf32> to vector<4x512xf32>
    %19 = vector.shape_cast %16 : vector<4x512xf32> to vector<1x4x512xf32>
    tpu.vector_store %arg5[%c0_11, %c0_12, %c0_13], %19 {strides = array<i32>} : memref<1x4x512xf32, #tpu.memory_space<vmem>>, vector<1x4x512xf32>,
    return
  }
  func.func @transform_0(%arg0: i32, %arg1: i32) -> (i32, i32, i32) {
    %c0_i32 = arith.constant 0 : i32
    %c0_i32_0 = arith.constant 0 : i32
    return %arg0, %c0_i32, %arg1 : i32, i32, i32
  }
  func.func @transform_1(%arg0: i32, %arg1: i32) -> (i32, i32) {
    %c0_i32 = arith.constant 0 : i32
    %c0_i32_0 = arith.constant 0 : i32
    %c0_i32_1 = arith.constant 0 : i32
    return %c0_i32, %c0_i32_0 : i32, i32
  }
  func.func @transform_2(%arg0: i32, %arg1: i32) -> (i32, i32, i32) {
    %c0_i32 = arith.constant 0 : i32
    %c0_i32_0 = arith.constant 0 : i32
    %c0_i32_1 = arith.constant 0 : i32
    %c0_i32_2 = arith.constant 0 : i32
    return %c0_i32, %c0_i32_0, %c0_i32_1 : i32, i32, i32
  }
  func.func @transform_3(%arg0: i32, %arg1: i32) -> (i32, i32, i32) {
    %c0_i32 = arith.constant 0 : i32
    %c0_i32_0 = arith.constant 0 : i32
    return %arg0, %c0_i32, %arg1 : i32, i32, i32
  }
}

module attributes {stable_mosaic.version = 11 : i64} {
  func.func @_conv_cm_kernel(%arg0: i32, %arg1: i32, %arg2: memref<1x18x512xbf16, #tpu.memory_space<vmem>>, %arg3: memref<1x18xbf16, #tpu.memory_space<vmem>>, %arg4: memref<3x1x1xf32, #tpu.memory_space<vmem>>, %arg5: memref<1x1x512xf32, #tpu.memory_space<vmem>>) attributes {dimension_semantics = [#tpu.dimension_semantics<parallel>, #tpu.dimension_semantics<parallel>], iteration_bounds = array<i64: 2, 2>, scalar_prefetch = 0 : i64, scratch_operands = 0 : i64, tpu.core_type = #tpu.core_type<tc>, window_params = [{transform_indices = @transform_0, window_bounds = array<i64: 1, 18, 512>}, {pipeline_mode = #tpu.pipeline_mode<synchronous>, transform_indices = @transform_1, window_bounds = array<i64: 1, 18>}, {pipeline_mode = #tpu.pipeline_mode<synchronous>, transform_indices = @transform_2, window_bounds = array<i64: 3, 1, 1>}, {transform_indices = @transform_3, window_bounds = array<i64: 1, 1, 512>}]} {
    %c0 = arith.constant 0 : index
    %c0_0 = arith.constant 0 : index
    %0 = vector.load %arg3[%c0, %c0_0] : memref<1x18xbf16, #tpu.memory_space<vmem>>, vector<1x18xbf16>
    %c0_1 = arith.constant 0 : index
    %c0_2 = arith.constant 0 : index
    %c0_3 = arith.constant 0 : index
    %1 = vector.load %arg2[%c0_1, %c0_2, %c0_3] : memref<1x18x512xbf16, #tpu.memory_space<vmem>>, vector<1x18x512xbf16>
    %2 = vector.shape_cast %1 : vector<1x18x512xbf16> to vector<18x512xbf16>
    %cst = arith.constant dense<0.000000e+00> : vector<1x512xf32>
    %3 = tpu.matmul %0, %2, %cst {dimension_numbers = #tpu.dot_dimension_numbers<[1], [0], [0], [1], [0, 0, 1, 1], [], []>} : vector<1x18xbf16>, vector<18x512xbf16>, vector<1x512xf32> -> vector<1x512xf32>
    %c0_4 = arith.constant 0 : index
    %c0_5 = arith.constant 0 : index
    %c0_6 = arith.constant 0 : index
    %4 = vector.load %arg4[%c0_4, %c0_5, %c0_6] : memref<3x1x1xf32, #tpu.memory_space<vmem>>, vector<1x1x1xf32>
    %5 = vector.shape_cast %4 : vector<1x1x1xf32> to vector<1x1xf32>
    %6 = vector.broadcast %5 : vector<1x1xf32> to vector<1x512xf32>
    %7 = arith.addf %3, %6 : vector<1x512xf32>
    %8 = math.tanh %7 : vector<1x512xf32>
    %c1 = arith.constant 1 : index
    %c0_7 = arith.constant 0 : index
    %c0_8 = arith.constant 0 : index
    %9 = vector.load %arg4[%c1, %c0_7, %c0_8] : memref<3x1x1xf32, #tpu.memory_space<vmem>>, vector<1x1x1xf32>
    %10 = vector.shape_cast %9 : vector<1x1x1xf32> to vector<1x1xf32>
    %11 = vector.broadcast %10 : vector<1x1xf32> to vector<1x512xf32>
    %12 = arith.mulf %8, %11 : vector<1x512xf32>
    %c2 = arith.constant 2 : index
    %c0_9 = arith.constant 0 : index
    %c0_10 = arith.constant 0 : index
    %13 = vector.load %arg4[%c2, %c0_9, %c0_10] : memref<3x1x1xf32, #tpu.memory_space<vmem>>, vector<1x1x1xf32>
    %14 = vector.shape_cast %13 : vector<1x1x1xf32> to vector<1x1xf32>
    %15 = vector.broadcast %14 : vector<1x1xf32> to vector<1x512xf32>
    %16 = arith.addf %12, %15 : vector<1x512xf32>
    %c0_11 = arith.constant 0 : index
    %c0_12 = arith.constant 0 : index
    %c0_13 = arith.constant 0 : index
    %17 = vector.load %arg5[%c0_11, %c0_12, %c0_13] : memref<1x1x512xf32, #tpu.memory_space<vmem>>, vector<1x1x512xf32>
    %18 = vector.shape_cast %17 : vector<1x1x512xf32> to vector<1x512xf32>
    %19 = vector.shape_cast %16 : vector<1x512xf32> to vector<1x1x512xf32>
    tpu.vector_store %arg5[%c0_11, %c0_12, %c0_13], %19 {strides = array<i32>} : memref<1x1x512xf32, #tpu.memory_space<vmem>>, vector<1x1x512xf32>,
    return
  }
  func.func @transform_0(%arg0: i32, %arg1: i32) -> (i32, i32, i32) {
    %c0_i32 = arith.constant 0 : i32
    %c0_i32_0 = arith.constant 0 : i32
    return %arg0, %c0_i32, %arg1 : i32, i32, i32
  }
  func.func @transform_1(%arg0: i32, %arg1: i32) -> (i32, i32) {
    %c0_i32 = arith.constant 0 : i32
    %c0_i32_0 = arith.constant 0 : i32
    %c0_i32_1 = arith.constant 0 : i32
    return %c0_i32, %c0_i32_0 : i32, i32
  }
  func.func @transform_2(%arg0: i32, %arg1: i32) -> (i32, i32, i32) {
    %c0_i32 = arith.constant 0 : i32
    %c0_i32_0 = arith.constant 0 : i32
    %c0_i32_1 = arith.constant 0 : i32
    %c0_i32_2 = arith.constant 0 : i32
    return %c0_i32, %c0_i32_0, %c0_i32_1 : i32, i32, i32
  }
  func.func @transform_3(%arg0: i32, %arg1: i32) -> (i32, i32, i32) {
    %c0_i32 = arith.constant 0 : i32
    %c0_i32_0 = arith.constant 0 : i32
    return %arg0, %c0_i32, %arg1 : i32, i32, i32
  }
}

</mosaic_0001>

<llo_original>
// kernel: depth_block_forward.9
$region0: #{depth_block_forward.9}
  #allocation0 [shape = 'u32[]', space=smem, size = 0x4, offset = 0x4, fixed_abs, tag = 'smem constant byte address 0x4 - core index']
  #allocation1 [shape = 'u32[72,128]{1,0:T(1,128)}', space=vmem, size = 0x9000, scoped, tag = 'internal scratch']
  %s0 = inlined_call_operand.vmem [shape: bf16[2,36,64], index: 0, kind: input, shape index: {}]
  %s1 = inlined_call_operand.vmem [shape: bf16[8,36], index: 1, kind: input, shape index: {}]
  %s2 = inlined_call_operand.vmem [shape: f32[3,8,1], index: 2, kind: input, shape index: {}]
  %s3 = inlined_call_operand.vmem [shape: f32[2,8,1], index: 3, kind: output, shape index: {}]
  %s4 = sld [smem:[#allocation0]]
  $region45: #{depth_block_forward.9} parent=0
    _
  %s6 = ssub.s32 1, %s4
  %s7 = scalar_select 0, %s6, %s4
  loop: start=0, step=1, limit=4
  $region2: #{depth_block_forward.9} parent=0 // loop_pre_header
    _
  $region3: #{depth_block_forward.9} parent=0 // loop_header
    %s9 = sphi 0, %s13
    %p10 = scmp.ge.s32.totalorder %s9, 4
    %s19 = sphi 0, %s21
    %s22 = sphi 0, %s19
    %s23 = sphi 0, %s22
    %s39 = sphi 0, %s23
    %s43 = sphi 0, %s43
    %s45 = sphi 0, %s43
    %s46 = sphi 0, %s45
    %s60 = sphi 0, %s46
    %s64 = sphi 0, %s64
    %s66 = sphi 0, %s64
    %s67 = sphi 0, %s66
    %s81 = sphi 0, %s67
    %s87 = sphi 0, %s89
    %s90 = sphi 0, %s87
    %s91 = sphi 0, %s90
    %s107 = sphi 0, %s91
  $region4: #{depth_block_forward.9} parent=0 // loop_header_branch
    %12 = sbr.rel (%p10) target = $region8
  $region5: #{depth_block_forward.9} parent=0 // loop_body
    %s14 = ssub.s32 %s9, 1
    %s15 = ssub.s32 %s9, 2
    %s16 = sadd.s32 %s9, 1
    %s17 = ssub.s32 %s9, %s16
    %p18 = scmp.eq.s32.totalorder %s17, 0
    %s20 = sadd.s32 %s19, 1
    %s21 = scalar_select %p18, %s19, %s20
    %p24 = pneg %p18
    %p25 = scmp.eq.s32.totalorder %s9, 1
    %p26 = por %p24, %p25
    %p27 = scmp.ne.s32.totalorder %s19, %s22
    %p28 = scmp.eq.s32.totalorder %s9, 0
    %p29 = por %p27, %p28
    %p30 = scmp.ne.s32.totalorder %s19, %s22
    %p31 = scmp.eq.s32.totalorder %s14, 1
    %p32 = por %p30, %p31
    %p33 = scmp.ne.s32.totalorder %s22, %s23
    %p34 = scmp.eq.s32.totalorder %s14, 0
    %p35 = por %p33, %p34
    %p36 = scmp.ne.s32.totalorder %s22, %s23
    %p37 = scmp.eq.s32.totalorder %s15, 1
    %p38 = por %p36, %p37
    %p40 = scmp.ne.s32.totalorder %s23, %s39
    %p41 = scmp.eq.s32.totalorder %s15, 0
    %p42 = por %p40, %p41
    %s44 = sadd.s32 %s43, 1
    %p47 = scmp.eq.s32.totalorder %s9, 1
    %p48 = scmp.ne.s32.totalorder %s43, %s45
    %p49 = scmp.eq.s32.totalorder %s9, 0
    %p50 = por %p48, %p49
    %p51 = scmp.ne.s32.totalorder %s43, %s45
    %p52 = scmp.eq.s32.totalorder %s14, 1
    %p53 = por %p51, %p52
    %p54 = scmp.ne.s32.totalorder %s45, %s46
    %p55 = scmp.eq.s32.totalorder %s14, 0
    %p56 = por %p54, %p55
    %p57 = scmp.ne.s32.totalorder %s45, %s46
    %p58 = scmp.eq.s32.totalorder %s15, 1
    %p59 = por %p57, %p58
    %p61 = scmp.ne.s32.totalorder %s46, %s60
    %p62 = scmp.eq.s32.totalorder %s15, 0
    %p63 = por %p61, %p62
    %s65 = sadd.s32 %s64, 1
    %p68 = scmp.eq.s32.totalorder %s9, 1
    %p69 = scmp.ne.s32.totalorder %s64, %s66
    %p70 = scmp.eq.s32.totalorder %s9, 0
    %p71 = por %p69, %p70
    %p72 = scmp.ne.s32.totalorder %s64, %s66
    %p73 = scmp.eq.s32.totalorder %s14, 1
    %p74 = por %p72, %p73
    %p75 = scmp.ne.s32.totalorder %s66, %s67
    %p76 = scmp.eq.s32.totalorder %s14, 0
    %p77 = por %p75, %p76
    %p78 = scmp.ne.s32.totalorder %s66, %s67
    %p79 = scmp.eq.s32.totalorder %s15, 1
    %p80 = por %p78, %p79
    %p82 = scmp.ne.s32.totalorder %s67, %s81
    %p83 = scmp.eq.s32.totalorder %s15, 0
    %p84 = por %p82, %p83
    %s85 = ssub.s32 %s9, %s16
    %p86 = scmp.eq.s32.totalorder %s85, 0
    %s88 = sadd.s32 %s87, 1
    %s89 = scalar_select %p86, %s87, %s88
    %p92 = pneg %p86
    %p93 = scmp.eq.s32.totalorder %s9, 1
    %p94 = por %p92, %p93
    %p95 = scmp.ne.s32.totalorder %s87, %s90
    %p96 = scmp.eq.s32.totalorder %s9, 0
    %p97 = por %p95, %p96
    %p98 = scmp.ne.s32.totalorder %s87, %s90
    %p99 = scmp.eq.s32.totalorder %s14, 1
    %p100 = por %p98, %p99
    %p101 = scmp.ne.s32.totalorder %s90, %s91
    %p102 = scmp.eq.s32.totalorder %s14, 0
    %p103 = por %p101, %p102
    %p104 = scmp.ne.s32.totalorder %s90, %s91
    %p105 = scmp.eq.s32.totalorder %s15, 1
    %p106 = por %p104, %p105
    %p108 = scmp.ne.s32.totalorder %s91, %s107
    %p109 = scmp.eq.s32.totalorder %s15, 0
    %p110 = por %p108, %p109
    %p111 = scmp.le.s32.totalorder 1, %s9
    %p112 = scmp.lt.s32.totalorder %s9, 3
    %p113 = pnand %p111, %p112
    %p114 = pneg %p113
    // Predicated region
    $region9: #{depth_block_forward.9} parent=5 // pred_check
      _
    $region10: #{depth_block_forward.9} parent=5 // pred_check_branch
      %116 = sbr.rel (%p113) target = $region12
    $region11: #{depth_block_forward.9} parent=5 // pred_region
      %s117 = ssub.s32 %s9, 1
      // Predicated region
      $region13: #{depth_block_forward.9} parent=11 // pred_check
        %p118 = pneg %p56
      $region14: #{depth_block_forward.9} parent=11 // pred_check_branch
        %120 = sbr.rel (%p118) target = $region16
      $region15: #{depth_block_forward.9} parent=11 // pred_region
        _
      $region16: #{depth_block_forward.9} parent=11 // pred_fallthru
        _
      // Predicated region
      $region17: #{depth_block_forward.9} parent=11 // pred_check
        %p121 = pneg %p77
      $region18: #{depth_block_forward.9} parent=11 // pred_check_branch
        %123 = sbr.rel (%p121) target = $region20
      $region19: #{depth_block_forward.9} parent=11 // pred_region
        _
      $region20: #{depth_block_forward.9} parent=11 // pred_fallthru
        _
    $region12: #{depth_block_forward.9} parent=5 // pred_fallthru
      _
    %p124 = scmp.lt.s32.totalorder %s9, 2
    // Predicated region
    $region21: #{depth_block_forward.9} parent=5 // pred_check
      %p125 = pneg %p124
    $region22: #{depth_block_forward.9} parent=5 // pred_check_branch
      %127 = sbr.rel (%p125) target = $region24
    $region23: #{depth_block_forward.9} parent=5 // pred_region
      // Predicated region
      $region25: #{depth_block_forward.9} parent=23 // pred_check
        %p128 = pneg %p29
      $region26: #{depth_block_forward.9} parent=23 // pred_check_branch
        %130 = sbr.rel (%p128) target = $region28
      $region27: #{depth_block_forward.9} parent=23 // pred_region
        %p131 = scmp.lt.s32.totalorder %s9, 1
        %s132 = scalar_select %p131, %s9, 1
        %s133 = smul.addr %s132, 5
        %s134 = smul.addr %s133, 4
        %s135 = scalar_lea.vmem %s0, %s134
      $region28: #{depth_block_forward.9} parent=23 // pred_fallthru
        _
    $region24: #{depth_block_forward.9} parent=5 // pred_fallthru
      _
    %p136 = scmp.le.s32.totalorder 1, %s9
    %p137 = scmp.lt.s32.totalorder %s9, 3
    %p138 = pnand %p136, %p137
    %p139 = pneg %p138
    // Predicated region
    $region29: #{depth_block_forward.9} parent=5 // pred_check
      _
    $region30: #{depth_block_forward.9} parent=5 // pred_check_branch
      %141 = sbr.rel (%p138) target = $region32
    $region31: #{depth_block_forward.9} parent=5 // pred_region
      %s142 = ssub.s32 %s9, 1
      %p143 = scmp.lt.s32.totalorder %s14, 1
      %s144 = scalar_select %p143, %s14, 1
      %s145 = smul.addr %s144, 5
      %s146 = smul.addr %s145, 4
      %s147 = scalar_lea.vmem %s0, %s146
      %p148 = pneg %p35
      %p149 = pneg %p32
      %p150 = pneg %p56
      %p151 = pneg %p53
      %p152 = pneg %p77
      %p153 = pneg %p74
      %p154 = pneg %p103
      %p155 = pneg %p100
      %p156 = scmp.lt.s32.totalorder %s14, 1
      %s157 = scalar_select %p156, %s14, 1
      %s158 = smul.addr %s157, 8
      %s159 = scalar_lea.vmem %s3, %s158
      %p160 = scmp.lt.s32.totalorder %s14, 1
      %s161 = scalar_select %p160, %s14, 1
      %s162 = smul.addr %s161, 5
      %s163 = smul.addr %s162, 4
      %s164 = scalar_lea.vmem %s0, %s163
      %p165 = scmp.lt.s32.totalorder %s14, 1
      %s166 = scalar_select %p165, %s14, 1
      %s167 = smul.addr %s166, 8
      %s168 = scalar_lea.vmem %s3, %s167
      %v170 = vld [vmem:[%s1] sm:$0xf]
      %v171 = vld [vmem:[%s164] sm:$0xf]
      %v172 = vld [vmem:[%s164 + $0x4] sm:$0xf]
      %v173 = vld [vmem:[%s164 + $0x8] sm:$0xf]
      %v174 = vld [vmem:[%s164 + $0xc] sm:$0xf]
      %v175 = vld [vmem:[%s164 + $0x10] sm:$0x3]
      %v176 = vld [vmem:[%s2] sm:$0xff]
      %178 = vset.pattern.permute.xlu0 0
      %179 = vperm.xlu0 %178, %v176
      %v180 = vpop.permute.xlu0 %179
      %v187 = vunpack.c.l.b16 %v171
      %v188 = vunpack.c.l.b16 %v172
      %v189 = vunpack.c.l.b16 %v173
      %v190 = vunpack.c.l.b16 %v174
      %v191 = vunpack.c.l.b16 %v175
      %v192 = vpack.c.b16 %v188, %v187
      %v193 = vpack.c.b16 %v190, %v189
      %v194 = vpack.c.b16 %v191, %v191
      %vm197 = vcmask 293888
      %v199 = vsel %vm197, %v170, 0
      %vm201 = vcmask 1041408
      %v203 = vsel %vm201, %v194, 0
      %205 = vmatpush.bf16.msra.mxu0 0
      %206 = vmatpush.bf16.msra.mxu0 0
      %207 = vmatpush.bf16.msra.mxu0 0
      %208 = vmatpush.bf16.msra.mxu0 0
      %209 = vmatpush.bf16.msra.mxu0 0
      %210 = vmatpush.bf16.msra.mxu0 %v203
      %211 = vmatpush.bf16.msra.mxu0 %v193
      %212 = vmatpush.bf16.msra.mxu0 %v192
      %213 = vmatmul.bf16.gmra.mxu0 %v199
      %v214 = vpop.f32.mrf.mxu0
      %v215 = vadd.f32 %v180, %v214
      %v216 = vpop.f32.mrf.mxu0
      %217 = vdwg.mxu0
      %v218 = vmax.f32 %v215, 0.0
      %v219 = vmin.f32 %v218, 6.0
      %s220 = scalar_lea.vmem %s2, 8
      %v221 = vld [vmem:[%s220] sm:$0xff]
      %223 = vset.pattern.permute.xlu0 0
      %224 = vperm.xlu0 %223, %v221
      %v225 = vpop.permute.xlu0 %224
      %v227 = vmul.f32 %v219, %v225
      %s228 = scalar_lea.vmem %s2, 16
      %v229 = vld [vmem:[%s228] sm:$0xff]
      %231 = vset.pattern.permute.xlu0 0
      %232 = vperm.xlu0 %231, %v229
      %v233 = vpop.permute.xlu0 %232
      %v235 = vadd.f32 %v227, %v233
      %vm236 = vcmask 523264
      %v237 = vsel %vm236, %v235, 0.0
      %238 = vadd.xlane.f32.xlu0 %v237
      %v239 = vpop.xlane.xlu0 %238
      %v240 = vrcp.pop 64.0
      %v241 = vmul.f32 64.0, %v240
      %v242 = vsub.f32 1.0, %v241
      %v243 = vmul.f32 %v240, %v242
      %v244 = vadd.f32 %v240, %v243
      %vm245 = vweird.f32 %v240
      %v246 = vsel %vm245, %v240, %v244
      %v247 = vmul.f32 %v239, %v246
      %v248 = vsub.f32 0.0, %v247
      %v249 = vmul.f32 %v248, 1.442695
      %v250 = vpow.pop %v249
      %v251 = vadd.f32 %v250, 1.0
      %v252 = vrcp.pop %v251
      %v253 = vadd.f32 %v252, 1.0
      %vm254 = vcmask 7168
      %255 = vst.msk [vmem:[%s168] sm:$0xff] %vm254, %v253
      %p256 = scmp.lt.s32.totalorder %s14, 1
      %s257 = scalar_select %p256, %s14, 1
      %s258 = smul.addr %s257, 8
      %s259 = scalar_lea.vmem %s3, %s258
      // Predicated region
      $region33: #{depth_block_forward.9} parent=31 // pred_check
        %p260 = pneg %p100
      $region34: #{depth_block_forward.9} parent=31 // pred_check_branch
        %262 = sbr.rel (%p260) target = $region36
      $region35: #{depth_block_forward.9} parent=31 // pred_region
        _
      $region36: #{depth_block_forward.9} parent=31 // pred_fallthru
        _
    $region32: #{depth_block_forward.9} parent=5 // pred_fallthru
      _
    %p263 = scmp.le.s32.totalorder 2, %s9
    // Predicated region
    $region37: #{depth_block_forward.9} parent=5 // pred_check
      %p264 = pneg %p263
    $region38: #{depth_block_forward.9} parent=5 // pred_check_branch
      %266 = sbr.rel (%p264) target = $region40
    $region39: #{depth_block_forward.9} parent=5 // pred_region
      %s267 = ssub.s32 %s9, 2
      // Predicated region
      $region41: #{depth_block_forward.9} parent=39 // pred_check
        %p268 = pneg %p106
      $region42: #{depth_block_forward.9} parent=39 // pred_check_branch
        %270 = sbr.rel (%p268) target = $region44
      $region43: #{depth_block_forward.9} parent=39 // pred_region
        %p271 = scmp.lt.s32.totalorder %s15, 1
        %s272 = scalar_select %p271, %s15, 1
        %s273 = smul.addr %s272, 8
        %s274 = scalar_lea.vmem %s3, %s273
      $region44: #{depth_block_forward.9} parent=39 // pred_fallthru
        _
    $region40: #{depth_block_forward.9} parent=5 // pred_fallthru
      _
  $region6: #{depth_block_forward.9} parent=0 // loop_footer
    %s13 = sadd.s32 1, %s9
  $region7: #{depth_block_forward.9} parent=0 // loop_footer_branch
    %8 = sbr.rel target = $region3
  $region8: #{depth_block_forward.9} parent=0 // loop_exit
    _

// kernel: depth_block_forward.6
$region0: #{depth_block_forward.6}
  #allocation0 [shape = 'u32[]', space=smem, size = 0x4, offset = 0x4, fixed_abs, tag = 'smem constant byte address 0x4 - core index']
  #allocation1 [shape = 'u32[72,128]{1,0:T(1,128)}', space=vmem, size = 0x9000, scoped, tag = 'internal scratch']
  %s0 = inlined_call_operand.vmem [shape: bf16[2,36,256], index: 0, kind: input, shape index: {}]
  %s1 = inlined_call_operand.vmem [shape: bf16[32,36], index: 1, kind: input, shape index: {}]
  %s2 = inlined_call_operand.vmem [shape: f32[3,32,1], index: 2, kind: input, shape index: {}]
  %s3 = inlined_call_operand.vmem [shape: f32[2,32,256], index: 3, kind: output, shape index: {}]
  %s4 = sld [smem:[#allocation0]]
  $region45: #{depth_block_forward.6} parent=0
    _
  %s6 = ssub.s32 1, %s4
  %s7 = scalar_select 0, %s6, %s4
  loop: start=0, step=1, limit=4
  $region2: #{depth_block_forward.6} parent=0 // loop_pre_header
    _
  $region3: #{depth_block_forward.6} parent=0 // loop_header
    %s9 = sphi 0, %s13
    %p10 = scmp.ge.s32.totalorder %s9, 4
    %s16 = sphi 0, %s28
    %s17 = sphi 0, %s24
    %s18 = sphi 0, %s16
    %s19 = sphi 0, %s17
    %s20 = sphi 0, %s18
    %s21 = sphi 0, %s19
    %s33 = sphi 0, %s35
    %s36 = sphi 0, %s33
    %s37 = sphi 0, %s36
    %s53 = sphi 0, %s37
    %s57 = sphi 0, %s57
    %s59 = sphi 0, %s57
    %s60 = sphi 0, %s59
    %s74 = sphi 0, %s60
    %s78 = sphi 0, %s78
    %s80 = sphi 0, %s78
    %s81 = sphi 0, %s80
    %s95 = sphi 0, %s81
    %s103 = sphi 0, %s105
    %s106 = sphi 0, %s103
    %s107 = sphi 0, %s106
    %s123 = sphi 0, %s107
  $region4: #{depth_block_forward.6} parent=0 // loop_header_branch
    %12 = sbr.rel (%p10) target = $region8
  $region5: #{depth_block_forward.6} parent=0 // loop_body
    %s14 = ssub.s32 %s9, 1
    %s15 = ssub.s32 %s9, 2
    %s22 = sadd.s32 1, %s17
    %p23 = scmp.ge.s32.totalorder %s22, 1
    %s24 = scalar_select %p23, 0, %s22
    %s25 = sadd.s32 1, %s16
    %s26 = scalar_select %p23, %s25, %s16
    %p27 = scmp.ge.s32.totalorder %s26, 2
    %s28 = scalar_select %p27, 0, %s26
    %s29 = ssub.s32 %s16, %s28
    %s30 = ssub.s32 %s17, %s24
    %s31 = sor.u32 %s29, %s30
    %p32 = scmp.eq.s32.totalorder %s31, 0
    %s34 = sadd.s32 %s33, 1
    %s35 = scalar_select %p32, %s33, %s34
    %p38 = pneg %p32
    %p39 = scmp.eq.s32.totalorder %s9, 1
    %p40 = por %p38, %p39
    %p41 = scmp.ne.s32.totalorder %s33, %s36
    %p42 = scmp.eq.s32.totalorder %s9, 0
    %p43 = por %p41, %p42
    %p44 = scmp.ne.s32.totalorder %s33, %s36
    %p45 = scmp.eq.s32.totalorder %s14, 1
    %p46 = por %p44, %p45
    %p47 = scmp.ne.s32.totalorder %s36, %s37
    %p48 = scmp.eq.s32.totalorder %s14, 0
    %p49 = por %p47, %p48
    %p50 = scmp.ne.s32.totalorder %s36, %s37
    %p51 = scmp.eq.s32.totalorder %s15, 1
    %p52 = por %p50, %p51
    %p54 = scmp.ne.s32.totalorder %s37, %s53
    %p55 = scmp.eq.s32.totalorder %s15, 0
    %p56 = por %p54, %p55
    %s58 = sadd.s32 %s57, 1
    %p61 = scmp.eq.s32.totalorder %s9, 1
    %p62 = scmp.ne.s32.totalorder %s57, %s59
    %p63 = scmp.eq.s32.totalorder %s9, 0
    %p64 = por %p62, %p63
    %p65 = scmp.ne.s32.totalorder %s57, %s59
    %p66 = scmp.eq.s32.totalorder %s14, 1
    %p67 = por %p65, %p66
    %p68 = scmp.ne.s32.totalorder %s59, %s60
    %p69 = scmp.eq.s32.totalorder %s14, 0
    %p70 = por %p68, %p69
    %p71 = scmp.ne.s32.totalorder %s59, %s60
    %p72 = scmp.eq.s32.totalorder %s15, 1
    %p73 = por %p71, %p72
    %p75 = scmp.ne.s32.totalorder %s60, %s74
    %p76 = scmp.eq.s32.totalorder %s15, 0
    %p77 = por %p75, %p76
    %s79 = sadd.s32 %s78, 1
    %p82 = scmp.eq.s32.totalorder %s9, 1
    %p83 = scmp.ne.s32.totalorder %s78, %s80
    %p84 = scmp.eq.s32.totalorder %s9, 0
    %p85 = por %p83, %p84
    %p86 = scmp.ne.s32.totalorder %s78, %s80
    %p87 = scmp.eq.s32.totalorder %s14, 1
    %p88 = por %p86, %p87
    %p89 = scmp.ne.s32.totalorder %s80, %s81
    %p90 = scmp.eq.s32.totalorder %s14, 0
    %p91 = por %p89, %p90
    %p92 = scmp.ne.s32.totalorder %s80, %s81
    %p93 = scmp.eq.s32.totalorder %s15, 1
    %p94 = por %p92, %p93
    %p96 = scmp.ne.s32.totalorder %s81, %s95
    %p97 = scmp.eq.s32.totalorder %s15, 0
    %p98 = por %p96, %p97
    %s99 = ssub.s32 %s16, %s28
    %s100 = ssub.s32 %s17, %s24
    %s101 = sor.u32 %s99, %s100
    %p102 = scmp.eq.s32.totalorder %s101, 0
    %s104 = sadd.s32 %s103, 1
    %s105 = scalar_select %p102, %s103, %s104
    %p108 = pneg %p102
    %p109 = scmp.eq.s32.totalorder %s9, 1
    %p110 = por %p108, %p109
    %p111 = scmp.ne.s32.totalorder %s103, %s106
    %p112 = scmp.eq.s32.totalorder %s9, 0
    %p113 = por %p111, %p112
    %p114 = scmp.ne.s32.totalorder %s103, %s106
    %p115 = scmp.eq.s32.totalorder %s14, 1
    %p116 = por %p114, %p115
    %p117 = scmp.ne.s32.totalorder %s106, %s107
    %p118 = scmp.eq.s32.totalorder %s14, 0
    %p119 = por %p117, %p118
    %p120 = scmp.ne.s32.totalorder %s106, %s107
    %p121 = scmp.eq.s32.totalorder %s15, 1
    %p122 = por %p120, %p121
    %p124 = scmp.ne.s32.totalorder %s107, %s123
    %p125 = scmp.eq.s32.totalorder %s15, 0
    %p126 = por %p124, %p125
    %p127 = scmp.le.s32.totalorder 1, %s9
    %p128 = scmp.lt.s32.totalorder %s9, 3
    %p129 = pnand %p127, %p128
    %p130 = pneg %p129
    // Predicated region
    $region9: #{depth_block_forward.6} parent=5 // pred_check
      _
    $region10: #{depth_block_forward.6} parent=5 // pred_check_branch
      %132 = sbr.rel (%p129) target = $region12
    $region11: #{depth_block_forward.6} parent=5 // pred_region
      %s133 = ssub.s32 %s9, 1
      // Predicated region
      $region13: #{depth_block_forward.6} parent=11 // pred_check
        %p134 = pneg %p70
      $region14: #{depth_block_forward.6} parent=11 // pred_check_branch
        %136 = sbr.rel (%p134) target = $region16
      $region15: #{depth_block_forward.6} parent=11 // pred_region
        _
      $region16: #{depth_block_forward.6} parent=11 // pred_fallthru
        _
      // Predicated region
      $region17: #{depth_block_forward.6} parent=11 // pred_check
        %p137 = pneg %p91
      $region18: #{depth_block_forward.6} parent=11 // pred_check_branch
        %139 = sbr.rel (%p137) target = $region20
      $region19: #{depth_block_forward.6} parent=11 // pred_region
        _
      $region20: #{depth_block_forward.6} parent=11 // pred_fallthru
        _
    $region12: #{depth_block_forward.6} parent=5 // pred_fallthru
      _
    %p140 = scmp.lt.s32.totalorder %s9, 2
    // Predicated region
    $region21: #{depth_block_forward.6} parent=5 // pred_check
      %p141 = pneg %p140
    $region22: #{depth_block_forward.6} parent=5 // pred_check_branch
      %143 = sbr.rel (%p141) target = $region24
    $region23: #{depth_block_forward.6} parent=5 // pred_region
      // Predicated region
      $region25: #{depth_block_forward.6} parent=23 // pred_check
        %p144 = pneg %p43
      $region26: #{depth_block_forward.6} parent=23 // pred_check_branch
        %146 = sbr.rel (%p144) target = $region28
      $region27: #{depth_block_forward.6} parent=23 // pred_region
        %s147 = smul.u32 2, %s17
        %p148 = scmp.lt.s32.totalorder %s16, 1
        %s149 = scalar_select %p148, %s16, 1
        %p150 = scmp.lt.s32.totalorder %s147, 1
        %s151 = scalar_select %p150, %s147, 1
        %s152 = smul.addr %s149, 10
        %s153 = sadd.s32 %s151, %s152
        %s154 = smul.addr %s153, 4
        %s155 = scalar_lea.vmem %s0, %s154
        %s156 = smul.u32 2, %s17
      $region28: #{depth_block_forward.6} parent=23 // pred_fallthru
        _
    $region24: #{depth_block_forward.6} parent=5 // pred_fallthru
      _
    %p157 = scmp.le.s32.totalorder 1, %s9
    %p158 = scmp.lt.s32.totalorder %s9, 3
    %p159 = pnand %p157, %p158
    %p160 = pneg %p159
    // Predicated region
    $region29: #{depth_block_forward.6} parent=5 // pred_check
      _
    $region30: #{depth_block_forward.6} parent=5 // pred_check_branch
      %162 = sbr.rel (%p159) target = $region32
    $region31: #{depth_block_forward.6} parent=5 // pred_region
      %s163 = ssub.s32 %s9, 1
      %s164 = smul.u32 2, %s19
      %p165 = scmp.lt.s32.totalorder %s18, 1
      %s166 = scalar_select %p165, %s18, 1
      %p167 = scmp.lt.s32.totalorder %s164, 1
      %s168 = scalar_select %p167, %s164, 1
      %s169 = smul.addr %s166, 10
      %s170 = sadd.s32 %s168, %s169
      %s171 = smul.addr %s170, 4
      %s172 = scalar_lea.vmem %s0, %s171
      %p173 = pneg %p49
      %p174 = pneg %p46
      %p175 = pneg %p70
      %p176 = pneg %p67
      %p177 = pneg %p91
      %p178 = pneg %p88
      %p179 = pneg %p119
      %p180 = pneg %p116
      %s181 = smul.u32 2, %s19
      %p182 = scmp.lt.s32.totalorder %s18, 1
      %s183 = scalar_select %p182, %s18, 1
      %p184 = scmp.lt.s32.totalorder %s181, 1
      %s185 = scalar_select %p184, %s181, 1
      %s186 = smul.addr %s183, 8
      %s187 = sadd.s32 %s185, %s186
      %s188 = smul.addr %s187, 8
      %s189 = scalar_lea.vmem %s3, %s188
      %s190 = smul.u32 2, %s19
      %p191 = scmp.lt.s32.totalorder %s18, 1
      %s192 = scalar_select %p191, %s18, 1
      %p193 = scmp.lt.s32.totalorder %s190, 1
      %s194 = scalar_select %p193, %s190, 1
      %s195 = smul.addr %s192, 10
      %s196 = sadd.s32 %s194, %s195
      %s197 = smul.addr %s196, 4
      %s198 = scalar_lea.vmem %s0, %s197
      %s199 = smul.u32 2, %s19
      %s200 = smul.u32 2, %s19
      %p201 = scmp.lt.s32.totalorder %s18, 1
      %s202 = scalar_select %p201, %s18, 1
      %p203 = scmp.lt.s32.totalorder %s200, 1
      %s204 = scalar_select %p203, %s200, 1
      %s205 = smul.addr %s202, 8
      %s206 = sadd.s32 %s204, %s205
      %s207 = smul.addr %s206, 8
      %s208 = scalar_lea.vmem %s3, %s207
      %s209 = smul.u32 2, %s19
      %v211 = vld [vmem:[%s1] sm:$0xf]
      %v212 = vld [vmem:[%s1 + $0x4] sm:$0xf]
      %v213 = vld [vmem:[%s1 + $0x8] sm:$0xf]
      %v214 = vld [vmem:[%s1 + $0xc] sm:$0xf]
      %v215 = vld [vmem:[%s198] sm:$0xff]
      %v216 = vld [vmem:[%s198 + $0x8] sm:$0xff]
      %v217 = vld [vmem:[%s198 + $0x10] sm:$0xff]
      %v218 = vld [vmem:[%s198 + $0x18] sm:$0xff]
      %v219 = vld [vmem:[%s198 + $0x20] sm:$0x33]
      %v220 = vld [vmem:[%s2] sm:$0xff]
      %v221 = vld [vmem:[%s2 + $0x8] sm:$0xff]
      %v222 = vld [vmem:[%s2 + $0x10] sm:$0xff]
      %v223 = vld [vmem:[%s2 + $0x18] sm:$0xff]
      %225 = vset.pattern.permute.xlu0 0
      %226 = vperm.xlu0 %225, %v220
      %v227 = vpop.permute.xlu0 %226
      %230 = vset.pattern.permute.xlu0 0
      %231 = vperm.xlu0 %230, %v221
      %v232 = vpop.permute.xlu0 %231
      %235 = vset.pattern.permute.xlu0 0
      %236 = vperm.xlu0 %235, %v222
      %v237 = vpop.permute.xlu0 %236
      %240 = vset.pattern.permute.xlu0 0
      %241 = vperm.xlu0 %240, %v223
      %v242 = vpop.permute.xlu0 %241
      %v248 = vunpack.c.l.b16 %v211
      %v249 = vunpack.c.l.b16 %v212
      %v250 = vunpack.c.l.b16 %v213
      %v251 = vunpack.c.l.b16 %v214
      %v252 = vpack.c.b16 %v249, %v248
      %v253 = vpack.c.b16 %v251, %v250
      %v259 = vunpack.c.l.b16 %v215
      %v260 = vunpack.c.h.b16 %v215
      %v261 = vunpack.c.l.b16 %v216
      %v262 = vunpack.c.h.b16 %v216
      %v263 = vunpack.c.l.b16 %v217
      %v264 = vunpack.c.h.b16 %v217
      %v265 = vunpack.c.l.b16 %v218
      %v266 = vunpack.c.h.b16 %v218
      %v267 = vunpack.c.l.b16 %v219
      %v268 = vunpack.c.h.b16 %v219
      %v269 = vpack.c.b16 %v261, %v259
      %v270 = vpack.c.b16 %v262, %v260
      %v271 = vpack.c.b16 %v265, %v263
      %v272 = vpack.c.b16 %v266, %v264
      %v273 = vpack.c.b16 %v267, %v267
      %v274 = vpack.c.b16 %v268, %v268
      %vm279 = vcmask 293888
      %v281 = vsel %vm279, %v252, 0
      %v284 = vsel %vm279, %v253, 0
      %vm286 = vcmask 1041408
      %v288 = vsel %vm286, %v273, 0
      %v291 = vsel %vm286, %v274, 0
      %293 = vmatpush.bf16.msra.mxu0 0
      %294 = vmatpush.bf16.msra.mxu0 0
      %295 = vmatpush.bf16.msra.mxu0 0
      %296 = vmatpush.bf16.msra.mxu0 0
      %297 = vmatpush.bf16.msra.mxu0 0
      %298 = vmatpush.bf16.msra.mxu0 %v288
      %299 = vmatpush.bf16.msra.mxu0 %v271
      %300 = vmatpush.bf16.msra.mxu0 %v269
      %301 = vmatmul.bf16.gmra.mxu0 %v281
      %v302 = vpop.f32.mrf.mxu0
      %v303 = vadd.f32 %v227, %v302
      %v304 = vpop.f32.mrf.mxu0
      %v305 = vadd.f32 %v232, %v304
      %306 = vmatmul.bf16.gmra.mxu0 %v284
      %v307 = vpop.f32.mrf.mxu0
      %v308 = vadd.f32 %v237, %v307
      %v309 = vpop.f32.mrf.mxu0
      %v310 = vadd.f32 %v242, %v309
      %311 = vdwg.mxu0
      %312 = vmatpush.bf16.msra.mxu0 0
      %313 = vmatpush.bf16.msra.mxu0 0
      %314 = vmatpush.bf16.msra.mxu0 0
      %315 = vmatpush.bf16.msra.mxu0 0
      %316 = vmatpush.bf16.msra.mxu0 0
      %317 = vmatpush.bf16.msra.mxu0 %v291
      %318 = vmatpush.bf16.msra.mxu0 %v272
      %319 = vmatpush.bf16.msra.mxu0 %v270
      %320 = vmatmul.bf16.gmra.mxu0 %v281
      %v321 = vpop.f32.mrf.mxu0
      %v322 = vadd.f32 %v227, %v321
      %v323 = vpop.f32.mrf.mxu0
      %v324 = vadd.f32 %v232, %v323
      %325 = vmatmul.bf16.gmra.mxu0 %v284
      %v326 = vpop.f32.mrf.mxu0
      %v327 = vadd.f32 %v237, %v326
      %v328 = vpop.f32.mrf.mxu0
      %v329 = vadd.f32 %v242, %v328
      %330 = vdwg.mxu0
      %vm331 = vcmp.ge.f32.partialorder %v303, 0.0
      %vm332 = vcmp.ge.f32.partialorder %v322, 0.0
      %vm333 = vcmp.ge.f32.partialorder %v305, 0.0
      %vm334 = vcmp.ge.f32.partialorder %v324, 0.0
      %vm335 = vcmp.ge.f32.partialorder %v308, 0.0
      %vm336 = vcmp.ge.f32.partialorder %v327, 0.0
      %vm337 = vcmp.ge.f32.partialorder %v310, 0.0
      %vm338 = vcmp.ge.f32.partialorder %v329, 0.0
      %v339 = vmul.f32 %v303, 0.02
      %v340 = vmul.f32 %v322, 0.02
      %v341 = vmul.f32 %v305, 0.02
      %v342 = vmul.f32 %v324, 0.02
      %v343 = vmul.f32 %v308, 0.02
      %v344 = vmul.f32 %v327, 0.02
      %v345 = vmul.f32 %v310, 0.02
      %v346 = vmul.f32 %v329, 0.02
      %v347 = vsel %vm331, %v303, %v339
      %v348 = vsel %vm332, %v322, %v340
      %v349 = vsel %vm333, %v305, %v341
      %v350 = vsel %vm334, %v324, %v342
      %v351 = vsel %vm335, %v308, %v343
      %v352 = vsel %vm336, %v327, %v344
      %v353 = vsel %vm337, %v310, %v345
      %v354 = vsel %vm338, %v329, %v346
      %s355 = scalar_lea.vmem %s2, 32
      %v356 = vld [vmem:[%s355] sm:$0xff]
      %v357 = vld [vmem:[%s355 + $0x8] sm:$0xff]
      %v358 = vld [vmem:[%s355 + $0x10] sm:$0xff]
      %v359 = vld [vmem:[%s355 + $0x18] sm:$0xff]
      %361 = vset.pattern.permute.xlu0 0
      %362 = vperm.xlu0 %361, %v356
      %v363 = vpop.permute.xlu0 %362
      %366 = vset.pattern.permute.xlu0 0
      %367 = vperm.xlu0 %366, %v357
      %v368 = vpop.permute.xlu0 %367
      %371 = vset.pattern.permute.xlu0 0
      %372 = vperm.xlu0 %371, %v358
      %v373 = vpop.permute.xlu0 %372
      %376 = vset.pattern.permute.xlu0 0
      %377 = vperm.xlu0 %376, %v359
      %v378 = vpop.permute.xlu0 %377
      %v380 = vmul.f32 %v347, %v363
      %v381 = vmul.f32 %v348, %v363
      %v382 = vmul.f32 %v349, %v368
      %v383 = vmul.f32 %v350, %v368
      %v384 = vmul.f32 %v351, %v373
      %v385 = vmul.f32 %v352, %v373
      %v386 = vmul.f32 %v353, %v378
      %v387 = vmul.f32 %v354, %v378
      %s388 = scalar_lea.vmem %s2, 64
      %v389 = vld [vmem:[%s388] sm:$0xff]
      %v390 = vld [vmem:[%s388 + $0x8] sm:$0xff]
      %v391 = vld [vmem:[%s388 + $0x10] sm:$0xff]
      %v392 = vld [vmem:[%s388 + $0x18] sm:$0xff]
      %394 = vset.pattern.permute.xlu0 0
      %395 = vperm.xlu0 %394, %v389
      %v396 = vpop.permute.xlu0 %395
      %399 = vset.pattern.permute.xlu0 0
      %400 = vperm.xlu0 %399, %v390
      %v401 = vpop.permute.xlu0 %400
      %404 = vset.pattern.permute.xlu0 0
      %405 = vperm.xlu0 %404, %v391
      %v406 = vpop.permute.xlu0 %405
      %409 = vset.pattern.permute.xlu0 0
      %410 = vperm.xlu0 %409, %v392
      %v411 = vpop.permute.xlu0 %410
      %v413 = vadd.f32 %v380, %v396
      %v414 = vadd.f32 %v381, %v396
      %v415 = vadd.f32 %v382, %v401
      %v416 = vadd.f32 %v383, %v401
      %v417 = vadd.f32 %v384, %v406
      %v418 = vadd.f32 %v385, %v406
      %v419 = vadd.f32 %v386, %v411
      %v420 = vadd.f32 %v387, %v411
      %421 = vst [vmem:[%s208] sm:$0xff] %v413
      %422 = vst [vmem:[%s208 + $0x8] sm:$0xff] %v414
      %423 = vst [vmem:[%s208 + $0x10] sm:$0xff] %v415
      %424 = vst [vmem:[%s208 + $0x18] sm:$0xff] %v416
      %425 = vst [vmem:[%s208 + $0x20] sm:$0xff] %v417
      %426 = vst [vmem:[%s208 + $0x28] sm:$0xff] %v418
      %427 = vst [vmem:[%s208 + $0x30] sm:$0xff] %v419
      %428 = vst [vmem:[%s208 + $0x38] sm:$0xff] %v420
      %s429 = smul.u32 2, %s19
      %p430 = scmp.lt.s32.totalorder %s18, 1
      %s431 = scalar_select %p430, %s18, 1
      %p432 = scmp.lt.s32.totalorder %s429, 1
      %s433 = scalar_select %p432, %s429, 1
      %s434 = smul.addr %s431, 8
      %s435 = sadd.s32 %s433, %s434
      %s436 = smul.addr %s435, 8
      %s437 = scalar_lea.vmem %s3, %s436
      // Predicated region
      $region33: #{depth_block_forward.6} parent=31 // pred_check
        %p438 = pneg %p116
      $region34: #{depth_block_forward.6} parent=31 // pred_check_branch
        %440 = sbr.rel (%p438) target = $region36
      $region35: #{depth_block_forward.6} parent=31 // pred_region
        %s441 = smul.u32 2, %s19
      $region36: #{depth_block_forward.6} parent=31 // pred_fallthru
        _
    $region32: #{depth_block_forward.6} parent=5 // pred_fallthru
      _
    %p442 = scmp.le.s32.totalorder 2, %s9
    // Predicated region
    $region37: #{depth_block_forward.6} parent=5 // pred_check
      %p443 = pneg %p442
    $region38: #{depth_block_forward.6} parent=5 // pred_check_branch
      %445 = sbr.rel (%p443) target = $region40
    $region39: #{depth_block_forward.6} parent=5 // pred_region
      %s446 = ssub.s32 %s9, 2
      // Predicated region
      $region41: #{depth_block_forward.6} parent=39 // pred_check
        %p447 = pneg %p122
      $region42: #{depth_block_forward.6} parent=39 // pred_check_branch
        %449 = sbr.rel (%p447) target = $region44
      $region43: #{depth_block_forward.6} parent=39 // pred_region
        %s450 = smul.u32 2, %s21
        %p451 = scmp.lt.s32.totalorder %s20, 1
        %s452 = scalar_select %p451, %s20, 1
        %p453 = scmp.lt.s32.totalorder %s450, 1
        %s454 = scalar_select %p453, %s450, 1
        %s455 = smul.addr %s452, 8
        %s456 = sadd.s32 %s454, %s455
        %s457 = smul.addr %s456, 8
        %s458 = scalar_lea.vmem %s3, %s457
      $region44: #{depth_block_forward.6} parent=39 // pred_fallthru
        _
    $region40: #{depth_block_forward.6} parent=5 // pred_fallthru
      _
  $region6: #{depth_block_forward.6} parent=0 // loop_footer
    %s13 = sadd.s32 1, %s9
  $region7: #{depth_block_forward.6} parent=0 // loop_footer_branch
    %8 = sbr.rel target = $region3
  $region8: #{depth_block_forward.6} parent=0 // loop_exit
    _

// kernel: depth_block_forward.7
$region0: #{depth_block_forward.7}
  #allocation0 [shape = 'u32[]', space=smem, size = 0x4, offset = 0x4, fixed_abs, tag = 'smem constant byte address 0x4 - core index']
  #allocation1 [shape = 'u32[72,128]{1,0:T(1,128)}', space=vmem, size = 0x9000, scoped, tag = 'internal scratch']
  %s0 = inlined_call_operand.vmem [shape: bf16[2,8,1024], index: 0, kind: input, shape index: {}]
  %s1 = inlined_call_operand.vmem [shape: bf16[8,8], index: 1, kind: input, shape index: {}]
  %s2 = inlined_call_operand.vmem [shape: f32[3,8,1], index: 2, kind: input, shape index: {}]
  %s3 = inlined_call_operand.vmem [shape: f32[2,8,1024], index: 3, kind: output, shape index: {}]
  %s4 = sld [smem:[#allocation0]]
  $region45: #{depth_block_forward.7} parent=0
    _
  %s6 = ssub.s32 1, %s4
  %s7 = scalar_select 0, %s6, %s4
  loop: start=0, step=1, limit=6
  $region2: #{depth_block_forward.7} parent=0 // loop_pre_header
    _
  $region3: #{depth_block_forward.7} parent=0 // loop_header
    %s9 = sphi 0, %s13
    %p10 = scmp.ge.s32.totalorder %s9, 6
    %s16 = sphi 0, %s28
    %s17 = sphi 0, %s24
    %s18 = sphi 0, %s16
    %s19 = sphi 0, %s17
    %s20 = sphi 0, %s18
    %s21 = sphi 0, %s19
    %s33 = sphi 0, %s35
    %s36 = sphi 0, %s33
    %s37 = sphi 0, %s36
    %s53 = sphi 0, %s37
    %s57 = sphi 0, %s57
    %s59 = sphi 0, %s57
    %s60 = sphi 0, %s59
    %s74 = sphi 0, %s60
    %s78 = sphi 0, %s78
    %s80 = sphi 0, %s78
    %s81 = sphi 0, %s80
    %s95 = sphi 0, %s81
    %s103 = sphi 0, %s105
    %s106 = sphi 0, %s103
    %s107 = sphi 0, %s106
    %s123 = sphi 0, %s107
  $region4: #{depth_block_forward.7} parent=0 // loop_header_branch
    %12 = sbr.rel (%p10) target = $region8
  $region5: #{depth_block_forward.7} parent=0 // loop_body
    %s14 = ssub.s32 %s9, 1
    %s15 = ssub.s32 %s9, 2
    %s22 = sadd.s32 1, %s17
    %p23 = scmp.ge.s32.totalorder %s22, 2
    %s24 = scalar_select %p23, 0, %s22
    %s25 = sadd.s32 1, %s16
    %s26 = scalar_select %p23, %s25, %s16
    %p27 = scmp.ge.s32.totalorder %s26, 2
    %s28 = scalar_select %p27, 0, %s26
    %s29 = ssub.s32 %s16, %s28
    %s30 = ssub.s32 %s17, %s24
    %s31 = sor.u32 %s29, %s30
    %p32 = scmp.eq.s32.totalorder %s31, 0
    %s34 = sadd.s32 %s33, 1
    %s35 = scalar_select %p32, %s33, %s34
    %p38 = pneg %p32
    %p39 = scmp.eq.s32.totalorder %s9, 3
    %p40 = por %p38, %p39
    %p41 = scmp.ne.s32.totalorder %s33, %s36
    %p42 = scmp.eq.s32.totalorder %s9, 0
    %p43 = por %p41, %p42
    %p44 = scmp.ne.s32.totalorder %s33, %s36
    %p45 = scmp.eq.s32.totalorder %s14, 3
    %p46 = por %p44, %p45
    %p47 = scmp.ne.s32.totalorder %s36, %s37
    %p48 = scmp.eq.s32.totalorder %s14, 0
    %p49 = por %p47, %p48
    %p50 = scmp.ne.s32.totalorder %s36, %s37
    %p51 = scmp.eq.s32.totalorder %s15, 3
    %p52 = por %p50, %p51
    %p54 = scmp.ne.s32.totalorder %s37, %s53
    %p55 = scmp.eq.s32.totalorder %s15, 0
    %p56 = por %p54, %p55
    %s58 = sadd.s32 %s57, 1
    %p61 = scmp.eq.s32.totalorder %s9, 3
    %p62 = scmp.ne.s32.totalorder %s57, %s59
    %p63 = scmp.eq.s32.totalorder %s9, 0
    %p64 = por %p62, %p63
    %p65 = scmp.ne.s32.totalorder %s57, %s59
    %p66 = scmp.eq.s32.totalorder %s14, 3
    %p67 = por %p65, %p66
    %p68 = scmp.ne.s32.totalorder %s59, %s60
    %p69 = scmp.eq.s32.totalorder %s14, 0
    %p70 = por %p68, %p69
    %p71 = scmp.ne.s32.totalorder %s59, %s60
    %p72 = scmp.eq.s32.totalorder %s15, 3
    %p73 = por %p71, %p72
    %p75 = scmp.ne.s32.totalorder %s60, %s74
    %p76 = scmp.eq.s32.totalorder %s15, 0
    %p77 = por %p75, %p76
    %s79 = sadd.s32 %s78, 1
    %p82 = scmp.eq.s32.totalorder %s9, 3
    %p83 = scmp.ne.s32.totalorder %s78, %s80
    %p84 = scmp.eq.s32.totalorder %s9, 0
    %p85 = por %p83, %p84
    %p86 = scmp.ne.s32.totalorder %s78, %s80
    %p87 = scmp.eq.s32.totalorder %s14, 3
    %p88 = por %p86, %p87
    %p89 = scmp.ne.s32.totalorder %s80, %s81
    %p90 = scmp.eq.s32.totalorder %s14, 0
    %p91 = por %p89, %p90
    %p92 = scmp.ne.s32.totalorder %s80, %s81
    %p93 = scmp.eq.s32.totalorder %s15, 3
    %p94 = por %p92, %p93
    %p96 = scmp.ne.s32.totalorder %s81, %s95
    %p97 = scmp.eq.s32.totalorder %s15, 0
    %p98 = por %p96, %p97
    %s99 = ssub.s32 %s16, %s28
    %s100 = ssub.s32 %s17, %s24
    %s101 = sor.u32 %s99, %s100
    %p102 = scmp.eq.s32.totalorder %s101, 0
    %s104 = sadd.s32 %s103, 1
    %s105 = scalar_select %p102, %s103, %s104
    %p108 = pneg %p102
    %p109 = scmp.eq.s32.totalorder %s9, 3
    %p110 = por %p108, %p109
    %p111 = scmp.ne.s32.totalorder %s103, %s106
    %p112 = scmp.eq.s32.totalorder %s9, 0
    %p113 = por %p111, %p112
    %p114 = scmp.ne.s32.totalorder %s103, %s106
    %p115 = scmp.eq.s32.totalorder %s14, 3
    %p116 = por %p114, %p115
    %p117 = scmp.ne.s32.totalorder %s106, %s107
    %p118 = scmp.eq.s32.totalorder %s14, 0
    %p119 = por %p117, %p118
    %p120 = scmp.ne.s32.totalorder %s106, %s107
    %p121 = scmp.eq.s32.totalorder %s15, 3
    %p122 = por %p120, %p121
    %p124 = scmp.ne.s32.totalorder %s107, %s123
    %p125 = scmp.eq.s32.totalorder %s15, 0
    %p126 = por %p124, %p125
    %p127 = scmp.le.s32.totalorder 1, %s9
    %p128 = scmp.lt.s32.totalorder %s9, 5
    %p129 = pnand %p127, %p128
    %p130 = pneg %p129
    // Predicated region
    $region9: #{depth_block_forward.7} parent=5 // pred_check
      _
    $region10: #{depth_block_forward.7} parent=5 // pred_check_branch
      %132 = sbr.rel (%p129) target = $region12
    $region11: #{depth_block_forward.7} parent=5 // pred_region
      %s133 = ssub.s32 %s9, 1
      // Predicated region
      $region13: #{depth_block_forward.7} parent=11 // pred_check
        %p134 = pneg %p70
      $region14: #{depth_block_forward.7} parent=11 // pred_check_branch
        %136 = sbr.rel (%p134) target = $region16
      $region15: #{depth_block_forward.7} parent=11 // pred_region
        _
      $region16: #{depth_block_forward.7} parent=11 // pred_fallthru
        _
      // Predicated region
      $region17: #{depth_block_forward.7} parent=11 // pred_check
        %p137 = pneg %p91
      $region18: #{depth_block_forward.7} parent=11 // pred_check_branch
        %139 = sbr.rel (%p137) target = $region20
      $region19: #{depth_block_forward.7} parent=11 // pred_region
        _
      $region20: #{depth_block_forward.7} parent=11 // pred_fallthru
        _
    $region12: #{depth_block_forward.7} parent=5 // pred_fallthru
      _
    %p140 = scmp.lt.s32.totalorder %s9, 4
    // Predicated region
    $region21: #{depth_block_forward.7} parent=5 // pred_check
      %p141 = pneg %p140
    $region22: #{depth_block_forward.7} parent=5 // pred_check_branch
      %143 = sbr.rel (%p141) target = $region24
    $region23: #{depth_block_forward.7} parent=5 // pred_region
      // Predicated region
      $region25: #{depth_block_forward.7} parent=23 // pred_check
        %p144 = pneg %p43
      $region26: #{depth_block_forward.7} parent=23 // pred_check_branch
        %146 = sbr.rel (%p144) target = $region28
      $region27: #{depth_block_forward.7} parent=23 // pred_region
        %s147 = smul.u32 4, %s17
        %p148 = scmp.lt.s32.totalorder %s16, 1
        %s149 = scalar_select %p148, %s16, 1
        %p150 = scmp.lt.s32.totalorder %s147, 7
        %s151 = scalar_select %p150, %s147, 7
        %s152 = smul.addr %s149, 8
        %s153 = sadd.s32 %s151, %s152
        %s154 = smul.addr %s153, 4
        %s155 = scalar_lea.vmem %s0, %s154
        %s156 = smul.u32 4, %s17
      $region28: #{depth_block_forward.7} parent=23 // pred_fallthru
        _
    $region24: #{depth_block_forward.7} parent=5 // pred_fallthru
      _
    %p157 = scmp.le.s32.totalorder 1, %s9
    %p158 = scmp.lt.s32.totalorder %s9, 5
    %p159 = pnand %p157, %p158
    %p160 = pneg %p159
    // Predicated region
    $region29: #{depth_block_forward.7} parent=5 // pred_check
      _
    $region30: #{depth_block_forward.7} parent=5 // pred_check_branch
      %162 = sbr.rel (%p159) target = $region32
    $region31: #{depth_block_forward.7} parent=5 // pred_region
      %s163 = ssub.s32 %s9, 1
      %s164 = smul.u32 4, %s19
      %p165 = scmp.lt.s32.totalorder %s18, 1
      %s166 = scalar_select %p165, %s18, 1
      %p167 = scmp.lt.s32.totalorder %s164, 7
      %s168 = scalar_select %p167, %s164, 7
      %s169 = smul.addr %s166, 8
      %s170 = sadd.s32 %s168, %s169
      %s171 = smul.addr %s170, 4
      %s172 = scalar_lea.vmem %s0, %s171
      %p173 = pneg %p49
      %p174 = pneg %p46
      %p175 = pneg %p70
      %p176 = pneg %p67
      %p177 = pneg %p91
      %p178 = pneg %p88
      %p179 = pneg %p119
      %p180 = pneg %p116
      %s181 = smul.u32 4, %s19
      %p182 = scmp.lt.s32.totalorder %s18, 1
      %s183 = scalar_select %p182, %s18, 1
      %p184 = scmp.lt.s32.totalorder %s181, 7
      %s185 = scalar_select %p184, %s181, 7
      %s186 = smul.addr %s183, 8
      %s187 = sadd.s32 %s185, %s186
      %s188 = smul.addr %s187, 8
      %s189 = scalar_lea.vmem %s3, %s188
      %s190 = smul.u32 4, %s19
      %p191 = scmp.lt.s32.totalorder %s18, 1
      %s192 = scalar_select %p191, %s18, 1
      %p193 = scmp.lt.s32.totalorder %s190, 7
      %s194 = scalar_select %p193, %s190, 7
      %s195 = smul.addr %s192, 8
      %s196 = sadd.s32 %s194, %s195
      %s197 = smul.addr %s196, 4
      %s198 = scalar_lea.vmem %s0, %s197
      %s199 = smul.u32 4, %s19
      %s200 = smul.u32 4, %s19
      %p201 = scmp.lt.s32.totalorder %s18, 1
      %s202 = scalar_select %p201, %s18, 1
      %p203 = scmp.lt.s32.totalorder %s200, 7
      %s204 = scalar_select %p203, %s200, 7
      %s205 = smul.addr %s202, 8
      %s206 = sadd.s32 %s204, %s205
      %s207 = smul.addr %s206, 8
      %s208 = scalar_lea.vmem %s3, %s207
      %s209 = smul.u32 4, %s19
      %v211 = vld [vmem:[%s1] sm:$0xf]
      %v212 = vld [vmem:[%s198] sm:$0xff]
      %v213 = vld [vmem:[%s198 + $0x8] sm:$0xff]
      %v214 = vld [vmem:[%s2] sm:$0xff]
      %216 = vset.pattern.permute.xlu0 0
      %217 = vperm.xlu0 %216, %v214
      %v218 = vpop.permute.xlu0 %217
      %v222 = vunpack.c.l.b16 %v212
      %v223 = vunpack.c.h.b16 %v212
      %v224 = vunpack.c.l.b16 %v213
      %v225 = vunpack.c.h.b16 %v213
      %v226 = vpack.c.b16 %v222, %v222
      %v227 = vpack.c.b16 %v223, %v223
      %v228 = vpack.c.b16 %v224, %v224
      %v229 = vpack.c.b16 %v225, %v225
      %vm230 = vcmask 64512
      %v232 = vsel %vm230, %v211, 0
      %vm234 = vcmask 1043456
      %v236 = vsel %vm234, %v226, 0
      %v239 = vsel %vm234, %v227, 0
      %v242 = vsel %vm234, %v228, 0
      %v245 = vsel %vm234, %v229, 0
      %247 = vmatpush.bf16.msra.mxu0 0
      %248 = vmatpush.bf16.msra.mxu0 0
      %249 = vmatpush.bf16.msra.mxu0 0
      %250 = vmatpush.bf16.msra.mxu0 0
      %251 = vmatpush.bf16.msra.mxu0 0
      %252 = vmatpush.bf16.msra.mxu0 0
      %253 = vmatpush.bf16.msra.mxu0 0
      %254 = vmatpush.bf16.msra.mxu0 %v236
      %255 = vmatmul.bf16.gmra.mxu0 %v232
      %v256 = vpop.f32.mrf.mxu0
      %v257 = vadd.f32 %v218, %v256
      %v258 = vpop.f32.mrf.mxu0
      %259 = vdwg.mxu0
      %260 = vmatpush.bf16.msra.mxu0 0
      %261 = vmatpush.bf16.msra.mxu0 0
      %262 = vmatpush.bf16.msra.mxu0 0
      %263 = vmatpush.bf16.msra.mxu0 0
      %264 = vmatpush.bf16.msra.mxu0 0
      %265 = vmatpush.bf16.msra.mxu0 0
      %266 = vmatpush.bf16.msra.mxu0 0
      %267 = vmatpush.bf16.msra.mxu0 %v239
      %268 = vmatmul.bf16.gmra.mxu0 %v232
      %v269 = vpop.f32.mrf.mxu0
      %v270 = vadd.f32 %v218, %v269
      %v271 = vpop.f32.mrf.mxu0
      %272 = vdwg.mxu0
      %273 = vmatpush.bf16.msra.mxu0 0
      %274 = vmatpush.bf16.msra.mxu0 0
      %275 = vmatpush.bf16.msra.mxu0 0
      %276 = vmatpush.bf16.msra.mxu0 0
      %277 = vmatpush.bf16.msra.mxu0 0
      %278 = vmatpush.bf16.msra.mxu0 0
      %279 = vmatpush.bf16.msra.mxu0 0
      %280 = vmatpush.bf16.msra.mxu0 %v242
      %281 = vmatmul.bf16.gmra.mxu0 %v232
      %v282 = vpop.f32.mrf.mxu0
      %v283 = vadd.f32 %v218, %v282
      %v284 = vpop.f32.mrf.mxu0
      %285 = vdwg.mxu0
      %286 = vmatpush.bf16.msra.mxu0 0
      %287 = vmatpush.bf16.msra.mxu0 0
      %288 = vmatpush.bf16.msra.mxu0 0
      %289 = vmatpush.bf16.msra.mxu0 0
      %290 = vmatpush.bf16.msra.mxu0 0
      %291 = vmatpush.bf16.msra.mxu0 0
      %292 = vmatpush.bf16.msra.mxu0 0
      %293 = vmatpush.bf16.msra.mxu0 %v245
      %294 = vmatmul.bf16.gmra.mxu0 %v232
      %v295 = vpop.f32.mrf.mxu0
      %v296 = vadd.f32 %v218, %v295
      %v297 = vpop.f32.mrf.mxu0
      %298 = vdwg.mxu0
      %v299 = vmax.f32 %v257, 0.0
      %v300 = vmax.f32 %v270, 0.0
      %v301 = vmax.f32 %v283, 0.0
      %v302 = vmax.f32 %v296, 0.0
      %v303 = vmin.f32 %v299, 6.0
      %v304 = vmin.f32 %v300, 6.0
      %v305 = vmin.f32 %v301, 6.0
      %v306 = vmin.f32 %v302, 6.0
      %s307 = scalar_lea.vmem %s2, 8
      %v308 = vld [vmem:[%s307] sm:$0xff]
      %310 = vset.pattern.permute.xlu0 0
      %311 = vperm.xlu0 %310, %v308
      %v312 = vpop.permute.xlu0 %311
      %v314 = vmul.f32 %v303, %v312
      %v315 = vmul.f32 %v304, %v312
      %v316 = vmul.f32 %v305, %v312
      %v317 = vmul.f32 %v306, %v312
      %s318 = scalar_lea.vmem %s2, 16
      %v319 = vld [vmem:[%s318] sm:$0xff]
      %321 = vset.pattern.permute.xlu0 0
      %322 = vperm.xlu0 %321, %v319
      %v323 = vpop.permute.xlu0 %322
      %v325 = vadd.f32 %v314, %v323
      %v326 = vadd.f32 %v315, %v323
      %v327 = vadd.f32 %v316, %v323
      %v328 = vadd.f32 %v317, %v323
      %329 = vst [vmem:[%s208] sm:$0xff] %v325
      %330 = vst [vmem:[%s208 + $0x8] sm:$0xff] %v326
      %331 = vst [vmem:[%s208 + $0x10] sm:$0xff] %v327
      %332 = vst [vmem:[%s208 + $0x18] sm:$0xff] %v328
      %s333 = smul.u32 4, %s19
      %p334 = scmp.lt.s32.totalorder %s18, 1
      %s335 = scalar_select %p334, %s18, 1
      %p336 = scmp.lt.s32.totalorder %s333, 7
      %s337 = scalar_select %p336, %s333, 7
      %s338 = smul.addr %s335, 8
      %s339 = sadd.s32 %s337, %s338
      %s340 = smul.addr %s339, 8
      %s341 = scalar_lea.vmem %s3, %s340
      // Predicated region
      $region33: #{depth_block_forward.7} parent=31 // pred_check
        %p342 = pneg %p116
      $region34: #{depth_block_forward.7} parent=31 // pred_check_branch
        %344 = sbr.rel (%p342) target = $region36
      $region35: #{depth_block_forward.7} parent=31 // pred_region
        %s345 = smul.u32 4, %s19
      $region36: #{depth_block_forward.7} parent=31 // pred_fallthru
        _
    $region32: #{depth_block_forward.7} parent=5 // pred_fallthru
      _
    %p346 = scmp.le.s32.totalorder 2, %s9
    // Predicated region
    $region37: #{depth_block_forward.7} parent=5 // pred_check
      %p347 = pneg %p346
    $region38: #{depth_block_forward.7} parent=5 // pred_check_branch
      %349 = sbr.rel (%p347) target = $region40
    $region39: #{depth_block_forward.7} parent=5 // pred_region
      %s350 = ssub.s32 %s9, 2
      // Predicated region
      $region41: #{depth_block_forward.7} parent=39 // pred_check
        %p351 = pneg %p122
      $region42: #{depth_block_forward.7} parent=39 // pred_check_branch
        %353 = sbr.rel (%p351) target = $region44
      $region43: #{depth_block_forward.7} parent=39 // pred_region
        %s354 = smul.u32 4, %s21
        %p355 = scmp.lt.s32.totalorder %s20, 1
        %s356 = scalar_select %p355, %s20, 1
        %p357 = scmp.lt.s32.totalorder %s354, 7
        %s358 = scalar_select %p357, %s354, 7
        %s359 = smul.addr %s356, 8
        %s360 = sadd.s32 %s358, %s359
        %s361 = smul.addr %s360, 8
        %s362 = scalar_lea.vmem %s3, %s361
      $region44: #{depth_block_forward.7} parent=39 // pred_fallthru
        _
    $region40: #{depth_block_forward.7} parent=5 // pred_fallthru
      _
  $region6: #{depth_block_forward.7} parent=0 // loop_footer
    %s13 = sadd.s32 1, %s9
  $region7: #{depth_block_forward.7} parent=0 // loop_footer_branch
    %8 = sbr.rel target = $region3
  $region8: #{depth_block_forward.7} parent=0 // loop_exit
    _

// kernel: depth_block_forward.10
$region0: #{depth_block_forward.10}
  #allocation0 [shape = 'u32[]', space=smem, size = 0x4, offset = 0x4, fixed_abs, tag = 'smem constant byte address 0x4 - core index']
  #allocation1 [shape = 'u32[72,128]{1,0:T(1,128)}', space=vmem, size = 0x9000, scoped, tag = 'internal scratch']
  %s0 = inlined_call_operand.vmem [shape: bf16[2,72,1024], index: 0, kind: input, shape index: {}]
  %s1 = inlined_call_operand.vmem [shape: f32[2,1,72], index: 1, kind: input, shape index: {}]
  %s2 = inlined_call_operand.vmem [shape: bf16[2,72], index: 2, kind: input, shape index: {}]
  %s3 = inlined_call_operand.vmem [shape: f32[3,2,1], index: 3, kind: input, shape index: {}]
  %s4 = inlined_call_operand.vmem [shape: f32[2,2,1024], index: 4, kind: output, shape index: {}]
  %s5 = sld [smem:[#allocation0]]
  $region72: #{depth_block_forward.10} parent=0
    _
  %s7 = ssub.s32 1, %s5
  %s8 = scalar_select 0, %s7, %s5
  $region1: #{depth_block_forward.10} parent=0
    #allocation2 [shape = 'u8[147456]{0}', space=vmem, size = 0x24000, scoped, tag = 'input window, operand 0']
    loop: start=0, step=1, limit=6
    $region2: #{depth_block_forward.10} parent=1 // loop_pre_header
      _
    $region3: #{depth_block_forward.10} parent=1 // loop_header
      %s10 = sphi 0, %s14
      %p11 = scmp.ge.s32.totalorder %s10, 6
      %s17 = sphi 0, %s29
      %s18 = sphi 0, %s25
      %s19 = sphi 0, %s17
      %s20 = sphi 0, %s18
      %s21 = sphi 0, %s19
      %s22 = sphi 0, %s20
      %s34 = sphi 0, %s36
      %s37 = sphi 0, %s34
      %s38 = sphi 0, %s37
      %s54 = sphi 0, %s38
      %s60 = sphi 0, %s62
      %s63 = sphi 0, %s60
      %s64 = sphi 0, %s63
      %s80 = sphi 0, %s64
      %s84 = sphi 0, %s84
      %s86 = sphi 0, %s84
      %s87 = sphi 0, %s86
      %s101 = sphi 0, %s87
      %s105 = sphi 0, %s105
      %s107 = sphi 0, %s105
      %s108 = sphi 0, %s107
      %s122 = sphi 0, %s108
      %s130 = sphi 0, %s132
      %s133 = sphi 0, %s130
      %s134 = sphi 0, %s133
      %s150 = sphi 0, %s134
    $region4: #{depth_block_forward.10} parent=1 // loop_header_branch
      %13 = sbr.rel (%p11) target = $region8
    $region5: #{depth_block_forward.10} parent=1 // loop_body
      %s15 = ssub.s32 %s10, 1
      %s16 = ssub.s32 %s10, 2
      %s23 = sadd.s32 1, %s18
      %p24 = scmp.ge.s32.totalorder %s23, 2
      %s25 = scalar_select %p24, 0, %s23
      %s26 = sadd.s32 1, %s17
      %s27 = scalar_select %p24, %s26, %s17
      %p28 = scmp.ge.s32.totalorder %s27, 2
      %s29 = scalar_select %p28, 0, %s27
      %s30 = ssub.s32 %s17, %s29
      %s31 = ssub.s32 %s18, %s25
      %s32 = sor.u32 %s30, %s31
      %p33 = scmp.eq.s32.totalorder %s32, 0
      %s35 = sadd.s32 %s34, 1
      %s36 = scalar_select %p33, %s34, %s35
      %p39 = pneg %p33
      %p40 = scmp.eq.s32.totalorder %s10, 3
      %p41 = por %p39, %p40
      %p42 = scmp.ne.s32.totalorder %s34, %s37
      %p43 = scmp.eq.s32.totalorder %s10, 0
      %p44 = por %p42, %p43
      %p45 = scmp.ne.s32.totalorder %s34, %s37
      %p46 = scmp.eq.s32.totalorder %s15, 3
      %p47 = por %p45, %p46
      %p48 = scmp.ne.s32.totalorder %s37, %s38
      %p49 = scmp.eq.s32.totalorder %s15, 0
      %p50 = por %p48, %p49
      %p51 = scmp.ne.s32.totalorder %s37, %s38
      %p52 = scmp.eq.s32.totalorder %s16, 3
      %p53 = por %p51, %p52
      %p55 = scmp.ne.s32.totalorder %s38, %s54
      %p56 = scmp.eq.s32.totalorder %s16, 0
      %p57 = por %p55, %p56
      %s58 = ssub.s32 %s17, %s29
      %p59 = scmp.eq.s32.totalorder %s58, 0
      %s61 = sadd.s32 %s60, 1
      %s62 = scalar_select %p59, %s60, %s61
      %p65 = pneg %p59
      %p66 = scmp.eq.s32.totalorder %s10, 3
      %p67 = por %p65, %p66
      %p68 = scmp.ne.s32.totalorder %s60, %s63
      %p69 = scmp.eq.s32.totalorder %s10, 0
      %p70 = por %p68, %p69
      %p71 = scmp.ne.s32.totalorder %s60, %s63
      %p72 = scmp.eq.s32.totalorder %s15, 3
      %p73 = por %p71, %p72
      %p74 = scmp.ne.s32.totalorder %s63, %s64
      %p75 = scmp.eq.s32.totalorder %s15, 0
      %p76 = por %p74, %p75
      %p77 = scmp.ne.s32.totalorder %s63, %s64
      %p78 = scmp.eq.s32.totalorder %s16, 3
      %p79 = por %p77, %p78
      %p81 = scmp.ne.s32.totalorder %s64, %s80
      %p82 = scmp.eq.s32.totalorder %s16, 0
      %p83 = por %p81, %p82
      %s85 = sadd.s32 %s84, 1
      %p88 = scmp.eq.s32.totalorder %s10, 3
      %p89 = scmp.ne.s32.totalorder %s84, %s86
      %p90 = scmp.eq.s32.totalorder %s10, 0
      %p91 = por %p89, %p90
      %p92 = scmp.ne.s32.totalorder %s84, %s86
      %p93 = scmp.eq.s32.totalorder %s15, 3
      %p94 = por %p92, %p93
      %p95 = scmp.ne.s32.totalorder %s86, %s87
      %p96 = scmp.eq.s32.totalorder %s15, 0
      %p97 = por %p95, %p96
      %p98 = scmp.ne.s32.totalorder %s86, %s87
      %p99 = scmp.eq.s32.totalorder %s16, 3
      %p100 = por %p98, %p99
      %p102 = scmp.ne.s32.totalorder %s87, %s101
      %p103 = scmp.eq.s32.totalorder %s16, 0
      %p104 = por %p102, %p103
      %s106 = sadd.s32 %s105, 1
      %p109 = scmp.eq.s32.totalorder %s10, 3
      %p110 = scmp.ne.s32.totalorder %s105, %s107
      %p111 = scmp.eq.s32.totalorder %s10, 0
      %p112 = por %p110, %p111
      %p113 = scmp.ne.s32.totalorder %s105, %s107
      %p114 = scmp.eq.s32.totalorder %s15, 3
      %p115 = por %p113, %p114
      %p116 = scmp.ne.s32.totalorder %s107, %s108
      %p117 = scmp.eq.s32.totalorder %s15, 0
      %p118 = por %p116, %p117
      %p119 = scmp.ne.s32.totalorder %s107, %s108
      %p120 = scmp.eq.s32.totalorder %s16, 3
      %p121 = por %p119, %p120
      %p123 = scmp.ne.s32.totalorder %s108, %s122
      %p124 = scmp.eq.s32.totalorder %s16, 0
      %p125 = por %p123, %p124
      %s126 = ssub.s32 %s17, %s29
      %s127 = ssub.s32 %s18, %s25
      %s128 = sor.u32 %s126, %s127
      %p129 = scmp.eq.s32.totalorder %s128, 0
      %s131 = sadd.s32 %s130, 1
      %s132 = scalar_select %p129, %s130, %s131
      %p135 = pneg %p129
      %p136 = scmp.eq.s32.totalorder %s10, 3
      %p137 = por %p135, %p136
      %p138 = scmp.ne.s32.totalorder %s130, %s133
      %p139 = scmp.eq.s32.totalorder %s10, 0
      %p140 = por %p138, %p139
      %p141 = scmp.ne.s32.totalorder %s130, %s133
      %p142 = scmp.eq.s32.totalorder %s15, 3
      %p143 = por %p141, %p142
      %p144 = scmp.ne.s32.totalorder %s133, %s134
      %p145 = scmp.eq.s32.totalorder %s15, 0
      %p146 = por %p144, %p145
      %p147 = scmp.ne.s32.totalorder %s133, %s134
      %p148 = scmp.eq.s32.totalorder %s16, 3
      %p149 = por %p147, %p148
      %p151 = scmp.ne.s32.totalorder %s134, %s150
      %p152 = scmp.eq.s32.totalorder %s16, 0
      %p153 = por %p151, %p152
      %p154 = scmp.le.s32.totalorder 1, %s10
      %p155 = scmp.lt.s32.totalorder %s10, 5
      %p156 = pnand %p154, %p155
      %p157 = pneg %p156
      // Predicated region
      $region9: #{depth_block_forward.10} parent=5 // pred_check
        _
      $region10: #{depth_block_forward.10} parent=5 // pred_check_branch
        %159 = sbr.rel (%p156) target = $region12
      $region11: #{depth_block_forward.10} parent=5 // pred_region
        %s160 = ssub.s32 %s10, 1
        // Predicated region
        $region13: #{depth_block_forward.10} parent=11 // pred_check
          %p161 = pneg %p97
        $region14: #{depth_block_forward.10} parent=11 // pred_check_branch
          %163 = sbr.rel (%p161) target = $region16
        $region15: #{depth_block_forward.10} parent=11 // pred_region
          _
        $region16: #{depth_block_forward.10} parent=11 // pred_fallthru
          _
        // Predicated region
        $region17: #{depth_block_forward.10} parent=11 // pred_check
          %p164 = pneg %p118
        $region18: #{depth_block_forward.10} parent=11 // pred_check_branch
          %166 = sbr.rel (%p164) target = $region20
        $region19: #{depth_block_forward.10} parent=11 // pred_region
          _
        $region20: #{depth_block_forward.10} parent=11 // pred_fallthru
          _
      $region12: #{depth_block_forward.10} parent=5 // pred_fallthru
        _
      %p167 = scmp.lt.s32.totalorder %s10, 4
      // Predicated region
      $region21: #{depth_block_forward.10} parent=5 // pred_check
        %p168 = pneg %p167
      $region22: #{depth_block_forward.10} parent=5 // pred_check_branch
        %170 = sbr.rel (%p168) target = $region24
      $region23: #{depth_block_forward.10} parent=5 // pred_region
        // Predicated region
        $region25: #{depth_block_forward.10} parent=23 // pred_check
          %p171 = pneg %p44
        $region26: #{depth_block_forward.10} parent=23 // pred_check_branch
          %173 = sbr.rel (%p171) target = $region28
        $region27: #{depth_block_forward.10} parent=23 // pred_region
          %s174 = sand.u32 %s34, 1
          %s175 = sand.u32 %s34, 1
          %s176 = smul.addr %s175, 144
          %s177 = scalar_lea.vmem [#allocation2], %s176
          %s178 = smul.u32 4, %s18
          %s179 = smul.addr %s17, 72
          %s180 = sadd.s32 %s178, %s179
          %s181 = smul.addr %s180, 4
          %s182 = scalar_lea.vmem %s0, %s181
          // Predicated region
          $region29: #{depth_block_forward.10} parent=27 // pred_check
            _
          $region30: #{depth_block_forward.10} parent=27 // pred_check_branch
            %184 = sbr.rel (0) target = $region32
          $region31: #{depth_block_forward.10} parent=27 // pred_region
            // Predicated region
            $region33: #{depth_block_forward.10} parent=31 // pred_check
              _
            $region34: #{depth_block_forward.10} parent=31 // pred_check_branch
              %186 = sbr.rel (0) target = $region36
            $region35: #{depth_block_forward.10} parent=31 // pred_region
              loop: start=0, step=1, limit=1
              $region37: #{depth_block_forward.10} parent=35 // loop_pre_header
                _
              $region38: #{depth_block_forward.10} parent=35 // loop_header
                %s188 = sphi 0, %s192
                %p189 = scmp.ge.s32.totalorder %s188, 1
                %s193 = sphi %s182, %s182
                %s194 = sphi %s177, %s177
              $region39: #{depth_block_forward.10} parent=35 // loop_header_branch
                %191 = sbr.rel (%p189) target = $region43
              $region40: #{depth_block_forward.10} parent=35 // loop_body
                %v195 = vld [vmem:[%s193] sm:$0xff]
                %196 = vst [vmem:[%s194] sm:$0xff] %v195
                %v197 = vld [vmem:[%s193 + $0x8] sm:$0xff]
                %198 = vst [vmem:[%s194 + $0x8] sm:$0xff] %v197
                %v199 = vld [vmem:[%s193 + $0x20] sm:$0xff]
                %200 = vst [vmem:[%s194 + $0x10] sm:$0xff] %v199
                %v201 = vld [vmem:[%s193 + $0x28] sm:$0xff]
                %202 = vst [vmem:[%s194 + $0x18] sm:$0xff] %v201
                %v203 = vld [vmem:[%s193 + $0x40] sm:$0xff]
                %204 = vst [vmem:[%s194 + $0x20] sm:$0xff] %v203
                %v205 = vld [vmem:[%s193 + $0x48] sm:$0xff]
                %206 = vst [vmem:[%s194 + $0x28] sm:$0xff] %v205
                %v207 = vld [vmem:[%s193 + $0x60] sm:$0xff]
                %208 = vst [vmem:[%s194 + $0x30] sm:$0xff] %v207
                %v209 = vld [vmem:[%s193 + $0x68] sm:$0xff]
                %210 = vst [vmem:[%s194 + $0x38] sm:$0xff] %v209
                %v211 = vld [vmem:[%s193 + $0x80] sm:$0xff]
                %212 = vst [vmem:[%s194 + $0x40] sm:$0xff] %v211
                %v213 = vld [vmem:[%s193 + $0x88] sm:$0xff]
                %214 = vst [vmem:[%s194 + $0x48] sm:$0xff] %v213
                %v215 = vld [vmem:[%s193 + $0xa0] sm:$0xff]
                %216 = vst [vmem:[%s194 + $0x50] sm:$0xff] %v215
                %v217 = vld [vmem:[%s193 + $0xa8] sm:$0xff]
                %218 = vst [vmem:[%s194 + $0x58] sm:$0xff] %v217
                %v219 = vld [vmem:[%s193 + $0xc0] sm:$0xff]
                %220 = vst [vmem:[%s194 + $0x60] sm:$0xff] %v219
                %v221 = vld [vmem:[%s193 + $0xc8] sm:$0xff]
                %222 = vst [vmem:[%s194 + $0x68] sm:$0xff] %v221
                %v223 = vld [vmem:[%s193 + $0xe0] sm:$0xff]
                %224 = vst [vmem:[%s194 + $0x70] sm:$0xff] %v223
                %v225 = vld [vmem:[%s193 + $0xe8] sm:$0xff]
                %226 = vst [vmem:[%s194 + $0x78] sm:$0xff] %v225
                %v227 = vld [vmem:[%s193 + $0x100] sm:$0xff]
                %228 = vst [vmem:[%s194 + $0x80] sm:$0xff] %v227
                %v229 = vld [vmem:[%s193 + $0x108] sm:$0xff]
                %230 = vst [vmem:[%s194 + $0x88] sm:$0xff] %v229
              $region41: #{depth_block_forward.10} parent=35 // loop_footer
                %s192 = sadd.s32 1, %s188
              $region42: #{depth_block_forward.10} parent=35 // loop_footer_branch
                %187 = sbr.rel target = $region38
              $region43: #{depth_block_forward.10} parent=35 // loop_exit
                _
            $region36: #{depth_block_forward.10} parent=31 // pred_fallthru
              _
            // Predicated region
            $region44: #{depth_block_forward.10} parent=31 // pred_check
              _
            $region45: #{depth_block_forward.10} parent=31 // pred_check_branch
              %232 = sbr.rel target = $region47
            $region46: #{depth_block_forward.10} parent=31 // pred_region
              _
            $region47: #{depth_block_forward.10} parent=31 // pred_fallthru
              _
          $region32: #{depth_block_forward.10} parent=27 // pred_fallthru
            _
          %233 = vnop
        $region28: #{depth_block_forward.10} parent=23 // pred_fallthru
          _
        // Predicated region
        $region48: #{depth_block_forward.10} parent=23 // pred_check
          %p234 = pneg %p70
        $region49: #{depth_block_forward.10} parent=23 // pred_check_branch
          %236 = sbr.rel (%p234) target = $region51
        $region50: #{depth_block_forward.10} parent=23 // pred_region
          %p237 = scmp.lt.s32.totalorder %s17, 1
          %s238 = scalar_select %p237, %s17, 1
          %s239 = scalar_lea.vmem %s1, %s238
        $region51: #{depth_block_forward.10} parent=23 // pred_fallthru
          _
      $region24: #{depth_block_forward.10} parent=5 // pred_fallthru
        _
      %p240 = scmp.le.s32.totalorder 1, %s10
      %p241 = scmp.lt.s32.totalorder %s10, 5
      %p242 = pnand %p240, %p241
      %p243 = pneg %p242
      // Predicated region
      $region52: #{depth_block_forward.10} parent=5 // pred_check
        _
      $region53: #{depth_block_forward.10} parent=5 // pred_check_branch
        %245 = sbr.rel (%p242) target = $region55
      $region54: #{depth_block_forward.10} parent=5 // pred_region
        %s246 = ssub.s32 %s10, 1
        %s247 = sand.u32 %s37, 1
        %s248 = sand.u32 %s37, 1
        %s249 = smul.addr %s248, 144
        %s250 = scalar_lea.vmem [#allocation2], %s249
        // Predicated region
        $region56: #{depth_block_forward.10} parent=54 // pred_check
          %p251 = pneg %p50
        $region57: #{depth_block_forward.10} parent=54 // pred_check_branch
          %253 = sbr.rel (%p251) target = $region59
        $region58: #{depth_block_forward.10} parent=54 // pred_region
          _
        $region59: #{depth_block_forward.10} parent=54 // pred_fallthru
          _
        %s254 = sand.u32 %s37, 1
        %s255 = sand.u32 %s37, 1
        %s256 = smul.addr %s255, 144
        %s257 = scalar_lea.vmem [#allocation2], %s256
        %p258 = pneg %p50
        %p259 = pneg %p47
        %p260 = scmp.lt.s32.totalorder %s19, 1
        %s261 = scalar_select %p260, %s19, 1
        %s262 = scalar_lea.vmem %s1, %s261
        %p263 = pneg %p76
        %p264 = pneg %p73
        %p265 = pneg %p97
        %p266 = pneg %p94
        %p267 = pneg %p118
        %p268 = pneg %p115
        %p269 = pneg %p146
        %p270 = pneg %p143
        %s271 = smul.u32 4, %s20
        %p272 = scmp.lt.s32.totalorder %s19, 1
        %s273 = scalar_select %p272, %s19, 1
        %p274 = scmp.lt.s32.totalorder %s271, 7
        %s275 = scalar_select %p274, %s271, 7
        %s276 = smul.addr %s273, 8
        %s277 = sadd.s32 %s275, %s276
        %s278 = smul.addr %s277, 2
        %s279 = scalar_lea.vmem %s4, %s278
        %s280 = smul.u32 4, %s20
        %p281 = scmp.lt.s32.totalorder %s19, 1
        %s282 = scalar_select %p281, %s19, 1
        %s283 = scalar_lea.vmem %s1, %s282
        %s284 = smul.u32 4, %s20
        %p285 = scmp.lt.s32.totalorder %s19, 1
        %s286 = scalar_select %p285, %s19, 1
        %p287 = scmp.lt.s32.totalorder %s284, 7
        %s288 = scalar_select %p287, %s284, 7
        %s289 = smul.addr %s286, 8
        %s290 = sadd.s32 %s288, %s289
        %s291 = smul.addr %s290, 2
        %s292 = scalar_lea.vmem %s4, %s291
        %s293 = smul.u32 4, %s20
        %v295 = vld [vmem:[%s2] sm:$0x1]
        %v296 = vunpack.c.l.bf16 %v295
        %v297 = vld [vmem:[%s283] sm:$0x1]
        %v299 = vperm.slane %v297, 0
        %v301 = vmul.f32 %v296, %v299
        %v302 = vpack.c.bf16 %v301, %v301
        %v303 = vld [vmem:[%s250] sm:$0xff]
        %v304 = vld [vmem:[%s250 + $0x8] sm:$0xff]
        %v305 = vld [vmem:[%s250 + $0x10] sm:$0xff]
        %v306 = vld [vmem:[%s250 + $0x18] sm:$0xff]
        %v307 = vld [vmem:[%s250 + $0x20] sm:$0xff]
        %v308 = vld [vmem:[%s250 + $0x28] sm:$0xff]
        %v309 = vld [vmem:[%s250 + $0x30] sm:$0xff]
        %v310 = vld [vmem:[%s250 + $0x38] sm:$0xff]
        %v311 = vld [vmem:[%s250 + $0x40] sm:$0xff]
        %v312 = vld [vmem:[%s250 + $0x48] sm:$0xff]
        %v313 = vld [vmem:[%s250 + $0x50] sm:$0xff]
        %v314 = vld [vmem:[%s250 + $0x58] sm:$0xff]
        %v315 = vld [vmem:[%s250 + $0x60] sm:$0xff]
        %v316 = vld [vmem:[%s250 + $0x68] sm:$0xff]
        %v317 = vld [vmem:[%s250 + $0x70] sm:$0xff]
        %v318 = vld [vmem:[%s250 + $0x78] sm:$0xff]
        %v319 = vld [vmem:[%s250 + $0x80] sm:$0xff]
        %v320 = vld [vmem:[%s250 + $0x88] sm:$0xff]
        %v321 = vld [vmem:[%s3] sm:$0x3]
        %323 = vset.pattern.permute.xlu0 0
        %324 = vperm.xlu0 %323, %v321
        %v325 = vpop.permute.xlu0 %324
        %v345 = vunpack.c.l.b16 %v303
        %v346 = vunpack.c.h.b16 %v303
        %v347 = vunpack.c.l.b16 %v304
        %v348 = vunpack.c.h.b16 %v304
        %v349 = vunpack.c.l.b16 %v305
        %v350 = vunpack.c.h.b16 %v305
        %v351 = vunpack.c.l.b16 %v306
        %v352 = vunpack.c.h.b16 %v306
        %v353 = vunpack.c.l.b16 %v307
        %v354 = vunpack.c.h.b16 %v307
        %v355 = vunpack.c.l.b16 %v308
        %v356 = vunpack.c.h.b16 %v308
        %v357 = vunpack.c.l.b16 %v309
        %v358 = vunpack.c.h.b16 %v309
        %v359 = vunpack.c.l.b16 %v310
        %v360 = vunpack.c.h.b16 %v310
        %v361 = vunpack.c.l.b16 %v311
        %v362 = vunpack.c.h.b16 %v311
        %v363 = vunpack.c.l.b16 %v312
        %v364 = vunpack.c.h.b16 %v312
        %v365 = vunpack.c.l.b16 %v313
        %v366 = vunpack.c.h.b16 %v313
        %v367 = vunpack.c.l.b16 %v314
        %v368 = vunpack.c.h.b16 %v314
        %v369 = vunpack.c.l.b16 %v315
        %v370 = vunpack.c.h.b16 %v315
        %v371 = vunpack.c.l.b16 %v316
        %v372 = vunpack.c.h.b16 %v316
        %v373 = vunpack.c.l.b16 %v317
        %v374 = vunpack.c.h.b16 %v317
        %v375 = vunpack.c.l.b16 %v318
        %v376 = vunpack.c.h.b16 %v318
        %v377 = vunpack.c.l.b16 %v319
        %v378 = vunpack.c.h.b16 %v319
        %v379 = vunpack.c.l.b16 %v320
        %v380 = vunpack.c.h.b16 %v320
        %v381 = vpack.c.b16 %v349, %v345
        %v382 = vpack.c.b16 %v350, %v346
        %v383 = vpack.c.b16 %v351, %v347
        %v384 = vpack.c.b16 %v352, %v348
        %v385 = vpack.c.b16 %v357, %v353
        %v386 = vpack.c.b16 %v358, %v354
        %v387 = vpack.c.b16 %v359, %v355
        %v388 = vpack.c.b16 %v360, %v356
        %v389 = vpack.c.b16 %v365, %v361
        %v390 = vpack.c.b16 %v366, %v362
        %v391 = vpack.c.b16 %v367, %v363
        %v392 = vpack.c.b16 %v368, %v364
        %v393 = vpack.c.b16 %v373, %v369
        %v394 = vpack.c.b16 %v374, %v370
        %v395 = vpack.c.b16 %v375, %v371
        %v396 = vpack.c.b16 %v376, %v372
        %v397 = vpack.c.b16 %v377, %v377
        %v398 = vpack.c.b16 %v378, %v378
        %v399 = vpack.c.b16 %v379, %v379
        %v400 = vpack.c.b16 %v380, %v380
        %vm417 = vcmask 588800
        %v419 = vsel %vm417, %v302, 0
        %vm421 = vcmask 1043456
        %v423 = vsel %vm421, %v397, 0
        %v426 = vsel %vm421, %v398, 0
        %v429 = vsel %vm421, %v399, 0
        %v432 = vsel %vm421, %v400, 0
        %434 = vmatpush.bf16.msra.mxu0 0
        %435 = vmatpush.bf16.msra.mxu0 0
        %436 = vmatpush.bf16.msra.mxu0 0
        %437 = vmatpush.bf16.msra.mxu0 %v423
        %438 = vmatpush.bf16.msra.mxu0 %v393
        %439 = vmatpush.bf16.msra.mxu0 %v389
        %440 = vmatpush.bf16.msra.mxu0 %v385
        %441 = vmatpush.bf16.msra.mxu0 %v381
        %442 = vmatmul.bf16.gmra.mxu0 %v419
        %v443 = vpop.f32.mrf.mxu0
        %v444 = vadd.f32 %v325, %v443
        %v445 = vpop.f32.mrf.mxu0
        %446 = vdwg.mxu0
        %447 = vmatpush.bf16.msra.mxu0 0
        %448 = vmatpush.bf16.msra.mxu0 0
        %449 = vmatpush.bf16.msra.mxu0 0
        %450 = vmatpush.bf16.msra.mxu0 %v426
        %451 = vmatpush.bf16.msra.mxu0 %v394
        %452 = vmatpush.bf16.msra.mxu0 %v390
        %453 = vmatpush.bf16.msra.mxu0 %v386
        %454 = vmatpush.bf16.msra.mxu0 %v382
        %455 = vmatmul.bf16.gmra.mxu0 %v419
        %v456 = vpop.f32.mrf.mxu0
        %v457 = vadd.f32 %v325, %v456
        %v458 = vpop.f32.mrf.mxu0
        %459 = vdwg.mxu0
        %460 = vmatpush.bf16.msra.mxu0 0
        %461 = vmatpush.bf16.msra.mxu0 0
        %462 = vmatpush.bf16.msra.mxu0 0
        %463 = vmatpush.bf16.msra.mxu0 %v429
        %464 = vmatpush.bf16.msra.mxu0 %v395
        %465 = vmatpush.bf16.msra.mxu0 %v391
        %466 = vmatpush.bf16.msra.mxu0 %v387
        %467 = vmatpush.bf16.msra.mxu0 %v383
        %468 = vmatmul.bf16.gmra.mxu0 %v419
        %v469 = vpop.f32.mrf.mxu0
        %v470 = vadd.f32 %v325, %v469
        %v471 = vpop.f32.mrf.mxu0
        %472 = vdwg.mxu0
        %473 = vmatpush.bf16.msra.mxu0 0
        %474 = vmatpush.bf16.msra.mxu0 0
        %475 = vmatpush.bf16.msra.mxu0 0
        %476 = vmatpush.bf16.msra.mxu0 %v432
        %477 = vmatpush.bf16.msra.mxu0 %v396
        %478 = vmatpush.bf16.msra.mxu0 %v392
        %479 = vmatpush.bf16.msra.mxu0 %v388
        %480 = vmatpush.bf16.msra.mxu0 %v384
        %481 = vmatmul.bf16.gmra.mxu0 %v419
        %v482 = vpop.f32.mrf.mxu0
        %v483 = vadd.f32 %v325, %v482
        %v484 = vpop.f32.mrf.mxu0
        %485 = vdwg.mxu0
        %vm486 = vcmp.ge.f32.partialorder %v444, 0.0
        %vm487 = vcmp.ge.f32.partialorder %v457, 0.0
        %vm488 = vcmp.ge.f32.partialorder %v470, 0.0
        %vm489 = vcmp.ge.f32.partialorder %v483, 0.0
        %v490 = vmul.f32 %v444, 0.02
        %v491 = vmul.f32 %v457, 0.02
        %v492 = vmul.f32 %v470, 0.02
        %v493 = vmul.f32 %v483, 0.02
        %v494 = vsel %vm486, %v444, %v490
        %v495 = vsel %vm487, %v457, %v491
        %v496 = vsel %vm488, %v470, %v492
        %v497 = vsel %vm489, %v483, %v493
        %s498 = scalar_lea.vmem %s3, 2
        %v499 = vld [vmem:[%s498] sm:$0x3]
        %501 = vset.pattern.permute.xlu0 0
        %502 = vperm.xlu0 %501, %v499
        %v503 = vpop.permute.xlu0 %502
        %v505 = vmul.f32 %v494, %v503
        %v506 = vmul.f32 %v495, %v503
        %v507 = vmul.f32 %v496, %v503
        %v508 = vmul.f32 %v497, %v503
        %s509 = scalar_lea.vmem %s3, 4
        %v510 = vld [vmem:[%s509] sm:$0x3]
        %512 = vset.pattern.permute.xlu0 0
        %513 = vperm.xlu0 %512, %v510
        %v514 = vpop.permute.xlu0 %513
        %v516 = vadd.f32 %v505, %v514
        %v517 = vadd.f32 %v506, %v514
        %v518 = vadd.f32 %v507, %v514
        %v519 = vadd.f32 %v508, %v514
        %v524 = vrot.slane %v517, 6
        %v525 = vrot.slane %v518, 4
        %v526 = vrot.slane %v519, 2
        %vm527 = vcmask 1041408
        %v528 = vsel %vm527, %v516, %v524
        %vm529 = vcmask 1045508
        %v530 = vsel %vm529, %v525, %v526
        %v531 = vsel %vm421, %v528, %v530
        %533 = vst [vmem:[%s292] sm:$0xff] %v531
        %s534 = smul.u32 4, %s20
        %p535 = scmp.lt.s32.totalorder %s19, 1
        %s536 = scalar_select %p535, %s19, 1
        %p537 = scmp.lt.s32.totalorder %s534, 7
        %s538 = scalar_select %p537, %s534, 7
        %s539 = smul.addr %s536, 8
        %s540 = sadd.s32 %s538, %s539
        %s541 = smul.addr %s540, 2
        %s542 = scalar_lea.vmem %s4, %s541
        // Predicated region
        $region60: #{depth_block_forward.10} parent=54 // pred_check
          %p543 = pneg %p143
        $region61: #{depth_block_forward.10} parent=54 // pred_check_branch
          %545 = sbr.rel (%p543) target = $region63
        $region62: #{depth_block_forward.10} parent=54 // pred_region
          %s546 = smul.u32 4, %s20
        $region63: #{depth_block_forward.10} parent=54 // pred_fallthru
          _
      $region55: #{depth_block_forward.10} parent=5 // pred_fallthru
        _
      %p547 = scmp.le.s32.totalorder 2, %s10
      // Predicated region
      $region64: #{depth_block_forward.10} parent=5 // pred_check
        %p548 = pneg %p547
      $region65: #{depth_block_forward.10} parent=5 // pred_check_branch
        %550 = sbr.rel (%p548) target = $region67
      $region66: #{depth_block_forward.10} parent=5 // pred_region
        %s551 = ssub.s32 %s10, 2
        // Predicated region
        $region68: #{depth_block_forward.10} parent=66 // pred_check
          %p552 = pneg %p149
        $region69: #{depth_block_forward.10} parent=66 // pred_check_branch
          %554 = sbr.rel (%p552) target = $region71
        $region70: #{depth_block_forward.10} parent=66 // pred_region
          %s555 = smul.u32 4, %s22
          %p556 = scmp.lt.s32.totalorder %s21, 1
          %s557 = scalar_select %p556, %s21, 1
          %p558 = scmp.lt.s32.totalorder %s555, 7
          %s559 = scalar_select %p558, %s555, 7
          %s560 = smul.addr %s557, 8
          %s561 = sadd.s32 %s559, %s560
          %s562 = smul.addr %s561, 2
          %s563 = scalar_lea.vmem %s4, %s562
        $region71: #{depth_block_forward.10} parent=66 // pred_fallthru
          _
      $region67: #{depth_block_forward.10} parent=5 // pred_fallthru
        _
    $region6: #{depth_block_forward.10} parent=1 // loop_footer
      %s14 = sadd.s32 1, %s10
    $region7: #{depth_block_forward.10} parent=1 // loop_footer_branch
      %9 = sbr.rel target = $region3
    $region8: #{depth_block_forward.10} parent=1 // loop_exit
      _

// kernel: depth_block_forward.8
$region0: #{depth_block_forward.8}
  #allocation0 [shape = 'u32[]', space=smem, size = 0x4, offset = 0x4, fixed_abs, tag = 'smem constant byte address 0x4 - core index']
  #allocation1 [shape = 'u32[72,128]{1,0:T(1,128)}', space=vmem, size = 0x9000, scoped, tag = 'internal scratch']
  %s0 = inlined_call_operand.vmem [shape: bf16[2,72,1024], index: 0, kind: input, shape index: {}]
  %s1 = inlined_call_operand.vmem [shape: bf16[4,72], index: 1, kind: input, shape index: {}]
  %s2 = inlined_call_operand.vmem [shape: f32[3,4,1], index: 2, kind: input, shape index: {}]
  %s3 = inlined_call_operand.vmem [shape: f32[2,4,1024], index: 3, kind: output, shape index: {}]
  %s4 = sld [smem:[#allocation0]]
  $region68: #{depth_block_forward.8} parent=0
    _
  %s6 = ssub.s32 1, %s4
  %s7 = scalar_select 0, %s6, %s4
  $region1: #{depth_block_forward.8} parent=0
    #allocation2 [shape = 'u8[147456]{0}', space=vmem, size = 0x24000, scoped, tag = 'input window, operand 0']
    loop: start=0, step=1, limit=6
    $region2: #{depth_block_forward.8} parent=1 // loop_pre_header
      _
    $region3: #{depth_block_forward.8} parent=1 // loop_header
      %s9 = sphi 0, %s13
      %p10 = scmp.ge.s32.totalorder %s9, 6
      %s16 = sphi 0, %s28
      %s17 = sphi 0, %s24
      %s18 = sphi 0, %s16
      %s19 = sphi 0, %s17
      %s20 = sphi 0, %s18
      %s21 = sphi 0, %s19
      %s33 = sphi 0, %s35
      %s36 = sphi 0, %s33
      %s37 = sphi 0, %s36
      %s53 = sphi 0, %s37
      %s57 = sphi 0, %s57
      %s59 = sphi 0, %s57
      %s60 = sphi 0, %s59
      %s74 = sphi 0, %s60
      %s78 = sphi 0, %s78
      %s80 = sphi 0, %s78
      %s81 = sphi 0, %s80
      %s95 = sphi 0, %s81
      %s103 = sphi 0, %s105
      %s106 = sphi 0, %s103
      %s107 = sphi 0, %s106
      %s123 = sphi 0, %s107
    $region4: #{depth_block_forward.8} parent=1 // loop_header_branch
      %12 = sbr.rel (%p10) target = $region8
    $region5: #{depth_block_forward.8} parent=1 // loop_body
      %s14 = ssub.s32 %s9, 1
      %s15 = ssub.s32 %s9, 2
      %s22 = sadd.s32 1, %s17
      %p23 = scmp.ge.s32.totalorder %s22, 2
      %s24 = scalar_select %p23, 0, %s22
      %s25 = sadd.s32 1, %s16
      %s26 = scalar_select %p23, %s25, %s16
      %p27 = scmp.ge.s32.totalorder %s26, 2
      %s28 = scalar_select %p27, 0, %s26
      %s29 = ssub.s32 %s16, %s28
      %s30 = ssub.s32 %s17, %s24
      %s31 = sor.u32 %s29, %s30
      %p32 = scmp.eq.s32.totalorder %s31, 0
      %s34 = sadd.s32 %s33, 1
      %s35 = scalar_select %p32, %s33, %s34
      %p38 = pneg %p32
      %p39 = scmp.eq.s32.totalorder %s9, 3
      %p40 = por %p38, %p39
      %p41 = scmp.ne.s32.totalorder %s33, %s36
      %p42 = scmp.eq.s32.totalorder %s9, 0
      %p43 = por %p41, %p42
      %p44 = scmp.ne.s32.totalorder %s33, %s36
      %p45 = scmp.eq.s32.totalorder %s14, 3
      %p46 = por %p44, %p45
      %p47 = scmp.ne.s32.totalorder %s36, %s37
      %p48 = scmp.eq.s32.totalorder %s14, 0
      %p49 = por %p47, %p48
      %p50 = scmp.ne.s32.totalorder %s36, %s37
      %p51 = scmp.eq.s32.totalorder %s15, 3
      %p52 = por %p50, %p51
      %p54 = scmp.ne.s32.totalorder %s37, %s53
      %p55 = scmp.eq.s32.totalorder %s15, 0
      %p56 = por %p54, %p55
      %s58 = sadd.s32 %s57, 1
      %p61 = scmp.eq.s32.totalorder %s9, 3
      %p62 = scmp.ne.s32.totalorder %s57, %s59
      %p63 = scmp.eq.s32.totalorder %s9, 0
      %p64 = por %p62, %p63
      %p65 = scmp.ne.s32.totalorder %s57, %s59
      %p66 = scmp.eq.s32.totalorder %s14, 3
      %p67 = por %p65, %p66
      %p68 = scmp.ne.s32.totalorder %s59, %s60
      %p69 = scmp.eq.s32.totalorder %s14, 0
      %p70 = por %p68, %p69
      %p71 = scmp.ne.s32.totalorder %s59, %s60
      %p72 = scmp.eq.s32.totalorder %s15, 3
      %p73 = por %p71, %p72
      %p75 = scmp.ne.s32.totalorder %s60, %s74
      %p76 = scmp.eq.s32.totalorder %s15, 0
      %p77 = por %p75, %p76
      %s79 = sadd.s32 %s78, 1
      %p82 = scmp.eq.s32.totalorder %s9, 3
      %p83 = scmp.ne.s32.totalorder %s78, %s80
      %p84 = scmp.eq.s32.totalorder %s9, 0
      %p85 = por %p83, %p84
      %p86 = scmp.ne.s32.totalorder %s78, %s80
      %p87 = scmp.eq.s32.totalorder %s14, 3
      %p88 = por %p86, %p87
      %p89 = scmp.ne.s32.totalorder %s80, %s81
      %p90 = scmp.eq.s32.totalorder %s14, 0
      %p91 = por %p89, %p90
      %p92 = scmp.ne.s32.totalorder %s80, %s81
      %p93 = scmp.eq.s32.totalorder %s15, 3
      %p94 = por %p92, %p93
      %p96 = scmp.ne.s32.totalorder %s81, %s95
      %p97 = scmp.eq.s32.totalorder %s15, 0
      %p98 = por %p96, %p97
      %s99 = ssub.s32 %s16, %s28
      %s100 = ssub.s32 %s17, %s24
      %s101 = sor.u32 %s99, %s100
      %p102 = scmp.eq.s32.totalorder %s101, 0
      %s104 = sadd.s32 %s103, 1
      %s105 = scalar_select %p102, %s103, %s104
      %p108 = pneg %p102
      %p109 = scmp.eq.s32.totalorder %s9, 3
      %p110 = por %p108, %p109
      %p111 = scmp.ne.s32.totalorder %s103, %s106
      %p112 = scmp.eq.s32.totalorder %s9, 0
      %p113 = por %p111, %p112
      %p114 = scmp.ne.s32.totalorder %s103, %s106
      %p115 = scmp.eq.s32.totalorder %s14, 3
      %p116 = por %p114, %p115
      %p117 = scmp.ne.s32.totalorder %s106, %s107
      %p118 = scmp.eq.s32.totalorder %s14, 0
      %p119 = por %p117, %p118
      %p120 = scmp.ne.s32.totalorder %s106, %s107
      %p121 = scmp.eq.s32.totalorder %s15, 3
      %p122 = por %p120, %p121
      %p124 = scmp.ne.s32.totalorder %s107, %s123
      %p125 = scmp.eq.s32.totalorder %s15, 0
      %p126 = por %p124, %p125
      %p127 = scmp.le.s32.totalorder 1, %s9
      %p128 = scmp.lt.s32.totalorder %s9, 5
      %p129 = pnand %p127, %p128
      %p130 = pneg %p129
      // Predicated region
      $region9: #{depth_block_forward.8} parent=5 // pred_check
        _
      $region10: #{depth_block_forward.8} parent=5 // pred_check_branch
        %132 = sbr.rel (%p129) target = $region12
      $region11: #{depth_block_forward.8} parent=5 // pred_region
        %s133 = ssub.s32 %s9, 1
        // Predicated region
        $region13: #{depth_block_forward.8} parent=11 // pred_check
          %p134 = pneg %p70
        $region14: #{depth_block_forward.8} parent=11 // pred_check_branch
          %136 = sbr.rel (%p134) target = $region16
        $region15: #{depth_block_forward.8} parent=11 // pred_region
          _
        $region16: #{depth_block_forward.8} parent=11 // pred_fallthru
          _
        // Predicated region
        $region17: #{depth_block_forward.8} parent=11 // pred_check
          %p137 = pneg %p91
        $region18: #{depth_block_forward.8} parent=11 // pred_check_branch
          %139 = sbr.rel (%p137) target = $region20
        $region19: #{depth_block_forward.8} parent=11 // pred_region
          _
        $region20: #{depth_block_forward.8} parent=11 // pred_fallthru
          _
      $region12: #{depth_block_forward.8} parent=5 // pred_fallthru
        _
      %p140 = scmp.lt.s32.totalorder %s9, 4
      // Predicated region
      $region21: #{depth_block_forward.8} parent=5 // pred_check
        %p141 = pneg %p140
      $region22: #{depth_block_forward.8} parent=5 // pred_check_branch
        %143 = sbr.rel (%p141) target = $region24
      $region23: #{depth_block_forward.8} parent=5 // pred_region
        // Predicated region
        $region25: #{depth_block_forward.8} parent=23 // pred_check
          %p144 = pneg %p43
        $region26: #{depth_block_forward.8} parent=23 // pred_check_branch
          %146 = sbr.rel (%p144) target = $region28
        $region27: #{depth_block_forward.8} parent=23 // pred_region
          %s147 = sand.u32 %s33, 1
          %s148 = sand.u32 %s33, 1
          %s149 = smul.addr %s148, 144
          %s150 = scalar_lea.vmem [#allocation2], %s149
          %s151 = smul.u32 4, %s17
          %s152 = smul.addr %s16, 72
          %s153 = sadd.s32 %s151, %s152
          %s154 = smul.addr %s153, 4
          %s155 = scalar_lea.vmem %s0, %s154
          // Predicated region
          $region29: #{depth_block_forward.8} parent=27 // pred_check
            _
          $region30: #{depth_block_forward.8} parent=27 // pred_check_branch
            %157 = sbr.rel (0) target = $region32
          $region31: #{depth_block_forward.8} parent=27 // pred_region
            // Predicated region
            $region33: #{depth_block_forward.8} parent=31 // pred_check
              _
            $region34: #{depth_block_forward.8} parent=31 // pred_check_branch
              %159 = sbr.rel (0) target = $region36
            $region35: #{depth_block_forward.8} parent=31 // pred_region
              loop: start=0, step=1, limit=1
              $region37: #{depth_block_forward.8} parent=35 // loop_pre_header
                _
              $region38: #{depth_block_forward.8} parent=35 // loop_header
                %s161 = sphi 0, %s165
                %p162 = scmp.ge.s32.totalorder %s161, 1
                %s166 = sphi %s155, %s155
                %s167 = sphi %s150, %s150
              $region39: #{depth_block_forward.8} parent=35 // loop_header_branch
                %164 = sbr.rel (%p162) target = $region43
              $region40: #{depth_block_forward.8} parent=35 // loop_body
                %v168 = vld [vmem:[%s166] sm:$0xff]
                %169 = vst [vmem:[%s167] sm:$0xff] %v168
                %v170 = vld [vmem:[%s166 + $0x8] sm:$0xff]
                %171 = vst [vmem:[%s167 + $0x8] sm:$0xff] %v170
                %v172 = vld [vmem:[%s166 + $0x20] sm:$0xff]
                %173 = vst [vmem:[%s167 + $0x10] sm:$0xff] %v172
                %v174 = vld [vmem:[%s166 + $0x28] sm:$0xff]
                %175 = vst [vmem:[%s167 + $0x18] sm:$0xff] %v174
                %v176 = vld [vmem:[%s166 + $0x40] sm:$0xff]
                %177 = vst [vmem:[%s167 + $0x20] sm:$0xff] %v176
                %v178 = vld [vmem:[%s166 + $0x48] sm:$0xff]
                %179 = vst [vmem:[%s167 + $0x28] sm:$0xff] %v178
                %v180 = vld [vmem:[%s166 + $0x60] sm:$0xff]
                %181 = vst [vmem:[%s167 + $0x30] sm:$0xff] %v180
                %v182 = vld [vmem:[%s166 + $0x68] sm:$0xff]
                %183 = vst [vmem:[%s167 + $0x38] sm:$0xff] %v182
                %v184 = vld [vmem:[%s166 + $0x80] sm:$0xff]
                %185 = vst [vmem:[%s167 + $0x40] sm:$0xff] %v184
                %v186 = vld [vmem:[%s166 + $0x88] sm:$0xff]
                %187 = vst [vmem:[%s167 + $0x48] sm:$0xff] %v186
                %v188 = vld [vmem:[%s166 + $0xa0] sm:$0xff]
                %189 = vst [vmem:[%s167 + $0x50] sm:$0xff] %v188
                %v190 = vld [vmem:[%s166 + $0xa8] sm:$0xff]
                %191 = vst [vmem:[%s167 + $0x58] sm:$0xff] %v190
                %v192 = vld [vmem:[%s166 + $0xc0] sm:$0xff]
                %193 = vst [vmem:[%s167 + $0x60] sm:$0xff] %v192
                %v194 = vld [vmem:[%s166 + $0xc8] sm:$0xff]
                %195 = vst [vmem:[%s167 + $0x68] sm:$0xff] %v194
                %v196 = vld [vmem:[%s166 + $0xe0] sm:$0xff]
                %197 = vst [vmem:[%s167 + $0x70] sm:$0xff] %v196
                %v198 = vld [vmem:[%s166 + $0xe8] sm:$0xff]
                %199 = vst [vmem:[%s167 + $0x78] sm:$0xff] %v198
                %v200 = vld [vmem:[%s166 + $0x100] sm:$0xff]
                %201 = vst [vmem:[%s167 + $0x80] sm:$0xff] %v200
                %v202 = vld [vmem:[%s166 + $0x108] sm:$0xff]
                %203 = vst [vmem:[%s167 + $0x88] sm:$0xff] %v202
              $region41: #{depth_block_forward.8} parent=35 // loop_footer
                %s165 = sadd.s32 1, %s161
              $region42: #{depth_block_forward.8} parent=35 // loop_footer_branch
                %160 = sbr.rel target = $region38
              $region43: #{depth_block_forward.8} parent=35 // loop_exit
                _
            $region36: #{depth_block_forward.8} parent=31 // pred_fallthru
              _
            // Predicated region
            $region44: #{depth_block_forward.8} parent=31 // pred_check
              _
            $region45: #{depth_block_forward.8} parent=31 // pred_check_branch
              %205 = sbr.rel target = $region47
            $region46: #{depth_block_forward.8} parent=31 // pred_region
              _
            $region47: #{depth_block_forward.8} parent=31 // pred_fallthru
              _
          $region32: #{depth_block_forward.8} parent=27 // pred_fallthru
            _
          %206 = vnop
        $region28: #{depth_block_forward.8} parent=23 // pred_fallthru
          _
      $region24: #{depth_block_forward.8} parent=5 // pred_fallthru
        _
      %p207 = scmp.le.s32.totalorder 1, %s9
      %p208 = scmp.lt.s32.totalorder %s9, 5
      %p209 = pnand %p207, %p208
      %p210 = pneg %p209
      // Predicated region
      $region48: #{depth_block_forward.8} parent=5 // pred_check
        _
      $region49: #{depth_block_forward.8} parent=5 // pred_check_branch
        %212 = sbr.rel (%p209) target = $region51
      $region50: #{depth_block_forward.8} parent=5 // pred_region
        %s213 = ssub.s32 %s9, 1
        %s214 = sand.u32 %s36, 1
        %s215 = sand.u32 %s36, 1
        %s216 = smul.addr %s215, 144
        %s217 = scalar_lea.vmem [#allocation2], %s216
        // Predicated region
        $region52: #{depth_block_forward.8} parent=50 // pred_check
          %p218 = pneg %p49
        $region53: #{depth_block_forward.8} parent=50 // pred_check_branch
          %220 = sbr.rel (%p218) target = $region55
        $region54: #{depth_block_forward.8} parent=50 // pred_region
          _
        $region55: #{depth_block_forward.8} parent=50 // pred_fallthru
          _
        %s221 = sand.u32 %s36, 1
        %s222 = sand.u32 %s36, 1
        %s223 = smul.addr %s222, 144
        %s224 = scalar_lea.vmem [#allocation2], %s223
        %p225 = pneg %p49
        %p226 = pneg %p46
        %p227 = pneg %p70
        %p228 = pneg %p67
        %p229 = pneg %p91
        %p230 = pneg %p88
        %p231 = pneg %p119
        %p232 = pneg %p116
        %s233 = smul.u32 4, %s19
        %p234 = scmp.lt.s32.totalorder %s18, 1
        %s235 = scalar_select %p234, %s18, 1
        %p236 = scmp.lt.s32.totalorder %s233, 7
        %s237 = scalar_select %p236, %s233, 7
        %s238 = smul.addr %s235, 8
        %s239 = sadd.s32 %s237, %s238
        %s240 = smul.addr %s239, 4
        %s241 = scalar_lea.vmem %s3, %s240
        %s242 = smul.u32 4, %s19
        %s243 = smul.u32 4, %s19
        %p244 = scmp.lt.s32.totalorder %s18, 1
        %s245 = scalar_select %p244, %s18, 1
        %p246 = scmp.lt.s32.totalorder %s243, 7
        %s247 = scalar_select %p246, %s243, 7
        %s248 = smul.addr %s245, 8
        %s249 = sadd.s32 %s247, %s248
        %s250 = smul.addr %s249, 4
        %s251 = scalar_lea.vmem %s3, %s250
        %s252 = smul.u32 4, %s19
        %v254 = vld [vmem:[%s1] sm:$0x3]
        %v255 = vld [vmem:[%s217] sm:$0xff]
        %v256 = vld [vmem:[%s217 + $0x8] sm:$0xff]
        %v257 = vld [vmem:[%s217 + $0x10] sm:$0xff]
        %v258 = vld [vmem:[%s217 + $0x18] sm:$0xff]
        %v259 = vld [vmem:[%s217 + $0x20] sm:$0xff]
        %v260 = vld [vmem:[%s217 + $0x28] sm:$0xff]
        %v261 = vld [vmem:[%s217 + $0x30] sm:$0xff]
        %v262 = vld [vmem:[%s217 + $0x38] sm:$0xff]
        %v263 = vld [vmem:[%s217 + $0x40] sm:$0xff]
        %v264 = vld [vmem:[%s217 + $0x48] sm:$0xff]
        %v265 = vld [vmem:[%s217 + $0x50] sm:$0xff]
        %v266 = vld [vmem:[%s217 + $0x58] sm:$0xff]
        %v267 = vld [vmem:[%s217 + $0x60] sm:$0xff]
        %v268 = vld [vmem:[%s217 + $0x68] sm:$0xff]
        %v269 = vld [vmem:[%s217 + $0x70] sm:$0xff]
        %v270 = vld [vmem:[%s217 + $0x78] sm:$0xff]
        %v271 = vld [vmem:[%s217 + $0x80] sm:$0xff]
        %v272 = vld [vmem:[%s217 + $0x88] sm:$0xff]
        %v273 = vld [vmem:[%s2] sm:$0xf]
        %275 = vset.pattern.permute.xlu0 0
        %276 = vperm.xlu0 %275, %v273
        %v277 = vpop.permute.xlu0 %276
        %v297 = vunpack.c.l.b16 %v255
        %v298 = vunpack.c.h.b16 %v255
        %v299 = vunpack.c.l.b16 %v256
        %v300 = vunpack.c.h.b16 %v256
        %v301 = vunpack.c.l.b16 %v257
        %v302 = vunpack.c.h.b16 %v257
        %v303 = vunpack.c.l.b16 %v258
        %v304 = vunpack.c.h.b16 %v258
        %v305 = vunpack.c.l.b16 %v259
        %v306 = vunpack.c.h.b16 %v259
        %v307 = vunpack.c.l.b16 %v260
        %v308 = vunpack.c.h.b16 %v260
        %v309 = vunpack.c.l.b16 %v261
        %v310 = vunpack.c.h.b16 %v261
        %v311 = vunpack.c.l.b16 %v262
        %v312 = vunpack.c.h.b16 %v262
        %v313 = vunpack.c.l.b16 %v263
        %v314 = vunpack.c.h.b16 %v263
        %v315 = vunpack.c.l.b16 %v264
        %v316 = vunpack.c.h.b16 %v264
        %v317 = vunpack.c.l.b16 %v265
        %v318 = vunpack.c.h.b16 %v265
        %v319 = vunpack.c.l.b16 %v266
        %v320 = vunpack.c.h.b16 %v266
        %v321 = vunpack.c.l.b16 %v267
        %v322 = vunpack.c.h.b16 %v267
        %v323 = vunpack.c.l.b16 %v268
        %v324 = vunpack.c.h.b16 %v268
        %v325 = vunpack.c.l.b16 %v269
        %v326 = vunpack.c.h.b16 %v269
        %v327 = vunpack.c.l.b16 %v270
        %v328 = vunpack.c.h.b16 %v270
        %v329 = vunpack.c.l.b16 %v271
        %v330 = vunpack.c.h.b16 %v271
        %v331 = vunpack.c.l.b16 %v272
        %v332 = vunpack.c.h.b16 %v272
        %v333 = vpack.c.b16 %v301, %v297
        %v334 = vpack.c.b16 %v302, %v298
        %v335 = vpack.c.b16 %v303, %v299
        %v336 = vpack.c.b16 %v304, %v300
        %v337 = vpack.c.b16 %v309, %v305
        %v338 = vpack.c.b16 %v310, %v306
        %v339 = vpack.c.b16 %v311, %v307
        %v340 = vpack.c.b16 %v312, %v308
        %v341 = vpack.c.b16 %v317, %v313
        %v342 = vpack.c.b16 %v318, %v314
        %v343 = vpack.c.b16 %v319, %v315
        %v344 = vpack.c.b16 %v320, %v316
        %v345 = vpack.c.b16 %v325, %v321
        %v346 = vpack.c.b16 %v326, %v322
        %v347 = vpack.c.b16 %v327, %v323
        %v348 = vpack.c.b16 %v328, %v324
        %v349 = vpack.c.b16 %v329, %v329
        %v350 = vpack.c.b16 %v330, %v330
        %v351 = vpack.c.b16 %v331, %v331
        %v352 = vpack.c.b16 %v332, %v332
        %vm369 = vcmask 588800
        %v371 = vsel %vm369, %v254, 0
        %vm373 = vcmask 1043456
        %v375 = vsel %vm373, %v349, 0
        %v378 = vsel %vm373, %v350, 0
        %v381 = vsel %vm373, %v351, 0
        %v384 = vsel %vm373, %v352, 0
        %386 = vmatpush.bf16.msra.mxu0 0
        %387 = vmatpush.bf16.msra.mxu0 0
        %388 = vmatpush.bf16.msra.mxu0 0
        %389 = vmatpush.bf16.msra.mxu0 %v375
        %390 = vmatpush.bf16.msra.mxu0 %v345
        %391 = vmatpush.bf16.msra.mxu0 %v341
        %392 = vmatpush.bf16.msra.mxu0 %v337
        %393 = vmatpush.bf16.msra.mxu0 %v333
        %394 = vmatmul.bf16.gmra.mxu0 %v371
        %v395 = vpop.f32.mrf.mxu0
        %v396 = vadd.f32 %v277, %v395
        %v397 = vpop.f32.mrf.mxu0
        %398 = vdwg.mxu0
        %399 = vmatpush.bf16.msra.mxu0 0
        %400 = vmatpush.bf16.msra.mxu0 0
        %401 = vmatpush.bf16.msra.mxu0 0
        %402 = vmatpush.bf16.msra.mxu0 %v378
        %403 = vmatpush.bf16.msra.mxu0 %v346
        %404 = vmatpush.bf16.msra.mxu0 %v342
        %405 = vmatpush.bf16.msra.mxu0 %v338
        %406 = vmatpush.bf16.msra.mxu0 %v334
        %407 = vmatmul.bf16.gmra.mxu0 %v371
        %v408 = vpop.f32.mrf.mxu0
        %v409 = vadd.f32 %v277, %v408
        %v410 = vpop.f32.mrf.mxu0
        %411 = vdwg.mxu0
        %412 = vmatpush.bf16.msra.mxu0 0
        %413 = vmatpush.bf16.msra.mxu0 0
        %414 = vmatpush.bf16.msra.mxu0 0
        %415 = vmatpush.bf16.msra.mxu0 %v381
        %416 = vmatpush.bf16.msra.mxu0 %v347
        %417 = vmatpush.bf16.msra.mxu0 %v343
        %418 = vmatpush.bf16.msra.mxu0 %v339
        %419 = vmatpush.bf16.msra.mxu0 %v335
        %420 = vmatmul.bf16.gmra.mxu0 %v371
        %v421 = vpop.f32.mrf.mxu0
        %v422 = vadd.f32 %v277, %v421
        %v423 = vpop.f32.mrf.mxu0
        %424 = vdwg.mxu0
        %425 = vmatpush.bf16.msra.mxu0 0
        %426 = vmatpush.bf16.msra.mxu0 0
        %427 = vmatpush.bf16.msra.mxu0 0
        %428 = vmatpush.bf16.msra.mxu0 %v384
        %429 = vmatpush.bf16.msra.mxu0 %v348
        %430 = vmatpush.bf16.msra.mxu0 %v344
        %431 = vmatpush.bf16.msra.mxu0 %v340
        %432 = vmatpush.bf16.msra.mxu0 %v336
        %433 = vmatmul.bf16.gmra.mxu0 %v371
        %v434 = vpop.f32.mrf.mxu0
        %v435 = vadd.f32 %v277, %v434
        %v436 = vpop.f32.mrf.mxu0
        %437 = vdwg.mxu0
        %v438 = vtanh.pop %v396
        %v439 = vtanh.pop %v409
        %v440 = vtanh.pop %v422
        %v441 = vtanh.pop %v435
        %s442 = scalar_lea.vmem %s2, 4
        %v443 = vld [vmem:[%s442] sm:$0xf]
        %445 = vset.pattern.permute.xlu0 0
        %446 = vperm.xlu0 %445, %v443
        %v447 = vpop.permute.xlu0 %446
        %v449 = vmul.f32 %v438, %v447
        %v450 = vmul.f32 %v439, %v447
        %v451 = vmul.f32 %v440, %v447
        %v452 = vmul.f32 %v441, %v447
        %s453 = scalar_lea.vmem %s2, 8
        %v454 = vld [vmem:[%s453] sm:$0xf]
        %456 = vset.pattern.permute.xlu0 0
        %457 = vperm.xlu0 %456, %v454
        %v458 = vpop.permute.xlu0 %457
        %v460 = vadd.f32 %v449, %v458
        %v461 = vadd.f32 %v450, %v458
        %v462 = vadd.f32 %v451, %v458
        %v463 = vadd.f32 %v452, %v458
        %v468 = vrot.slane %v461, 4
        %v469 = vrot.slane %v463, 4
        %v470 = vsel %vm373, %v460, %v468
        %v471 = vsel %vm373, %v462, %v469
        %474 = vst [vmem:[%s251] sm:$0xff] %v470
        %475 = vst [vmem:[%s251 + $0x8] sm:$0xff] %v471
        %s476 = smul.u32 4, %s19
        %p477 = scmp.lt.s32.totalorder %s18, 1
        %s478 = scalar_select %p477, %s18, 1
        %p479 = scmp.lt.s32.totalorder %s476, 7
        %s480 = scalar_select %p479, %s476, 7
        %s481 = smul.addr %s478, 8
        %s482 = sadd.s32 %s480, %s481
        %s483 = smul.addr %s482, 4
        %s484 = scalar_lea.vmem %s3, %s483
        // Predicated region
        $region56: #{depth_block_forward.8} parent=50 // pred_check
          %p485 = pneg %p116
        $region57: #{depth_block_forward.8} parent=50 // pred_check_branch
          %487 = sbr.rel (%p485) target = $region59
        $region58: #{depth_block_forward.8} parent=50 // pred_region
          %s488 = smul.u32 4, %s19
        $region59: #{depth_block_forward.8} parent=50 // pred_fallthru
          _
      $region51: #{depth_block_forward.8} parent=5 // pred_fallthru
        _
      %p489 = scmp.le.s32.totalorder 2, %s9
      // Predicated region
      $region60: #{depth_block_forward.8} parent=5 // pred_check
        %p490 = pneg %p489
      $region61: #{depth_block_forward.8} parent=5 // pred_check_branch
        %492 = sbr.rel (%p490) target = $region63
      $region62: #{depth_block_forward.8} parent=5 // pred_region
        %s493 = ssub.s32 %s9, 2
        // Predicated region
        $region64: #{depth_block_forward.8} parent=62 // pred_check
          %p494 = pneg %p122
        $region65: #{depth_block_forward.8} parent=62 // pred_check_branch
          %496 = sbr.rel (%p494) target = $region67
        $region66: #{depth_block_forward.8} parent=62 // pred_region
          %s497 = smul.u32 4, %s21
          %p498 = scmp.lt.s32.totalorder %s20, 1
          %s499 = scalar_select %p498, %s20, 1
          %p500 = scmp.lt.s32.totalorder %s497, 7
          %s501 = scalar_select %p500, %s497, 7
          %s502 = smul.addr %s499, 8
          %s503 = sadd.s32 %s501, %s502
          %s504 = smul.addr %s503, 4
          %s505 = scalar_lea.vmem %s3, %s504
        $region67: #{depth_block_forward.8} parent=62 // pred_fallthru
          _
      $region63: #{depth_block_forward.8} parent=5 // pred_fallthru
        _
    $region6: #{depth_block_forward.8} parent=1 // loop_footer
      %s13 = sadd.s32 1, %s9
    $region7: #{depth_block_forward.8} parent=1 // loop_footer_branch
      %8 = sbr.rel target = $region3
    $region8: #{depth_block_forward.8} parent=1 // loop_exit
      _

// kernel: depth_block_forward.11
$region0: #{depth_block_forward.11}
  #allocation0 [shape = 'u32[]', space=smem, size = 0x4, offset = 0x4, fixed_abs, tag = 'smem constant byte address 0x4 - core index']
  #allocation1 [shape = 'u32[72,128]{1,0:T(1,128)}', space=vmem, size = 0x9000, scoped, tag = 'internal scratch']
  %s0 = inlined_call_operand.vmem [shape: bf16[2,18,1024], index: 0, kind: input, shape index: {}]
  %s1 = inlined_call_operand.vmem [shape: bf16[1,18], index: 1, kind: input, shape index: {}]
  %s2 = inlined_call_operand.vmem [shape: f32[3,1,1], index: 2, kind: input, shape index: {}]
  %s3 = inlined_call_operand.vmem [shape: f32[2,1,1024], index: 3, kind: output, shape index: {}]
  %s4 = sld [smem:[#allocation0]]
  $region68: #{depth_block_forward.11} parent=0
    _
  %s6 = ssub.s32 1, %s4
  %s7 = scalar_select 0, %s6, %s4
  $region1: #{depth_block_forward.11} parent=0
    #allocation2 [shape = 'u8[49152]{0}', space=vmem, size = 0xc000, scoped, tag = 'input window, operand 0']
    loop: start=0, step=1, limit=6
    $region2: #{depth_block_forward.11} parent=1 // loop_pre_header
      _
    $region3: #{depth_block_forward.11} parent=1 // loop_header
      %s9 = sphi 0, %s13
      %p10 = scmp.ge.s32.totalorder %s9, 6
      %s16 = sphi 0, %s28
      %s17 = sphi 0, %s24
      %s18 = sphi 0, %s16
      %s19 = sphi 0, %s17
      %s20 = sphi 0, %s18
      %s21 = sphi 0, %s19
      %s33 = sphi 0, %s35
      %s36 = sphi 0, %s33
      %s37 = sphi 0, %s36
      %s53 = sphi 0, %s37
      %s57 = sphi 0, %s57
      %s59 = sphi 0, %s57
      %s60 = sphi 0, %s59
      %s74 = sphi 0, %s60
      %s78 = sphi 0, %s78
      %s80 = sphi 0, %s78
      %s81 = sphi 0, %s80
      %s95 = sphi 0, %s81
      %s103 = sphi 0, %s105
      %s106 = sphi 0, %s103
      %s107 = sphi 0, %s106
      %s123 = sphi 0, %s107
    $region4: #{depth_block_forward.11} parent=1 // loop_header_branch
      %12 = sbr.rel (%p10) target = $region8
    $region5: #{depth_block_forward.11} parent=1 // loop_body
      %s14 = ssub.s32 %s9, 1
      %s15 = ssub.s32 %s9, 2
      %s22 = sadd.s32 1, %s17
      %p23 = scmp.ge.s32.totalorder %s22, 2
      %s24 = scalar_select %p23, 0, %s22
      %s25 = sadd.s32 1, %s16
      %s26 = scalar_select %p23, %s25, %s16
      %p27 = scmp.ge.s32.totalorder %s26, 2
      %s28 = scalar_select %p27, 0, %s26
      %s29 = ssub.s32 %s16, %s28
      %s30 = ssub.s32 %s17, %s24
      %s31 = sor.u32 %s29, %s30
      %p32 = scmp.eq.s32.totalorder %s31, 0
      %s34 = sadd.s32 %s33, 1
      %s35 = scalar_select %p32, %s33, %s34
      %p38 = pneg %p32
      %p39 = scmp.eq.s32.totalorder %s9, 3
      %p40 = por %p38, %p39
      %p41 = scmp.ne.s32.totalorder %s33, %s36
      %p42 = scmp.eq.s32.totalorder %s9, 0
      %p43 = por %p41, %p42
      %p44 = scmp.ne.s32.totalorder %s33, %s36
      %p45 = scmp.eq.s32.totalorder %s14, 3
      %p46 = por %p44, %p45
      %p47 = scmp.ne.s32.totalorder %s36, %s37
      %p48 = scmp.eq.s32.totalorder %s14, 0
      %p49 = por %p47, %p48
      %p50 = scmp.ne.s32.totalorder %s36, %s37
      %p51 = scmp.eq.s32.totalorder %s15, 3
      %p52 = por %p50, %p51
      %p54 = scmp.ne.s32.totalorder %s37, %s53
      %p55 = scmp.eq.s32.totalorder %s15, 0
      %p56 = por %p54, %p55
      %s58 = sadd.s32 %s57, 1
      %p61 = scmp.eq.s32.totalorder %s9, 3
      %p62 = scmp.ne.s32.totalorder %s57, %s59
      %p63 = scmp.eq.s32.totalorder %s9, 0
      %p64 = por %p62, %p63
      %p65 = scmp.ne.s32.totalorder %s57, %s59
      %p66 = scmp.eq.s32.totalorder %s14, 3
      %p67 = por %p65, %p66
      %p68 = scmp.ne.s32.totalorder %s59, %s60
      %p69 = scmp.eq.s32.totalorder %s14, 0
      %p70 = por %p68, %p69
      %p71 = scmp.ne.s32.totalorder %s59, %s60
      %p72 = scmp.eq.s32.totalorder %s15, 3
      %p73 = por %p71, %p72
      %p75 = scmp.ne.s32.totalorder %s60, %s74
      %p76 = scmp.eq.s32.totalorder %s15, 0
      %p77 = por %p75, %p76
      %s79 = sadd.s32 %s78, 1
      %p82 = scmp.eq.s32.totalorder %s9, 3
      %p83 = scmp.ne.s32.totalorder %s78, %s80
      %p84 = scmp.eq.s32.totalorder %s9, 0
      %p85 = por %p83, %p84
      %p86 = scmp.ne.s32.totalorder %s78, %s80
      %p87 = scmp.eq.s32.totalorder %s14, 3
      %p88 = por %p86, %p87
      %p89 = scmp.ne.s32.totalorder %s80, %s81
      %p90 = scmp.eq.s32.totalorder %s14, 0
      %p91 = por %p89, %p90
      %p92 = scmp.ne.s32.totalorder %s80, %s81
      %p93 = scmp.eq.s32.totalorder %s15, 3
      %p94 = por %p92, %p93
      %p96 = scmp.ne.s32.totalorder %s81, %s95
      %p97 = scmp.eq.s32.totalorder %s15, 0
      %p98 = por %p96, %p97
      %s99 = ssub.s32 %s16, %s28
      %s100 = ssub.s32 %s17, %s24
      %s101 = sor.u32 %s99, %s100
      %p102 = scmp.eq.s32.totalorder %s101, 0
      %s104 = sadd.s32 %s103, 1
      %s105 = scalar_select %p102, %s103, %s104
      %p108 = pneg %p102
      %p109 = scmp.eq.s32.totalorder %s9, 3
      %p110 = por %p108, %p109
      %p111 = scmp.ne.s32.totalorder %s103, %s106
      %p112 = scmp.eq.s32.totalorder %s9, 0
      %p113 = por %p111, %p112
      %p114 = scmp.ne.s32.totalorder %s103, %s106
      %p115 = scmp.eq.s32.totalorder %s14, 3
      %p116 = por %p114, %p115
      %p117 = scmp.ne.s32.totalorder %s106, %s107
      %p118 = scmp.eq.s32.totalorder %s14, 0
      %p119 = por %p117, %p118
      %p120 = scmp.ne.s32.totalorder %s106, %s107
      %p121 = scmp.eq.s32.totalorder %s15, 3
      %p122 = por %p120, %p121
      %p124 = scmp.ne.s32.totalorder %s107, %s123
      %p125 = scmp.eq.s32.totalorder %s15, 0
      %p126 = por %p124, %p125
      %p127 = scmp.le.s32.totalorder 1, %s9
      %p128 = scmp.lt.s32.totalorder %s9, 5
      %p129 = pnand %p127, %p128
      %p130 = pneg %p129
      // Predicated region
      $region9: #{depth_block_forward.11} parent=5 // pred_check
        _
      $region10: #{depth_block_forward.11} parent=5 // pred_check_branch
        %132 = sbr.rel (%p129) target = $region12
      $region11: #{depth_block_forward.11} parent=5 // pred_region
        %s133 = ssub.s32 %s9, 1
        // Predicated region
        $region13: #{depth_block_forward.11} parent=11 // pred_check
          %p134 = pneg %p70
        $region14: #{depth_block_forward.11} parent=11 // pred_check_branch
          %136 = sbr.rel (%p134) target = $region16
        $region15: #{depth_block_forward.11} parent=11 // pred_region
          _
        $region16: #{depth_block_forward.11} parent=11 // pred_fallthru
          _
        // Predicated region
        $region17: #{depth_block_forward.11} parent=11 // pred_check
          %p137 = pneg %p91
        $region18: #{depth_block_forward.11} parent=11 // pred_check_branch
          %139 = sbr.rel (%p137) target = $region20
        $region19: #{depth_block_forward.11} parent=11 // pred_region
          _
        $region20: #{depth_block_forward.11} parent=11 // pred_fallthru
          _
      $region12: #{depth_block_forward.11} parent=5 // pred_fallthru
        _
      %p140 = scmp.lt.s32.totalorder %s9, 4
      // Predicated region
      $region21: #{depth_block_forward.11} parent=5 // pred_check
        %p141 = pneg %p140
      $region22: #{depth_block_forward.11} parent=5 // pred_check_branch
        %143 = sbr.rel (%p141) target = $region24
      $region23: #{depth_block_forward.11} parent=5 // pred_region
        // Predicated region
        $region25: #{depth_block_forward.11} parent=23 // pred_check
          %p144 = pneg %p43
        $region26: #{depth_block_forward.11} parent=23 // pred_check_branch
          %146 = sbr.rel (%p144) target = $region28
        $region27: #{depth_block_forward.11} parent=23 // pred_region
          %s147 = sand.u32 %s33, 1
          %s148 = sand.u32 %s33, 1
          %s149 = smul.addr %s148, 48
          %s150 = scalar_lea.vmem [#allocation2], %s149
          %s151 = smul.u32 4, %s17
          %s152 = smul.addr %s16, 24
          %s153 = sadd.s32 %s151, %s152
          %s154 = smul.addr %s153, 4
          %s155 = scalar_lea.vmem %s0, %s154
          // Predicated region
          $region29: #{depth_block_forward.11} parent=27 // pred_check
            _
          $region30: #{depth_block_forward.11} parent=27 // pred_check_branch
            %157 = sbr.rel (0) target = $region32
          $region31: #{depth_block_forward.11} parent=27 // pred_region
            // Predicated region
            $region33: #{depth_block_forward.11} parent=31 // pred_check
              _
            $region34: #{depth_block_forward.11} parent=31 // pred_check_branch
              %159 = sbr.rel (0) target = $region36
            $region35: #{depth_block_forward.11} parent=31 // pred_region
              loop: start=0, step=1, limit=1
              $region37: #{depth_block_forward.11} parent=35 // loop_pre_header
                _
              $region38: #{depth_block_forward.11} parent=35 // loop_header
                %s161 = sphi 0, %s165
                %p162 = scmp.ge.s32.totalorder %s161, 1
                %s166 = sphi %s155, %s155
                %s167 = sphi %s150, %s150
              $region39: #{depth_block_forward.11} parent=35 // loop_header_branch
                %164 = sbr.rel (%p162) target = $region43
              $region40: #{depth_block_forward.11} parent=35 // loop_body
                %v168 = vld [vmem:[%s166] sm:$0xff]
                %169 = vst [vmem:[%s167] sm:$0xff] %v168
                %v170 = vld [vmem:[%s166 + $0x8] sm:$0xff]
                %171 = vst [vmem:[%s167 + $0x8] sm:$0xff] %v170
                %v172 = vld [vmem:[%s166 + $0x20] sm:$0xff]
                %173 = vst [vmem:[%s167 + $0x10] sm:$0xff] %v172
                %v174 = vld [vmem:[%s166 + $0x28] sm:$0xff]
                %175 = vst [vmem:[%s167 + $0x18] sm:$0xff] %v174
                %v176 = vld [vmem:[%s166 + $0x40] sm:$0xff]
                %177 = vst [vmem:[%s167 + $0x20] sm:$0xff] %v176
                %v178 = vld [vmem:[%s166 + $0x48] sm:$0xff]
                %179 = vst [vmem:[%s167 + $0x28] sm:$0xff] %v178
              $region41: #{depth_block_forward.11} parent=35 // loop_footer
                %s165 = sadd.s32 1, %s161
              $region42: #{depth_block_forward.11} parent=35 // loop_footer_branch
                %160 = sbr.rel target = $region38
              $region43: #{depth_block_forward.11} parent=35 // loop_exit
                _
            $region36: #{depth_block_forward.11} parent=31 // pred_fallthru
              _
            // Predicated region
            $region44: #{depth_block_forward.11} parent=31 // pred_check
              _
            $region45: #{depth_block_forward.11} parent=31 // pred_check_branch
              %181 = sbr.rel target = $region47
            $region46: #{depth_block_forward.11} parent=31 // pred_region
              _
            $region47: #{depth_block_forward.11} parent=31 // pred_fallthru
              _
          $region32: #{depth_block_forward.11} parent=27 // pred_fallthru
            _
          %182 = vnop
        $region28: #{depth_block_forward.11} parent=23 // pred_fallthru
          _
      $region24: #{depth_block_forward.11} parent=5 // pred_fallthru
        _
      %p183 = scmp.le.s32.totalorder 1, %s9
      %p184 = scmp.lt.s32.totalorder %s9, 5
      %p185 = pnand %p183, %p184
      %p186 = pneg %p185
      // Predicated region
      $region48: #{depth_block_forward.11} parent=5 // pred_check
        _
      $region49: #{depth_block_forward.11} parent=5 // pred_check_branch
        %188 = sbr.rel (%p185) target = $region51
      $region50: #{depth_block_forward.11} parent=5 // pred_region
        %s189 = ssub.s32 %s9, 1
        %s190 = sand.u32 %s36, 1
        %s191 = sand.u32 %s36, 1
        %s192 = smul.addr %s191, 48
        %s193 = scalar_lea.vmem [#allocation2], %s192
        // Predicated region
        $region52: #{depth_block_forward.11} parent=50 // pred_check
          %p194 = pneg %p49
        $region53: #{depth_block_forward.11} parent=50 // pred_check_branch
          %196 = sbr.rel (%p194) target = $region55
        $region54: #{depth_block_forward.11} parent=50 // pred_region
          _
        $region55: #{depth_block_forward.11} parent=50 // pred_fallthru
          _
        %s197 = sand.u32 %s36, 1
        %s198 = sand.u32 %s36, 1
        %s199 = smul.addr %s198, 48
        %s200 = scalar_lea.vmem [#allocation2], %s199
        %p201 = pneg %p49
        %p202 = pneg %p46
        %p203 = pneg %p70
        %p204 = pneg %p67
        %p205 = pneg %p91
        %p206 = pneg %p88
        %p207 = pneg %p119
        %p208 = pneg %p116
        %s209 = smul.u32 4, %s19
        %p210 = scmp.lt.s32.totalorder %s18, 1
        %s211 = scalar_select %p210, %s18, 1
        %p212 = scmp.lt.s32.totalorder %s209, 7
        %s213 = scalar_select %p212, %s209, 7
        %s214 = smul.addr %s211, 8
        %s215 = sadd.s32 %s213, %s214
        %s216 = scalar_lea.vmem %s3, %s215
        %s217 = smul.u32 4, %s19
        %s218 = smul.u32 4, %s19
        %p219 = scmp.lt.s32.totalorder %s18, 1
        %s220 = scalar_select %p219, %s18, 1
        %p221 = scmp.lt.s32.totalorder %s218, 7
        %s222 = scalar_select %p221, %s218, 7
        %s223 = smul.addr %s220, 8
        %s224 = sadd.s32 %s222, %s223
        %s225 = scalar_lea.vmem %s3, %s224
        %s226 = smul.u32 4, %s19
        %v228 = vld [vmem:[%s1] sm:$0x1]
        %v229 = vld [vmem:[%s193] sm:$0xff]
        %v230 = vld [vmem:[%s193 + $0x8] sm:$0xff]
        %v231 = vld [vmem:[%s193 + $0x10] sm:$0xff]
        %v232 = vld [vmem:[%s193 + $0x18] sm:$0xff]
        %v233 = vld [vmem:[%s193 + $0x20] sm:$0x11]
        %v234 = vld [vmem:[%s193 + $0x28] sm:$0x11]
        %v235 = vld [vmem:[%s2] sm:$0x1]
        %237 = vset.pattern.permute.xlu0 0
        %238 = vperm.xlu0 %237, %v235
        %v239 = vpop.permute.xlu0 %238
        %v241 = vperm.slane %v239, 0
        %v248 = vunpack.c.l.b16 %v229
        %v249 = vunpack.c.h.b16 %v229
        %v250 = vunpack.c.l.b16 %v230
        %v251 = vunpack.c.h.b16 %v230
        %v252 = vunpack.c.l.b16 %v231
        %v253 = vunpack.c.h.b16 %v231
        %v254 = vunpack.c.l.b16 %v232
        %v255 = vunpack.c.h.b16 %v232
        %v256 = vunpack.c.l.b16 %v233
        %v257 = vunpack.c.h.b16 %v233
        %v258 = vunpack.c.l.b16 %v234
        %v259 = vunpack.c.h.b16 %v234
        %v260 = vpack.c.b16 %v252, %v248
        %v261 = vpack.c.b16 %v253, %v249
        %v262 = vpack.c.b16 %v254, %v250
        %v263 = vpack.c.b16 %v255, %v251
        %v264 = vpack.c.b16 %v256, %v256
        %v265 = vpack.c.b16 %v257, %v257
        %v266 = vpack.c.b16 %v258, %v258
        %v267 = vpack.c.b16 %v259, %v259
        %vm272 = vcmask 146432
        %v274 = vsel %vm272, %v228, 0
        %vm276 = vcmask 1040384
        %v278 = vsel %vm276, %v264, 0
        %v281 = vsel %vm276, %v265, 0
        %v284 = vsel %vm276, %v266, 0
        %v287 = vsel %vm276, %v267, 0
        %289 = vmatpush.bf16.msra.mxu0 0
        %290 = vmatpush.bf16.msra.mxu0 0
        %291 = vmatpush.bf16.msra.mxu0 0
        %292 = vmatpush.bf16.msra.mxu0 0
        %293 = vmatpush.bf16.msra.mxu0 0
        %294 = vmatpush.bf16.msra.mxu0 0
        %295 = vmatpush.bf16.msra.mxu0 %v278
        %296 = vmatpush.bf16.msra.mxu0 %v260
        %297 = vmatmul.bf16.gmra.mxu0 %v274
        %v298 = vpop.f32.mrf.mxu0
        %v299 = vadd.f32 %v241, %v298
        %v300 = vpop.f32.mrf.mxu0
        %301 = vdwg.mxu0
        %302 = vmatpush.bf16.msra.mxu0 0
        %303 = vmatpush.bf16.msra.mxu0 0
        %304 = vmatpush.bf16.msra.mxu0 0
        %305 = vmatpush.bf16.msra.mxu0 0
        %306 = vmatpush.bf16.msra.mxu0 0
        %307 = vmatpush.bf16.msra.mxu0 0
        %308 = vmatpush.bf16.msra.mxu0 %v281
        %309 = vmatpush.bf16.msra.mxu0 %v261
        %310 = vmatmul.bf16.gmra.mxu0 %v274
        %v311 = vpop.f32.mrf.mxu0
        %v312 = vadd.f32 %v241, %v311
        %v313 = vpop.f32.mrf.mxu0
        %314 = vdwg.mxu0
        %315 = vmatpush.bf16.msra.mxu0 0
        %316 = vmatpush.bf16.msra.mxu0 0
        %317 = vmatpush.bf16.msra.mxu0 0
        %318 = vmatpush.bf16.msra.mxu0 0
        %319 = vmatpush.bf16.msra.mxu0 0
        %320 = vmatpush.bf16.msra.mxu0 0
        %321 = vmatpush.bf16.msra.mxu0 %v284
        %322 = vmatpush.bf16.msra.mxu0 %v262
        %323 = vmatmul.bf16.gmra.mxu0 %v274
        %v324 = vpop.f32.mrf.mxu0
        %v325 = vadd.f32 %v241, %v324
        %v326 = vpop.f32.mrf.mxu0
        %327 = vdwg.mxu0
        %328 = vmatpush.bf16.msra.mxu0 0
        %329 = vmatpush.bf16.msra.mxu0 0
        %330 = vmatpush.bf16.msra.mxu0 0
        %331 = vmatpush.bf16.msra.mxu0 0
        %332 = vmatpush.bf16.msra.mxu0 0
        %333 = vmatpush.bf16.msra.mxu0 0
        %334 = vmatpush.bf16.msra.mxu0 %v287
        %335 = vmatpush.bf16.msra.mxu0 %v263
        %336 = vmatmul.bf16.gmra.mxu0 %v274
        %v337 = vpop.f32.mrf.mxu0
        %v338 = vadd.f32 %v241, %v337
        %v339 = vpop.f32.mrf.mxu0
        %340 = vdwg.mxu0
        %v341 = vtanh.pop %v299
        %v342 = vtanh.pop %v312
        %v343 = vtanh.pop %v325
        %v344 = vtanh.pop %v338
        %s345 = scalar_lea.vmem %s2, 1
        %v346 = vld [vmem:[%s345] sm:$0x1]
        %348 = vset.pattern.permute.xlu0 0
        %349 = vperm.xlu0 %348, %v346
        %v350 = vpop.permute.xlu0 %349
        %v352 = vperm.slane %v350, 0
        %v353 = vmul.f32 %v341, %v352
        %v354 = vmul.f32 %v342, %v352
        %v355 = vmul.f32 %v343, %v352
        %v356 = vmul.f32 %v344, %v352
        %s357 = scalar_lea.vmem %s2, 2
        %v358 = vld [vmem:[%s357] sm:$0x1]
        %360 = vset.pattern.permute.xlu0 0
        %361 = vperm.xlu0 %360, %v358
        %v362 = vpop.permute.xlu0 %361
        %v364 = vperm.slane %v362, 0
        %v365 = vadd.f32 %v353, %v364
        %v366 = vadd.f32 %v354, %v364
        %v367 = vadd.f32 %v355, %v364
        %v368 = vadd.f32 %v356, %v364
        %v373 = vrot.slane %v366, 7
        %v374 = vrot.slane %v367, 6
        %v375 = vrot.slane %v368, 5
        %v376 = vsel %vm276, %v365, %v373
        %vm377 = vcmask 1042434
        %v378 = vsel %vm377, %v374, %v375
        %vm379 = vcmask 1041408
        %v380 = vsel %vm379, %v376, %v378
        %v382 = vlaneseq
        %vm383 = vcmp.ge.s32.totalorder %v382, 0
        %vm384 = vcmp.lt.s32.totalorder %v382, 512
        %vm385 = vmand %vm383, %vm384
        %386 = vst.msk [vmem:[%s225] sm:$0xf] %vm385, %v380
        %s387 = smul.u32 4, %s19
        %p388 = scmp.lt.s32.totalorder %s18, 1
        %s389 = scalar_select %p388, %s18, 1
        %p390 = scmp.lt.s32.totalorder %s387, 7
        %s391 = scalar_select %p390, %s387, 7
        %s392 = smul.addr %s389, 8
        %s393 = sadd.s32 %s391, %s392
        %s394 = scalar_lea.vmem %s3, %s393
        // Predicated region
        $region56: #{depth_block_forward.11} parent=50 // pred_check
          %p395 = pneg %p116
        $region57: #{depth_block_forward.11} parent=50 // pred_check_branch
          %397 = sbr.rel (%p395) target = $region59
        $region58: #{depth_block_forward.11} parent=50 // pred_region
          %s398 = smul.u32 4, %s19
        $region59: #{depth_block_forward.11} parent=50 // pred_fallthru
          _
      $region51: #{depth_block_forward.11} parent=5 // pred_fallthru
        _
      %p399 = scmp.le.s32.totalorder 2, %s9
      // Predicated region
      $region60: #{depth_block_forward.11} parent=5 // pred_check
        %p400 = pneg %p399
      $region61: #{depth_block_forward.11} parent=5 // pred_check_branch
        %402 = sbr.rel (%p400) target = $region63
      $region62: #{depth_block_forward.11} parent=5 // pred_region
        %s403 = ssub.s32 %s9, 2
        // Predicated region
        $region64: #{depth_block_forward.11} parent=62 // pred_check
          %p404 = pneg %p122
        $region65: #{depth_block_forward.11} parent=62 // pred_check_branch
          %406 = sbr.rel (%p404) target = $region67
        $region66: #{depth_block_forward.11} parent=62 // pred_region
          %s407 = smul.u32 4, %s21
          %p408 = scmp.lt.s32.totalorder %s20, 1
          %s409 = scalar_select %p408, %s20, 1
          %p410 = scmp.lt.s32.totalorder %s407, 7
          %s411 = scalar_select %p410, %s407, 7
          %s412 = smul.addr %s409, 8
          %s413 = sadd.s32 %s411, %s412
          %s414 = scalar_lea.vmem %s3, %s413
        $region67: #{depth_block_forward.11} parent=62 // pred_fallthru
          _
      $region63: #{depth_block_forward.11} parent=5 // pred_fallthru
        _
    $region6: #{depth_block_forward.11} parent=1 // loop_footer
      %s13 = sadd.s32 1, %s9
    $region7: #{depth_block_forward.11} parent=1 // loop_footer_branch
      %8 = sbr.rel target = $region3
    $region8: #{depth_block_forward.11} parent=1 // loop_exit
      _

</llo_original>
